<compile_context>
chip_gen: v7x
topology: tpu7x:2x2x1
jax: 0.10.0
libtpu: 0.0.40
codegen_flags: <defaults>
</compile_context>

<pallas_src>
import functools

import jax
import jax.numpy as jnp
import numpy as np
from jax import lax
from jax.experimental import pallas as pl
from jax.experimental.pallas import tpu as pltpu


def _round_up(x, m):
    return ((x + m - 1) // m) * m


# ----------------------------------------------------------------------------
# Fused kernel: all GRU layers + MLP head, one grid step per (batch-tile, time-chunk).
# Refs (in order):
#   x_ref                              : (Tc*Bt, Ep)   layer-0 input chunk (time-major)
#   per layer l: wih, whh, bih, bhn    : (in_p,3Hp), (Hp,3Hp), (1,3Hp) f32, (1,Hp) f32
#   head: w1, b1, w2, b2               : (Hp,Hp), (1,Hp) f32, (Hp,Op), (1,Op) f32
#   o_ref                              : (Bt, Op)      classifier output (written at last chunk)
# Scratch:
#   h_scr   : (L, Bt, Hp) f32          hidden state per layer, carried across chunks
#   gi_scr  : (Tc*Bt, 3Hp) f32         hoisted chunk-wide input projection (reused per layer)
#   seq_scr : (Tc*Bt, Hp)  act dtype   chunk output of non-top layers (only if L > 1)
# ----------------------------------------------------------------------------
def _gru_model_kernel(*refs, num_layers, Tc, Bt, Hp, T_real):
    x_ref = refs[0]
    pos = 1
    layer_refs = []
    for _ in range(num_layers):
        layer_refs.append(refs[pos:pos + 4])
        pos += 4
    w1_ref, b1_ref, w2_ref, b2_ref = refs[pos:pos + 4]
    pos += 4
    o_ref = refs[pos]
    pos += 1
    h_scr = refs[pos]
    gi_scr = refs[pos + 1]
    seq_scr = refs[pos + 2] if num_layers > 1 else None

    c = pl.program_id(1)
    needs_mask = (T_real % Tc) != 0  # static

    @pl.when(c == 0)
    def _():
        h_scr[...] = jnp.zeros_like(h_scr)

    layer_in = x_ref[...]                      # (Tc*Bt, in_p), activation dtype
    h_top = None

    for l in range(num_layers):
        wih_ref, whh_ref, bih_ref, bhn_ref = layer_refs[l]

        # Hoisted input projection for the whole chunk: one big MXU matmul.
        # b_ir+b_hr / b_iz+b_hz / b_in are folded into bih at pack time.
        gi_scr[...] = (jnp.dot(layer_in, wih_ref[...],
                               preferred_element_type=jnp.float32) + bih_ref[...])

        # Pre-broadcast the n-gate hidden bias once per chunk (not per step).
        bhn = jnp.broadcast_to(bhn_ref[...], (Bt, Hp))

        def step(t, h):
            off = pl.multiple_of(t * Bt, Bt)
            gi_t = gi_scr[pl.ds(off, Bt), :]
            gh = jnp.dot(h.astype(whh_ref.dtype), whh_ref[...],
                         preferred_element_type=jnp.float32)
            r = jax.nn.sigmoid(gi_t[:, 0:Hp] + gh[:, 0:Hp])
            z = jax.nn.sigmoid(gi_t[:, Hp:2 * Hp] + gh[:, Hp:2 * Hp])
            n = jnp.tanh(gi_t[:, 2 * Hp:3 * Hp] + r * (gh[:, 2 * Hp:3 * Hp] + bhn))
            h_new = n + z * (h - n)                     # == (1-z)*n + z*h
            if needs_mask:
                h_new = jnp.where(c * Tc + t < T_real, h_new, h)
            if l < num_layers - 1:
                seq_scr[pl.ds(off, Bt), :] = h_new.astype(seq_scr.dtype)
            return h_new

        # TODO(synk): layer-0's projection could additionally be pipelined one chunk ahead
        # (double gi_scr, shift the x index_map) to hide it under the serial recurrence.
        h_last = lax.fori_loop(0, Tc, step, h_scr[l], unroll=min(Tc, 8))
        h_scr[l] = h_last
        h_top = h_last

        if l < num_layers - 1:
            layer_in = seq_scr[...]

    @pl.when(c == pl.num_programs(1) - 1)
    def _():
        # TODO(synk): Dropout(0.5) implemented as identity (eval mode); training-mode dropout
        # would need pltpu.prng_seed/prng_random_bits masking + 1/(1-p) scaling.
        y = jnp.dot(h_top.astype(w1_ref.dtype), w1_ref[...],
                    preferred_element_type=jnp.float32) + b1_ref[...]
        y = jnp.maximum(y, 0.0)
        o = jnp.dot(y.astype(w2_ref.dtype), w2_ref[...],
                    preferred_element_type=jnp.float32) + b2_ref[...]
        o_ref[...] = o.astype(o_ref.dtype)


# ----------------------------------------------------------------------------
# Parameter packing: transpose, lane/sublane pad, gate-blocked layout, bias folding.
# ----------------------------------------------------------------------------
def _pack_gate_weight(w, in_dim, H, in_p, Hp, dtype):
    """w: (3H, in_dim) PyTorch layout -> (in_p, 3*Hp) transposed, gate-blocked, zero padded."""
    blocks = []
    for g in range(3):
        blk = w[g * H:(g + 1) * H, :].T                        # (in_dim, H)
        blocks.append(jnp.pad(blk, ((0, in_p - in_dim), (0, Hp - H))))
    return jnp.concatenate(blocks, axis=1).astype(dtype)


def _pack_gru_biases(b_ih, b_hh, H, Hp):
    """Fold b_hr, b_hz into the input-projection bias; keep b_hn separate (it is scaled by r)."""
    def pad(v):
        return jnp.pad(v, (0, Hp - H))
    bih = jnp.concatenate([pad(b_ih[0:H] + b_hh[0:H]),
                           pad(b_ih[H:2 * H] + b_hh[H:2 * H]),
                           pad(b_ih[2 * H:3 * H])]).reshape(1, 3 * Hp).astype(jnp.float32)
    bhn = pad(b_hh[2 * H:3 * H]).reshape(1, Hp).astype(jnp.float32)
    return bih, bhn


# ----------------------------------------------------------------------------
# Chunk / VMEM planning.
# ----------------------------------------------------------------------------
def _plan(T, Bt, Ep, Hp, Op, L, param_dtype, max_chunk, budget):
    wbytes = jnp.dtype(param_dtype).itemsize
    weight_bytes = 0
    in_p = Ep
    for _ in range(L):
        weight_bytes += (in_p * 3 * Hp + Hp * 3 * Hp) * wbytes + (3 * Hp + Hp) * 4
        in_p = Hp
    weight_bytes += (Hp * Hp + Hp * Op) * wbytes + (Hp + Op) * 4

    per_step = (2 * Bt * Ep * wbytes                   # x block (double buffered)
                + Bt * 3 * Hp * 4                      # gi scratch
                + (Bt * Hp * wbytes if L > 1 else 0))  # seq scratch
    fixed = weight_bytes + L * Bt * Hp * 4 + 2 * Bt * Op * 4
    avail = max(budget - fixed, per_step)
    Tc = int(max(1, min(T, max_chunk, avail // per_step)))
    Tp = _round_up(T, Tc)
    footprint = fixed + Tc * per_step
    vmem_limit = int(min(max(footprint + (16 << 20), 32 << 20), 128 << 20))
    return Tc, Tp, vmem_limit


# ----------------------------------------------------------------------------
# Full model forward (batch-first (B, T) token ids, like the PyTorch module).
# ----------------------------------------------------------------------------
def gru_model_forward(params, token_ids, *, param_dtype=jnp.bfloat16,
                      max_chunk=128, vmem_budget=44 << 20):
    B, T = token_ids.shape
    E = params["embedding"].shape[1]
    H = params["gru_layers"][0]["w_hh"].shape[1]
    O = params["fc2_w"].shape[0]
    L = len(params["gru_layers"])

    Bp = _round_up(B, 8)
    Ep = _round_up(E, 128)
    Hp = _round_up(H, 128)
    Op = _round_up(O, 128)

    # Two independent batch tiles -> "parallel" grid axis (feeds v7x's second TensorCore).
    nb = 2 if (Bp >= 16 and Bp % 16 == 0) else 1
    Bt = Bp // nb

    Tc, Tp, vmem_limit = _plan(T, Bt, Ep, Hp, Op, L, param_dtype, max_chunk, vmem_budget)
    n_chunks = Tp // Tc

    # ---- pack weights (gate-blocked, lane padded, bf16 by default; biases stay f32) ----
    weights = []
    in_dim, in_p = E, Ep
    for layer in params["gru_layers"]:
        wih = _pack_gate_weight(layer["w_ih"], in_dim, H, in_p, Hp, param_dtype)
        whh = _pack_gate_weight(layer["w_hh"], H, H, Hp, Hp, param_dtype)
        bih, bhn = _pack_gru_biases(layer["b_ih"], layer["b_hh"], H, Hp)
        weights += [wih, whh, bih, bhn]
        in_dim, in_p = H, Hp
    w1 = jnp.pad(params["fc1_w"].T, ((0, Hp - H), (0, Hp - H))).astype(param_dtype)
    b1 = jnp.pad(params["fc1_b"], (0, Hp - H)).reshape(1, Hp).astype(jnp.float32)
    w2 = jnp.pad(params["fc2_w"].T, ((0, Hp - H), (0, Op - O))).astype(param_dtype)
    b2 = jnp.pad(params["fc2_b"], (0, Op - O)).reshape(1, Op).astype(jnp.float32)
    weights += [w1, b1, w2, b2]

    # ---- embedding: gather directly into time-major layout (no (B,T,E) transpose pass) ----
    # TODO(synk): the gather itself still runs in XLA; a scalar-prefetch in-kernel row gather
    # would remove one more HBM round trip of the (Tp, Bp, Ep) activation tensor.
    emb = jnp.take(params["embedding"], token_ids.T, axis=0).astype(param_dtype)   # (T, B, E)
    x = jnp.pad(emb, ((0, Tp - T), (0, Bp - B), (0, Ep - E)))                       # (Tp,Bp,Ep)
    x = x.reshape(Tp, nb, Bt, Ep).transpose(1, 0, 2, 3).reshape(nb * Tp * Bt, Ep)

    const_map = lambda b, c: (0, 0)

    def wspec(shape):
        # Constant-index weights: single buffer (no pointless double residency).
        return pl.BlockSpec(shape, const_map, pipeline_mode=pl.Buffered(1))

    in_specs = [pl.BlockSpec((Tc * Bt, Ep), lambda b, c, n=n_chunks: (b * n + c, 0))]
    in_p = Ep
    for _ in range(L):
        in_specs += [wspec((in_p, 3 * Hp)), wspec((Hp, 3 * Hp)),
                     wspec((1, 3 * Hp)), wspec((1, Hp))]
        in_p = Hp
    in_specs += [wspec((Hp, Hp)), wspec((1, Hp)), wspec((Hp, Op)), wspec((1, Op))]

    scratch_shapes = [pltpu.VMEM((L, Bt, Hp), jnp.float32),
                      pltpu.VMEM((Tc * Bt, 3 * Hp), jnp.float32)]
    if L > 1:
        scratch_shapes.append(pltpu.VMEM((Tc * Bt, Hp), param_dtype))

    grid_spec = pltpu.PrefetchScalarGridSpec(
        num_scalar_prefetch=0,
        grid=(nb, n_chunks),
        in_specs=in_specs,
        out_specs=pl.BlockSpec((Bt, Op), lambda b, c: (b, 0)),
        scratch_shapes=scratch_shapes,
    )

    out = pl.pallas_call(
        functools.partial(_gru_model_kernel, num_layers=L, Tc=Tc, Bt=Bt, Hp=Hp, T_real=T),
        out_shape=jax.ShapeDtypeStruct((Bp, Op), jnp.float32),
        grid_spec=grid_spec,
        compiler_params=pltpu.CompilerParams(
            dimension_semantics=("parallel", "arbitrary"),
            vmem_limit_bytes=vmem_limit),
    )(x, *weights)
    return out[:B, :O]


# ----------------------------------------------------------------------------
# Deterministic parameter init (PyTorch-like uniform(-1/sqrt(H), 1/sqrt(H)))
# ----------------------------------------------------------------------------
def init_params(key, vocab, emb_size, hid_size, layer_dim, output_dim):
    keys = jax.random.split(key, 3 + 4 * layer_dim + 4)
    ki = iter(keys)
    k = 1.0 / np.sqrt(hid_size)

    params = {"embedding": jax.random.normal(next(ki), (vocab, emb_size), jnp.float32)}

    gru_layers = []
    for l in range(layer_dim):
        in_dim = emb_size if l == 0 else hid_size
        gru_layers.append({
            "w_ih": jax.random.uniform(next(ki), (3 * hid_size, in_dim), jnp.float32, -k, k),
            "w_hh": jax.random.uniform(next(ki), (3 * hid_size, hid_size), jnp.float32, -k, k),
            "b_ih": jax.random.uniform(next(ki), (3 * hid_size,), jnp.float32, -k, k),
            "b_hh": jax.random.uniform(next(ki), (3 * hid_size,), jnp.float32, -k, k),
        })
    params["gru_layers"] = gru_layers

    params["fc1_w"] = jax.random.uniform(next(ki), (hid_size, hid_size), jnp.float32, -k, k)
    params["fc1_b"] = jax.random.uniform(next(ki), (hid_size,), jnp.float32, -k, k)
    params["fc2_w"] = jax.random.uniform(next(ki), (output_dim, hid_size), jnp.float32, -k, k)
    params["fc2_b"] = jax.random.uniform(next(ki), (output_dim,), jnp.float32, -k, k)
    return params


# ----------------------------------------------------------------------------
# Pure-JAX reference (correctness check, matches PyTorch GRU math in f32)
# ----------------------------------------------------------------------------
def reference_forward(params, token_ids):
    embeds = jnp.take(params["embedding"], token_ids, axis=0)
    x = jnp.transpose(embeds, (1, 0, 2)).astype(jnp.float32)   # (T, B, E)

    for layer in params["gru_layers"]:
        _, B, _ = x.shape
        H = layer["w_hh"].shape[1]

        def step(h, x_t, layer=layer):
            gi = x_t @ layer["w_ih"].T + layer["b_ih"]
            gh = h @ layer["w_hh"].T + layer["b_hh"]
            i_r, i_z, i_n = jnp.split(gi, 3, axis=-1)
            h_r, h_z, h_n = jnp.split(gh, 3, axis=-1)
            r = jax.nn.sigmoid(i_r + h_r)
            z = jax.nn.sigmoid(i_z + h_z)
            n = jnp.tanh(i_n + r * h_n)
            h_new = (1.0 - z) * n + z * h
            return h_new, h_new

        _, outs = lax.scan(step, jnp.zeros((B, H), jnp.float32), x)
        x = outs

    h_last = x[-1]
    y = jnp.maximum(h_last @ params["fc1_w"].T + params["fc1_b"], 0.0)
    return y @ params["fc2_w"].T + params["fc2_b"]


if __name__ == "__main__":
    VOCAB, EMB, HID, LAYERS, OUT = 50, 32, 32, 2, 2
    B, T = 2, 8

    key = jax.random.PRNGKey(0)
    kp, kx = jax.random.split(key)
    params = init_params(kp, VOCAB, EMB, HID, LAYERS, OUT)
    token_ids = jax.random.randint(kx, (B, T), 0, VOCAB, dtype=jnp.int32)

    ref = jax.block_until_ready(reference_forward(params, token_ids))

    # f32 weight path: exact parity with the f32 reference.
    out_f32 = jax.block_until_ready(
        gru_model_forward(params, token_ids, param_dtype=jnp.float32))
    assert out_f32.shape == (B, OUT), out_f32.shape
    np.testing.assert_allclose(np.asarray(out_f32), np.asarray(ref), rtol=1e-4, atol=1e-4)

    # bf16 weight/activation path (default, halves HBM/VMEM traffic): relaxed tolerance.
    out_bf16 = jax.block_until_ready(gru_model_forward(params, token_ids))
    assert out_bf16.shape == (B, OUT), out_bf16.shape
    np.testing.assert_allclose(np.asarray(out_bf16), np.asarray(ref), rtol=5e-2, atol=5e-2)

    print("KERNEL_OK")
</pallas_src>

<mosaic_0001>
module attributes {stable_mosaic.version = 11 : i64} {
  func.func @_gru_model_kernel(%arg0: i32, %arg1: i32, %arg2: memref<64x128xf32, #tpu.memory_space<vmem>>, %arg3: memref<128x384xf32, #tpu.memory_space<vmem>>, %arg4: memref<128x384xf32, #tpu.memory_space<vmem>>, %arg5: memref<1x384xf32, #tpu.memory_space<vmem>>, %arg6: memref<1x128xf32, #tpu.memory_space<vmem>>, %arg7: memref<128x384xf32, #tpu.memory_space<vmem>>, %arg8: memref<128x384xf32, #tpu.memory_space<vmem>>, %arg9: memref<1x384xf32, #tpu.memory_space<vmem>>, %arg10: memref<1x128xf32, #tpu.memory_space<vmem>>, %arg11: memref<128x128xf32, #tpu.memory_space<vmem>>, %arg12: memref<1x128xf32, #tpu.memory_space<vmem>>, %arg13: memref<128x128xf32, #tpu.memory_space<vmem>>, %arg14: memref<1x128xf32, #tpu.memory_space<vmem>>, %arg15: memref<8x128xf32, #tpu.memory_space<vmem>>, %arg16: memref<2x8x128xf32, #tpu.memory_space<vmem>>, %arg17: memref<64x384xf32, #tpu.memory_space<vmem>>, %arg18: memref<64x128xf32, #tpu.memory_space<vmem>>) attributes {dimension_semantics = [#tpu.dimension_semantics<parallel>, #tpu.dimension_semantics<arbitrary>], iteration_bounds = array<i64: 1, 1>, scalar_prefetch = 0 : i64, scratch_operands = 3 : i64, tpu.core_type = #tpu.core_type<tc>, window_params = [{transform_indices = @transform_0, window_bounds = array<i64: 64, 128>}, {pipeline_mode = #tpu.pipeline_mode<synchronous>, transform_indices = @transform_1, window_bounds = array<i64: 128, 384>}, {pipeline_mode = #tpu.pipeline_mode<synchronous>, transform_indices = @transform_2, window_bounds = array<i64: 128, 384>}, {pipeline_mode = #tpu.pipeline_mode<synchronous>, transform_indices = @transform_3, window_bounds = array<i64: 1, 384>}, {pipeline_mode = #tpu.pipeline_mode<synchronous>, transform_indices = @transform_4, window_bounds = array<i64: 1, 128>}, {pipeline_mode = #tpu.pipeline_mode<synchronous>, transform_indices = @transform_5, window_bounds = array<i64: 128, 384>}, {pipeline_mode = #tpu.pipeline_mode<synchronous>, transform_indices = @transform_6, window_bounds = array<i64: 128, 384>}, {pipeline_mode = #tpu.pipeline_mode<synchronous>, transform_indices = @transform_7, window_bounds = array<i64: 1, 384>}, {pipeline_mode = #tpu.pipeline_mode<synchronous>, transform_indices = @transform_8, window_bounds = array<i64: 1, 128>}, {pipeline_mode = #tpu.pipeline_mode<synchronous>, transform_indices = @transform_9, window_bounds = array<i64: 128, 128>}, {pipeline_mode = #tpu.pipeline_mode<synchronous>, transform_indices = @transform_10, window_bounds = array<i64: 1, 128>}, {pipeline_mode = #tpu.pipeline_mode<synchronous>, transform_indices = @transform_11, window_bounds = array<i64: 128, 128>}, {pipeline_mode = #tpu.pipeline_mode<synchronous>, transform_indices = @transform_12, window_bounds = array<i64: 1, 128>}, {transform_indices = @transform_13, window_bounds = array<i64: 8, 128>}]} {
    %c0_i32 = arith.constant 0 : i32
    %0 = arith.cmpi eq, %arg1, %c0_i32 : i32
    %1 = arith.extui %0 : i1 to i32
    %c0_i32_0 = arith.constant 0 : i32
    %2 = arith.cmpi ne, %1, %c0_i32_0 : i32
    scf.if %2 {
      %cst_164 = arith.constant 0.000000e+00 : f32
      %548 = vector.broadcast %cst_164 : f32 to vector<2x8x128xf32>
      %c0_165 = arith.constant 0 : index
      %c0_166 = arith.constant 0 : index
      %c0_167 = arith.constant 0 : index
      %549 = vector.load %arg16[%c0_165, %c0_166, %c0_167] : memref<2x8x128xf32, #tpu.memory_space<vmem>>, vector<2x8x128xf32>
      tpu.vector_store %arg16[%c0_165, %c0_166, %c0_167], %548 {strides = array<i32>} : memref<2x8x128xf32, #tpu.memory_space<vmem>>, vector<2x8x128xf32>,
    } else {
    }
    %c0 = arith.constant 0 : index
    %c0_1 = arith.constant 0 : index
    %3 = vector.load %arg2[%c0, %c0_1] : memref<64x128xf32, #tpu.memory_space<vmem>>, vector<64x128xf32>
    %c0_2 = arith.constant 0 : index
    %c0_3 = arith.constant 0 : index
    %4 = vector.load %arg3[%c0_2, %c0_3] : memref<128x384xf32, #tpu.memory_space<vmem>>, vector<128x384xf32>
    %cst = arith.constant dense<0.000000e+00> : vector<64x384xf32>
    %5 = tpu.matmul %3, %4, %cst {dimension_numbers = #tpu.dot_dimension_numbers<[1], [0], [0], [1], [0, 0, 1, 1], [], []>} : vector<64x128xf32>, vector<128x384xf32>, vector<64x384xf32> -> vector<64x384xf32>
    %c0_4 = arith.constant 0 : index
    %c0_5 = arith.constant 0 : index
    %6 = vector.load %arg5[%c0_4, %c0_5] : memref<1x384xf32, #tpu.memory_space<vmem>>, vector<1x384xf32>
    %7 = vector.broadcast %6 : vector<1x384xf32> to vector<64x384xf32>
    %8 = arith.addf %5, %7 : vector<64x384xf32>
    %c0_6 = arith.constant 0 : index
    %c0_7 = arith.constant 0 : index
    %9 = vector.load %arg17[%c0_6, %c0_7] : memref<64x384xf32, #tpu.memory_space<vmem>>, vector<64x384xf32>
    tpu.vector_store %arg17[%c0_6, %c0_7], %8 {strides = array<i32>} : memref<64x384xf32, #tpu.memory_space<vmem>>, vector<64x384xf32>,
    %c0_8 = arith.constant 0 : index
    %c0_9 = arith.constant 0 : index
    %10 = vector.load %arg6[%c0_8, %c0_9] : memref<1x128xf32, #tpu.memory_space<vmem>>, vector<1x128xf32>
    %11 = vector.shape_cast %10 : vector<1x128xf32> to vector<1x128xf32>
    %12 = vector.broadcast %11 : vector<1x128xf32> to vector<8x128xf32>
    %c0_10 = arith.constant 0 : index
    %c0_11 = arith.constant 0 : index
    %c0_12 = arith.constant 0 : index
    %13 = vector.load %arg16[%c0_10, %c0_11, %c0_12] : memref<2x8x128xf32, #tpu.memory_space<vmem>>, vector<1x8x128xf32>
    %14 = vector.shape_cast %13 : vector<1x8x128xf32> to vector<8x128xf32>
    %c0_i32_13 = arith.constant 0 : i32
    %c8_i32 = arith.constant 8 : i32
    %15 = arith.muli %c0_i32_13, %c8_i32 : i32
    %16 = tpu.assume_multiple %15, 8 : i32
    %17 = arith.index_cast %16 : i32 to index
    %c0_14 = arith.constant 0 : index
    %18 = vector.load %arg17[%17, %c0_14] : memref<64x384xf32, #tpu.memory_space<vmem>>, vector<8x384xf32>
    %c0_15 = arith.constant 0 : index
    %c0_16 = arith.constant 0 : index
    %19 = vector.load %arg4[%c0_15, %c0_16] : memref<128x384xf32, #tpu.memory_space<vmem>>, vector<128x384xf32>
    %cst_17 = arith.constant dense<0.000000e+00> : vector<8x384xf32>
    %20 = tpu.matmul %14, %19, %cst_17 {dimension_numbers = #tpu.dot_dimension_numbers<[1], [0], [0], [1], [0, 0, 1, 1], [], []>} : vector<8x128xf32>, vector<128x384xf32>, vector<8x384xf32> -> vector<8x384xf32>
    %21 = vector.extract_strided_slice %18 {offsets = [0, 0], sizes = [8, 128], strides = [1, 1]} : vector<8x384xf32> to vector<8x128xf32>
    %22 = vector.extract_strided_slice %20 {offsets = [0, 0], sizes = [8, 128], strides = [1, 1]} : vector<8x384xf32> to vector<8x128xf32>
    %23 = arith.addf %21, %22 : vector<8x128xf32>
    %24 = arith.negf %23 : vector<8x128xf32>
    %25 = math.exp %24 : vector<8x128xf32>
    %cst_18 = arith.constant 1.000000e+00 : f32
    %26 = vector.broadcast %cst_18 : f32 to vector<8x128xf32>
    %27 = arith.addf %26, %25 : vector<8x128xf32>
    %28 = arith.divf %26, %27 : vector<8x128xf32>
    %29 = vector.extract_strided_slice %18 {offsets = [0, 128], sizes = [8, 128], strides = [1, 1]} : vector<8x384xf32> to vector<8x128xf32>
    %30 = vector.extract_strided_slice %20 {offsets = [0, 128], sizes = [8, 128], strides = [1, 1]} : vector<8x384xf32> to vector<8x128xf32>
    %31 = arith.addf %29, %30 : vector<8x128xf32>
    %32 = arith.negf %31 : vector<8x128xf32>
    %33 = math.exp %32 : vector<8x128xf32>
    %cst_19 = arith.constant 1.000000e+00 : f32
    %34 = vector.broadcast %cst_19 : f32 to vector<8x128xf32>
    %35 = arith.addf %34, %33 : vector<8x128xf32>
    %36 = arith.divf %34, %35 : vector<8x128xf32>
    %37 = vector.extract_strided_slice %18 {offsets = [0, 256], sizes = [8, 128], strides = [1, 1]} : vector<8x384xf32> to vector<8x128xf32>
    %38 = vector.extract_strided_slice %20 {offsets = [0, 256], sizes = [8, 128], strides = [1, 1]} : vector<8x384xf32> to vector<8x128xf32>
    %39 = arith.addf %38, %12 : vector<8x128xf32>
    %40 = arith.mulf %28, %39 : vector<8x128xf32>
    %41 = arith.addf %37, %40 : vector<8x128xf32>
    %42 = math.tanh %41 : vector<8x128xf32>
    %43 = arith.subf %14, %42 : vector<8x128xf32>
    %44 = arith.mulf %36, %43 : vector<8x128xf32>
    %45 = arith.addf %42, %44 : vector<8x128xf32>
    %46 = arith.index_cast %16 : i32 to index
    %c0_20 = arith.constant 0 : index
    %47 = vector.load %arg18[%46, %c0_20] : memref<64x128xf32, #tpu.memory_space<vmem>>, vector<8x128xf32>
    tpu.vector_store %arg18[%46, %c0_20], %45 {strides = array<i32>} : memref<64x128xf32, #tpu.memory_space<vmem>>, vector<8x128xf32>,
    %c1_i32 = arith.constant 1 : i32
    %c8_i32_21 = arith.constant 8 : i32
    %48 = arith.muli %c1_i32, %c8_i32_21 : i32
    %49 = tpu.assume_multiple %48, 8 : i32
    %50 = arith.index_cast %49 : i32 to index
    %c0_22 = arith.constant 0 : index
    %51 = vector.load %arg17[%50, %c0_22] : memref<64x384xf32, #tpu.memory_space<vmem>>, vector<8x384xf32>
    %c0_23 = arith.constant 0 : index
    %c0_24 = arith.constant 0 : index
    %52 = vector.load %arg4[%c0_23, %c0_24] : memref<128x384xf32, #tpu.memory_space<vmem>>, vector<128x384xf32>
    %cst_25 = arith.constant dense<0.000000e+00> : vector<8x384xf32>
    %53 = tpu.matmul %45, %52, %cst_25 {dimension_numbers = #tpu.dot_dimension_numbers<[1], [0], [0], [1], [0, 0, 1, 1], [], []>} : vector<8x128xf32>, vector<128x384xf32>, vector<8x384xf32> -> vector<8x384xf32>
    %54 = vector.extract_strided_slice %51 {offsets = [0, 0], sizes = [8, 128], strides = [1, 1]} : vector<8x384xf32> to vector<8x128xf32>
    %55 = vector.extract_strided_slice %53 {offsets = [0, 0], sizes = [8, 128], strides = [1, 1]} : vector<8x384xf32> to vector<8x128xf32>
    %56 = arith.addf %54, %55 : vector<8x128xf32>
    %57 = arith.negf %56 : vector<8x128xf32>
    %58 = math.exp %57 : vector<8x128xf32>
    %cst_26 = arith.constant 1.000000e+00 : f32
    %59 = vector.broadcast %cst_26 : f32 to vector<8x128xf32>
    %60 = arith.addf %59, %58 : vector<8x128xf32>
    %61 = arith.divf %59, %60 : vector<8x128xf32>
    %62 = vector.extract_strided_slice %51 {offsets = [0, 128], sizes = [8, 128], strides = [1, 1]} : vector<8x384xf32> to vector<8x128xf32>
    %63 = vector.extract_strided_slice %53 {offsets = [0, 128], sizes = [8, 128], strides = [1, 1]} : vector<8x384xf32> to vector<8x128xf32>
    %64 = arith.addf %62, %63 : vector<8x128xf32>
    %65 = arith.negf %64 : vector<8x128xf32>
    %66 = math.exp %65 : vector<8x128xf32>
    %cst_27 = arith.constant 1.000000e+00 : f32
    %67 = vector.broadcast %cst_27 : f32 to vector<8x128xf32>
    %68 = arith.addf %67, %66 : vector<8x128xf32>
    %69 = arith.divf %67, %68 : vector<8x128xf32>
    %70 = vector.extract_strided_slice %51 {offsets = [0, 256], sizes = [8, 128], strides = [1, 1]} : vector<8x384xf32> to vector<8x128xf32>
    %71 = vector.extract_strided_slice %53 {offsets = [0, 256], sizes = [8, 128], strides = [1, 1]} : vector<8x384xf32> to vector<8x128xf32>
    %72 = arith.addf %71, %12 : vector<8x128xf32>
    %73 = arith.mulf %61, %72 : vector<8x128xf32>
    %74 = arith.addf %70, %73 : vector<8x128xf32>
    %75 = math.tanh %74 : vector<8x128xf32>
    %76 = arith.subf %45, %75 : vector<8x128xf32>
    %77 = arith.mulf %69, %76 : vector<8x128xf32>
    %78 = arith.addf %75, %77 : vector<8x128xf32>
    %79 = arith.index_cast %49 : i32 to index
    %c0_28 = arith.constant 0 : index
    %80 = vector.load %arg18[%79, %c0_28] : memref<64x128xf32, #tpu.memory_space<vmem>>, vector<8x128xf32>
    tpu.vector_store %arg18[%79, %c0_28], %78 {strides = array<i32>} : memref<64x128xf32, #tpu.memory_space<vmem>>, vector<8x128xf32>,
    %c2_i32 = arith.constant 2 : i32
    %c8_i32_29 = arith.constant 8 : i32
    %81 = arith.muli %c2_i32, %c8_i32_29 : i32
    %82 = tpu.assume_multiple %81, 8 : i32
    %83 = arith.index_cast %82 : i32 to index
    %c0_30 = arith.constant 0 : index
    %84 = vector.load %arg17[%83, %c0_30] : memref<64x384xf32, #tpu.memory_space<vmem>>, vector<8x384xf32>
    %c0_31 = arith.constant 0 : index
    %c0_32 = arith.constant 0 : index
    %85 = vector.load %arg4[%c0_31, %c0_32] : memref<128x384xf32, #tpu.memory_space<vmem>>, vector<128x384xf32>
    %cst_33 = arith.constant dense<0.000000e+00> : vector<8x384xf32>
    %86 = tpu.matmul %78, %85, %cst_33 {dimension_numbers = #tpu.dot_dimension_numbers<[1], [0], [0], [1], [0, 0, 1, 1], [], []>} : vector<8x128xf32>, vector<128x384xf32>, vector<8x384xf32> -> vector<8x384xf32>
    %87 = vector.extract_strided_slice %84 {offsets = [0, 0], sizes = [8, 128], strides = [1, 1]} : vector<8x384xf32> to vector<8x128xf32>
    %88 = vector.extract_strided_slice %86 {offsets = [0, 0], sizes = [8, 128], strides = [1, 1]} : vector<8x384xf32> to vector<8x128xf32>
    %89 = arith.addf %87, %88 : vector<8x128xf32>
    %90 = arith.negf %89 : vector<8x128xf32>
    %91 = math.exp %90 : vector<8x128xf32>
    %cst_34 = arith.constant 1.000000e+00 : f32
    %92 = vector.broadcast %cst_34 : f32 to vector<8x128xf32>
    %93 = arith.addf %92, %91 : vector<8x128xf32>
    %94 = arith.divf %92, %93 : vector<8x128xf32>
    %95 = vector.extract_strided_slice %84 {offsets = [0, 128], sizes = [8, 128], strides = [1, 1]} : vector<8x384xf32> to vector<8x128xf32>
    %96 = vector.extract_strided_slice %86 {offsets = [0, 128], sizes = [8, 128], strides = [1, 1]} : vector<8x384xf32> to vector<8x128xf32>
    %97 = arith.addf %95, %96 : vector<8x128xf32>
    %98 = arith.negf %97 : vector<8x128xf32>
    %99 = math.exp %98 : vector<8x128xf32>
    %cst_35 = arith.constant 1.000000e+00 : f32
    %100 = vector.broadcast %cst_35 : f32 to vector<8x128xf32>
    %101 = arith.addf %100, %99 : vector<8x128xf32>
    %102 = arith.divf %100, %101 : vector<8x128xf32>
    %103 = vector.extract_strided_slice %84 {offsets = [0, 256], sizes = [8, 128], strides = [1, 1]} : vector<8x384xf32> to vector<8x128xf32>
    %104 = vector.extract_strided_slice %86 {offsets = [0, 256], sizes = [8, 128], strides = [1, 1]} : vector<8x384xf32> to vector<8x128xf32>
    %105 = arith.addf %104, %12 : vector<8x128xf32>
    %106 = arith.mulf %94, %105 : vector<8x128xf32>
    %107 = arith.addf %103, %106 : vector<8x128xf32>
    %108 = math.tanh %107 : vector<8x128xf32>
    %109 = arith.subf %78, %108 : vector<8x128xf32>
    %110 = arith.mulf %102, %109 : vector<8x128xf32>
    %111 = arith.addf %108, %110 : vector<8x128xf32>
    %112 = arith.index_cast %82 : i32 to index
    %c0_36 = arith.constant 0 : index
    %113 = vector.load %arg18[%112, %c0_36] : memref<64x128xf32, #tpu.memory_space<vmem>>, vector<8x128xf32>
    tpu.vector_store %arg18[%112, %c0_36], %111 {strides = array<i32>} : memref<64x128xf32, #tpu.memory_space<vmem>>, vector<8x128xf32>,
    %c3_i32 = arith.constant 3 : i32
    %c8_i32_37 = arith.constant 8 : i32
    %114 = arith.muli %c3_i32, %c8_i32_37 : i32
    %115 = tpu.assume_multiple %114, 8 : i32
    %116 = arith.index_cast %115 : i32 to index
    %c0_38 = arith.constant 0 : index
    %117 = vector.load %arg17[%116, %c0_38] : memref<64x384xf32, #tpu.memory_space<vmem>>, vector<8x384xf32>
    %c0_39 = arith.constant 0 : index
    %c0_40 = arith.constant 0 : index
    %118 = vector.load %arg4[%c0_39, %c0_40] : memref<128x384xf32, #tpu.memory_space<vmem>>, vector<128x384xf32>
    %cst_41 = arith.constant dense<0.000000e+00> : vector<8x384xf32>
    %119 = tpu.matmul %111, %118, %cst_41 {dimension_numbers = #tpu.dot_dimension_numbers<[1], [0], [0], [1], [0, 0, 1, 1], [], []>} : vector<8x128xf32>, vector<128x384xf32>, vector<8x384xf32> -> vector<8x384xf32>
    %120 = vector.extract_strided_slice %117 {offsets = [0, 0], sizes = [8, 128], strides = [1, 1]} : vector<8x384xf32> to vector<8x128xf32>
    %121 = vector.extract_strided_slice %119 {offsets = [0, 0], sizes = [8, 128], strides = [1, 1]} : vector<8x384xf32> to vector<8x128xf32>
    %122 = arith.addf %120, %121 : vector<8x128xf32>
    %123 = arith.negf %122 : vector<8x128xf32>
    %124 = math.exp %123 : vector<8x128xf32>
    %cst_42 = arith.constant 1.000000e+00 : f32
    %125 = vector.broadcast %cst_42 : f32 to vector<8x128xf32>
    %126 = arith.addf %125, %124 : vector<8x128xf32>
    %127 = arith.divf %125, %126 : vector<8x128xf32>
    %128 = vector.extract_strided_slice %117 {offsets = [0, 128], sizes = [8, 128], strides = [1, 1]} : vector<8x384xf32> to vector<8x128xf32>
    %129 = vector.extract_strided_slice %119 {offsets = [0, 128], sizes = [8, 128], strides = [1, 1]} : vector<8x384xf32> to vector<8x128xf32>
    %130 = arith.addf %128, %129 : vector<8x128xf32>
    %131 = arith.negf %130 : vector<8x128xf32>
    %132 = math.exp %131 : vector<8x128xf32>
    %cst_43 = arith.constant 1.000000e+00 : f32
    %133 = vector.broadcast %cst_43 : f32 to vector<8x128xf32>
    %134 = arith.addf %133, %132 : vector<8x128xf32>
    %135 = arith.divf %133, %134 : vector<8x128xf32>
    %136 = vector.extract_strided_slice %117 {offsets = [0, 256], sizes = [8, 128], strides = [1, 1]} : vector<8x384xf32> to vector<8x128xf32>
    %137 = vector.extract_strided_slice %119 {offsets = [0, 256], sizes = [8, 128], strides = [1, 1]} : vector<8x384xf32> to vector<8x128xf32>
    %138 = arith.addf %137, %12 : vector<8x128xf32>
    %139 = arith.mulf %127, %138 : vector<8x128xf32>
    %140 = arith.addf %136, %139 : vector<8x128xf32>
    %141 = math.tanh %140 : vector<8x128xf32>
    %142 = arith.subf %111, %141 : vector<8x128xf32>
    %143 = arith.mulf %135, %142 : vector<8x128xf32>
    %144 = arith.addf %141, %143 : vector<8x128xf32>
    %145 = arith.index_cast %115 : i32 to index
    %c0_44 = arith.constant 0 : index
    %146 = vector.load %arg18[%145, %c0_44] : memref<64x128xf32, #tpu.memory_space<vmem>>, vector<8x128xf32>
    tpu.vector_store %arg18[%145, %c0_44], %144 {strides = array<i32>} : memref<64x128xf32, #tpu.memory_space<vmem>>, vector<8x128xf32>,
    %c4_i32 = arith.constant 4 : i32
    %c8_i32_45 = arith.constant 8 : i32
    %147 = arith.muli %c4_i32, %c8_i32_45 : i32
    %148 = tpu.assume_multiple %147, 8 : i32
    %149 = arith.index_cast %148 : i32 to index
    %c0_46 = arith.constant 0 : index
    %150 = vector.load %arg17[%149, %c0_46] : memref<64x384xf32, #tpu.memory_space<vmem>>, vector<8x384xf32>
    %c0_47 = arith.constant 0 : index
    %c0_48 = arith.constant 0 : index
    %151 = vector.load %arg4[%c0_47, %c0_48] : memref<128x384xf32, #tpu.memory_space<vmem>>, vector<128x384xf32>
    %cst_49 = arith.constant dense<0.000000e+00> : vector<8x384xf32>
    %152 = tpu.matmul %144, %151, %cst_49 {dimension_numbers = #tpu.dot_dimension_numbers<[1], [0], [0], [1], [0, 0, 1, 1], [], []>} : vector<8x128xf32>, vector<128x384xf32>, vector<8x384xf32> -> vector<8x384xf32>
    %153 = vector.extract_strided_slice %150 {offsets = [0, 0], sizes = [8, 128], strides = [1, 1]} : vector<8x384xf32> to vector<8x128xf32>
    %154 = vector.extract_strided_slice %152 {offsets = [0, 0], sizes = [8, 128], strides = [1, 1]} : vector<8x384xf32> to vector<8x128xf32>
    %155 = arith.addf %153, %154 : vector<8x128xf32>
    %156 = arith.negf %155 : vector<8x128xf32>
    %157 = math.exp %156 : vector<8x128xf32>
    %cst_50 = arith.constant 1.000000e+00 : f32
    %158 = vector.broadcast %cst_50 : f32 to vector<8x128xf32>
    %159 = arith.addf %158, %157 : vector<8x128xf32>
    %160 = arith.divf %158, %159 : vector<8x128xf32>
    %161 = vector.extract_strided_slice %150 {offsets = [0, 128], sizes = [8, 128], strides = [1, 1]} : vector<8x384xf32> to vector<8x128xf32>
    %162 = vector.extract_strided_slice %152 {offsets = [0, 128], sizes = [8, 128], strides = [1, 1]} : vector<8x384xf32> to vector<8x128xf32>
    %163 = arith.addf %161, %162 : vector<8x128xf32>
    %164 = arith.negf %163 : vector<8x128xf32>
    %165 = math.exp %164 : vector<8x128xf32>
    %cst_51 = arith.constant 1.000000e+00 : f32
    %166 = vector.broadcast %cst_51 : f32 to vector<8x128xf32>
    %167 = arith.addf %166, %165 : vector<8x128xf32>
    %168 = arith.divf %166, %167 : vector<8x128xf32>
    %169 = vector.extract_strided_slice %150 {offsets = [0, 256], sizes = [8, 128], strides = [1, 1]} : vector<8x384xf32> to vector<8x128xf32>
    %170 = vector.extract_strided_slice %152 {offsets = [0, 256], sizes = [8, 128], strides = [1, 1]} : vector<8x384xf32> to vector<8x128xf32>
    %171 = arith.addf %170, %12 : vector<8x128xf32>
    %172 = arith.mulf %160, %171 : vector<8x128xf32>
    %173 = arith.addf %169, %172 : vector<8x128xf32>
    %174 = math.tanh %173 : vector<8x128xf32>
    %175 = arith.subf %144, %174 : vector<8x128xf32>
    %176 = arith.mulf %168, %175 : vector<8x128xf32>
    %177 = arith.addf %174, %176 : vector<8x128xf32>
    %178 = arith.index_cast %148 : i32 to index
    %c0_52 = arith.constant 0 : index
    %179 = vector.load %arg18[%178, %c0_52] : memref<64x128xf32, #tpu.memory_space<vmem>>, vector<8x128xf32>
    tpu.vector_store %arg18[%178, %c0_52], %177 {strides = array<i32>} : memref<64x128xf32, #tpu.memory_space<vmem>>, vector<8x128xf32>,
    %c5_i32 = arith.constant 5 : i32
    %c8_i32_53 = arith.constant 8 : i32
    %180 = arith.muli %c5_i32, %c8_i32_53 : i32
    %181 = tpu.assume_multiple %180, 8 : i32
    %182 = arith.index_cast %181 : i32 to index
    %c0_54 = arith.constant 0 : index
    %183 = vector.load %arg17[%182, %c0_54] : memref<64x384xf32, #tpu.memory_space<vmem>>, vector<8x384xf32>
    %c0_55 = arith.constant 0 : index
    %c0_56 = arith.constant 0 : index
    %184 = vector.load %arg4[%c0_55, %c0_56] : memref<128x384xf32, #tpu.memory_space<vmem>>, vector<128x384xf32>
    %cst_57 = arith.constant dense<0.000000e+00> : vector<8x384xf32>
    %185 = tpu.matmul %177, %184, %cst_57 {dimension_numbers = #tpu.dot_dimension_numbers<[1], [0], [0], [1], [0, 0, 1, 1], [], []>} : vector<8x128xf32>, vector<128x384xf32>, vector<8x384xf32> -> vector<8x384xf32>
    %186 = vector.extract_strided_slice %183 {offsets = [0, 0], sizes = [8, 128], strides = [1, 1]} : vector<8x384xf32> to vector<8x128xf32>
    %187 = vector.extract_strided_slice %185 {offsets = [0, 0], sizes = [8, 128], strides = [1, 1]} : vector<8x384xf32> to vector<8x128xf32>
    %188 = arith.addf %186, %187 : vector<8x128xf32>
    %189 = arith.negf %188 : vector<8x128xf32>
    %190 = math.exp %189 : vector<8x128xf32>
    %cst_58 = arith.constant 1.000000e+00 : f32
    %191 = vector.broadcast %cst_58 : f32 to vector<8x128xf32>
    %192 = arith.addf %191, %190 : vector<8x128xf32>
    %193 = arith.divf %191, %192 : vector<8x128xf32>
    %194 = vector.extract_strided_slice %183 {offsets = [0, 128], sizes = [8, 128], strides = [1, 1]} : vector<8x384xf32> to vector<8x128xf32>
    %195 = vector.extract_strided_slice %185 {offsets = [0, 128], sizes = [8, 128], strides = [1, 1]} : vector<8x384xf32> to vector<8x128xf32>
    %196 = arith.addf %194, %195 : vector<8x128xf32>
    %197 = arith.negf %196 : vector<8x128xf32>
    %198 = math.exp %197 : vector<8x128xf32>
    %cst_59 = arith.constant 1.000000e+00 : f32
    %199 = vector.broadcast %cst_59 : f32 to vector<8x128xf32>
    %200 = arith.addf %199, %198 : vector<8x128xf32>
    %201 = arith.divf %199, %200 : vector<8x128xf32>
    %202 = vector.extract_strided_slice %183 {offsets = [0, 256], sizes = [8, 128], strides = [1, 1]} : vector<8x384xf32> to vector<8x128xf32>
    %203 = vector.extract_strided_slice %185 {offsets = [0, 256], sizes = [8, 128], strides = [1, 1]} : vector<8x384xf32> to vector<8x128xf32>
    %204 = arith.addf %203, %12 : vector<8x128xf32>
    %205 = arith.mulf %193, %204 : vector<8x128xf32>
    %206 = arith.addf %202, %205 : vector<8x128xf32>
    %207 = math.tanh %206 : vector<8x128xf32>
    %208 = arith.subf %177, %207 : vector<8x128xf32>
    %209 = arith.mulf %201, %208 : vector<8x128xf32>
    %210 = arith.addf %207, %209 : vector<8x128xf32>
    %211 = arith.index_cast %181 : i32 to index
    %c0_60 = arith.constant 0 : index
    %212 = vector.load %arg18[%211, %c0_60] : memref<64x128xf32, #tpu.memory_space<vmem>>, vector<8x128xf32>
    tpu.vector_store %arg18[%211, %c0_60], %210 {strides = array<i32>} : memref<64x128xf32, #tpu.memory_space<vmem>>, vector<8x128xf32>,
    %c6_i32 = arith.constant 6 : i32
    %c8_i32_61 = arith.constant 8 : i32
    %213 = arith.muli %c6_i32, %c8_i32_61 : i32
    %214 = tpu.assume_multiple %213, 8 : i32
    %215 = arith.index_cast %214 : i32 to index
    %c0_62 = arith.constant 0 : index
    %216 = vector.load %arg17[%215, %c0_62] : memref<64x384xf32, #tpu.memory_space<vmem>>, vector<8x384xf32>
    %c0_63 = arith.constant 0 : index
    %c0_64 = arith.constant 0 : index
    %217 = vector.load %arg4[%c0_63, %c0_64] : memref<128x384xf32, #tpu.memory_space<vmem>>, vector<128x384xf32>
    %cst_65 = arith.constant dense<0.000000e+00> : vector<8x384xf32>
    %218 = tpu.matmul %210, %217, %cst_65 {dimension_numbers = #tpu.dot_dimension_numbers<[1], [0], [0], [1], [0, 0, 1, 1], [], []>} : vector<8x128xf32>, vector<128x384xf32>, vector<8x384xf32> -> vector<8x384xf32>
    %219 = vector.extract_strided_slice %216 {offsets = [0, 0], sizes = [8, 128], strides = [1, 1]} : vector<8x384xf32> to vector<8x128xf32>
    %220 = vector.extract_strided_slice %218 {offsets = [0, 0], sizes = [8, 128], strides = [1, 1]} : vector<8x384xf32> to vector<8x128xf32>
    %221 = arith.addf %219, %220 : vector<8x128xf32>
    %222 = arith.negf %221 : vector<8x128xf32>
    %223 = math.exp %222 : vector<8x128xf32>
    %cst_66 = arith.constant 1.000000e+00 : f32
    %224 = vector.broadcast %cst_66 : f32 to vector<8x128xf32>
    %225 = arith.addf %224, %223 : vector<8x128xf32>
    %226 = arith.divf %224, %225 : vector<8x128xf32>
    %227 = vector.extract_strided_slice %216 {offsets = [0, 128], sizes = [8, 128], strides = [1, 1]} : vector<8x384xf32> to vector<8x128xf32>
    %228 = vector.extract_strided_slice %218 {offsets = [0, 128], sizes = [8, 128], strides = [1, 1]} : vector<8x384xf32> to vector<8x128xf32>
    %229 = arith.addf %227, %228 : vector<8x128xf32>
    %230 = arith.negf %229 : vector<8x128xf32>
    %231 = math.exp %230 : vector<8x128xf32>
    %cst_67 = arith.constant 1.000000e+00 : f32
    %232 = vector.broadcast %cst_67 : f32 to vector<8x128xf32>
    %233 = arith.addf %232, %231 : vector<8x128xf32>
    %234 = arith.divf %232, %233 : vector<8x128xf32>
    %235 = vector.extract_strided_slice %216 {offsets = [0, 256], sizes = [8, 128], strides = [1, 1]} : vector<8x384xf32> to vector<8x128xf32>
    %236 = vector.extract_strided_slice %218 {offsets = [0, 256], sizes = [8, 128], strides = [1, 1]} : vector<8x384xf32> to vector<8x128xf32>
    %237 = arith.addf %236, %12 : vector<8x128xf32>
    %238 = arith.mulf %226, %237 : vector<8x128xf32>
    %239 = arith.addf %235, %238 : vector<8x128xf32>
    %240 = math.tanh %239 : vector<8x128xf32>
    %241 = arith.subf %210, %240 : vector<8x128xf32>
    %242 = arith.mulf %234, %241 : vector<8x128xf32>
    %243 = arith.addf %240, %242 : vector<8x128xf32>
    %244 = arith.index_cast %214 : i32 to index
    %c0_68 = arith.constant 0 : index
    %245 = vector.load %arg18[%244, %c0_68] : memref<64x128xf32, #tpu.memory_space<vmem>>, vector<8x128xf32>
    tpu.vector_store %arg18[%244, %c0_68], %243 {strides = array<i32>} : memref<64x128xf32, #tpu.memory_space<vmem>>, vector<8x128xf32>,
    %c7_i32 = arith.constant 7 : i32
    %c8_i32_69 = arith.constant 8 : i32
    %246 = arith.muli %c7_i32, %c8_i32_69 : i32
    %247 = tpu.assume_multiple %246, 8 : i32
    %248 = arith.index_cast %247 : i32 to index
    %c0_70 = arith.constant 0 : index
    %249 = vector.load %arg17[%248, %c0_70] : memref<64x384xf32, #tpu.memory_space<vmem>>, vector<8x384xf32>
    %c0_71 = arith.constant 0 : index
    %c0_72 = arith.constant 0 : index
    %250 = vector.load %arg4[%c0_71, %c0_72] : memref<128x384xf32, #tpu.memory_space<vmem>>, vector<128x384xf32>
    %cst_73 = arith.constant dense<0.000000e+00> : vector<8x384xf32>
    %251 = tpu.matmul %243, %250, %cst_73 {dimension_numbers = #tpu.dot_dimension_numbers<[1], [0], [0], [1], [0, 0, 1, 1], [], []>} : vector<8x128xf32>, vector<128x384xf32>, vector<8x384xf32> -> vector<8x384xf32>
    %252 = vector.extract_strided_slice %249 {offsets = [0, 0], sizes = [8, 128], strides = [1, 1]} : vector<8x384xf32> to vector<8x128xf32>
    %253 = vector.extract_strided_slice %251 {offsets = [0, 0], sizes = [8, 128], strides = [1, 1]} : vector<8x384xf32> to vector<8x128xf32>
    %254 = arith.addf %252, %253 : vector<8x128xf32>
    %255 = arith.negf %254 : vector<8x128xf32>
    %256 = math.exp %255 : vector<8x128xf32>
    %cst_74 = arith.constant 1.000000e+00 : f32
    %257 = vector.broadcast %cst_74 : f32 to vector<8x128xf32>
    %258 = arith.addf %257, %256 : vector<8x128xf32>
    %259 = arith.divf %257, %258 : vector<8x128xf32>
    %260 = vector.extract_strided_slice %249 {offsets = [0, 128], sizes = [8, 128], strides = [1, 1]} : vector<8x384xf32> to vector<8x128xf32>
    %261 = vector.extract_strided_slice %251 {offsets = [0, 128], sizes = [8, 128], strides = [1, 1]} : vector<8x384xf32> to vector<8x128xf32>
    %262 = arith.addf %260, %261 : vector<8x128xf32>
    %263 = arith.negf %262 : vector<8x128xf32>
    %264 = math.exp %263 : vector<8x128xf32>
    %cst_75 = arith.constant 1.000000e+00 : f32
    %265 = vector.broadcast %cst_75 : f32 to vector<8x128xf32>
    %266 = arith.addf %265, %264 : vector<8x128xf32>
    %267 = arith.divf %265, %266 : vector<8x128xf32>
    %268 = vector.extract_strided_slice %249 {offsets = [0, 256], sizes = [8, 128], strides = [1, 1]} : vector<8x384xf32> to vector<8x128xf32>
    %269 = vector.extract_strided_slice %251 {offsets = [0, 256], sizes = [8, 128], strides = [1, 1]} : vector<8x384xf32> to vector<8x128xf32>
    %270 = arith.addf %269, %12 : vector<8x128xf32>
    %271 = arith.mulf %259, %270 : vector<8x128xf32>
    %272 = arith.addf %268, %271 : vector<8x128xf32>
    %273 = math.tanh %272 : vector<8x128xf32>
    %274 = arith.subf %243, %273 : vector<8x128xf32>
    %275 = arith.mulf %267, %274 : vector<8x128xf32>
    %276 = arith.addf %273, %275 : vector<8x128xf32>
    %277 = arith.index_cast %247 : i32 to index
    %c0_76 = arith.constant 0 : index
    %278 = vector.load %arg18[%277, %c0_76] : memref<64x128xf32, #tpu.memory_space<vmem>>, vector<8x128xf32>
    tpu.vector_store %arg18[%277, %c0_76], %276 {strides = array<i32>} : memref<64x128xf32, #tpu.memory_space<vmem>>, vector<8x128xf32>,
    %c8_i32_77 = arith.constant 8 : i32
    %c0_78 = arith.constant 0 : index
    %c0_79 = arith.constant 0 : index
    %c0_80 = arith.constant 0 : index
    %279 = vector.load %arg16[%c0_78, %c0_79, %c0_80] : memref<2x8x128xf32, #tpu.memory_space<vmem>>, vector<1x8x128xf32>
    %280 = vector.shape_cast %279 : vector<1x8x128xf32> to vector<8x128xf32>
    %281 = vector.shape_cast %276 : vector<8x128xf32> to vector<1x8x128xf32>
    tpu.vector_store %arg16[%c0_78, %c0_79, %c0_80], %281 {strides = array<i32>} : memref<2x8x128xf32, #tpu.memory_space<vmem>>, vector<1x8x128xf32>,
    %c0_81 = arith.constant 0 : index
    %c0_82 = arith.constant 0 : index
    %282 = vector.load %arg18[%c0_81, %c0_82] : memref<64x128xf32, #tpu.memory_space<vmem>>, vector<64x128xf32>
    %c0_83 = arith.constant 0 : index
    %c0_84 = arith.constant 0 : index
    %283 = vector.load %arg7[%c0_83, %c0_84] : memref<128x384xf32, #tpu.memory_space<vmem>>, vector<128x384xf32>
    %cst_85 = arith.constant dense<0.000000e+00> : vector<64x384xf32>
    %284 = tpu.matmul %282, %283, %cst_85 {dimension_numbers = #tpu.dot_dimension_numbers<[1], [0], [0], [1], [0, 0, 1, 1], [], []>} : vector<64x128xf32>, vector<128x384xf32>, vector<64x384xf32> -> vector<64x384xf32>
    %c0_86 = arith.constant 0 : index
    %c0_87 = arith.constant 0 : index
    %285 = vector.load %arg9[%c0_86, %c0_87] : memref<1x384xf32, #tpu.memory_space<vmem>>, vector<1x384xf32>
    %286 = vector.broadcast %285 : vector<1x384xf32> to vector<64x384xf32>
    %287 = arith.addf %284, %286 : vector<64x384xf32>
    %c0_88 = arith.constant 0 : index
    %c0_89 = arith.constant 0 : index
    %288 = vector.load %arg17[%c0_88, %c0_89] : memref<64x384xf32, #tpu.memory_space<vmem>>, vector<64x384xf32>
    tpu.vector_store %arg17[%c0_88, %c0_89], %287 {strides = array<i32>} : memref<64x384xf32, #tpu.memory_space<vmem>>, vector<64x384xf32>,
    %c0_90 = arith.constant 0 : index
    %c0_91 = arith.constant 0 : index
    %289 = vector.load %arg10[%c0_90, %c0_91] : memref<1x128xf32, #tpu.memory_space<vmem>>, vector<1x128xf32>
    %290 = vector.shape_cast %289 : vector<1x128xf32> to vector<1x128xf32>
    %291 = vector.broadcast %290 : vector<1x128xf32> to vector<8x128xf32>
    %c1 = arith.constant 1 : index
    %c0_92 = arith.constant 0 : index
    %c0_93 = arith.constant 0 : index
    %292 = vector.load %arg16[%c1, %c0_92, %c0_93] : memref<2x8x128xf32, #tpu.memory_space<vmem>>, vector<1x8x128xf32>
    %293 = vector.shape_cast %292 : vector<1x8x128xf32> to vector<8x128xf32>
    %c0_i32_94 = arith.constant 0 : i32
    %c8_i32_95 = arith.constant 8 : i32
    %294 = arith.muli %c0_i32_94, %c8_i32_95 : i32
    %295 = tpu.assume_multiple %294, 8 : i32
    %296 = arith.index_cast %295 : i32 to index
    %c0_96 = arith.constant 0 : index
    %297 = vector.load %arg17[%296, %c0_96] : memref<64x384xf32, #tpu.memory_space<vmem>>, vector<8x384xf32>
    %c0_97 = arith.constant 0 : index
    %c0_98 = arith.constant 0 : index
    %298 = vector.load %arg8[%c0_97, %c0_98] : memref<128x384xf32, #tpu.memory_space<vmem>>, vector<128x384xf32>
    %cst_99 = arith.constant dense<0.000000e+00> : vector<8x384xf32>
    %299 = tpu.matmul %293, %298, %cst_99 {dimension_numbers = #tpu.dot_dimension_numbers<[1], [0], [0], [1], [0, 0, 1, 1], [], []>} : vector<8x128xf32>, vector<128x384xf32>, vector<8x384xf32> -> vector<8x384xf32>
    %300 = vector.extract_strided_slice %297 {offsets = [0, 0], sizes = [8, 128], strides = [1, 1]} : vector<8x384xf32> to vector<8x128xf32>
    %301 = vector.extract_strided_slice %299 {offsets = [0, 0], sizes = [8, 128], strides = [1, 1]} : vector<8x384xf32> to vector<8x128xf32>
    %302 = arith.addf %300, %301 : vector<8x128xf32>
    %303 = arith.negf %302 : vector<8x128xf32>
    %304 = math.exp %303 : vector<8x128xf32>
    %cst_100 = arith.constant 1.000000e+00 : f32
    %305 = vector.broadcast %cst_100 : f32 to vector<8x128xf32>
    %306 = arith.addf %305, %304 : vector<8x128xf32>
    %307 = arith.divf %305, %306 : vector<8x128xf32>
    %308 = vector.extract_strided_slice %297 {offsets = [0, 128], sizes = [8, 128], strides = [1, 1]} : vector<8x384xf32> to vector<8x128xf32>
    %309 = vector.extract_strided_slice %299 {offsets = [0, 128], sizes = [8, 128], strides = [1, 1]} : vector<8x384xf32> to vector<8x128xf32>
    %310 = arith.addf %308, %309 : vector<8x128xf32>
    %311 = arith.negf %310 : vector<8x128xf32>
    %312 = math.exp %311 : vector<8x128xf32>
    %cst_101 = arith.constant 1.000000e+00 : f32
    %313 = vector.broadcast %cst_101 : f32 to vector<8x128xf32>
    %314 = arith.addf %313, %312 : vector<8x128xf32>
    %315 = arith.divf %313, %314 : vector<8x128xf32>
    %316 = vector.extract_strided_slice %297 {offsets = [0, 256], sizes = [8, 128], strides = [1, 1]} : vector<8x384xf32> to vector<8x128xf32>
    %317 = vector.extract_strided_slice %299 {offsets = [0, 256], sizes = [8, 128], strides = [1, 1]} : vector<8x384xf32> to vector<8x128xf32>
    %318 = arith.addf %317, %291 : vector<8x128xf32>
    %319 = arith.mulf %307, %318 : vector<8x128xf32>
    %320 = arith.addf %316, %319 : vector<8x128xf32>
    %321 = math.tanh %320 : vector<8x128xf32>
    %322 = arith.subf %293, %321 : vector<8x128xf32>
    %323 = arith.mulf %315, %322 : vector<8x128xf32>
    %324 = arith.addf %321, %323 : vector<8x128xf32>
    %c1_i32_102 = arith.constant 1 : i32
    %c8_i32_103 = arith.constant 8 : i32
    %325 = arith.muli %c1_i32_102, %c8_i32_103 : i32
    %326 = tpu.assume_multiple %325, 8 : i32
    %327 = arith.index_cast %326 : i32 to index
    %c0_104 = arith.constant 0 : index
    %328 = vector.load %arg17[%327, %c0_104] : memref<64x384xf32, #tpu.memory_space<vmem>>, vector<8x384xf32>
    %c0_105 = arith.constant 0 : index
    %c0_106 = arith.constant 0 : index
    %329 = vector.load %arg8[%c0_105, %c0_106] : memref<128x384xf32, #tpu.memory_space<vmem>>, vector<128x384xf32>
    %cst_107 = arith.constant dense<0.000000e+00> : vector<8x384xf32>
    %330 = tpu.matmul %324, %329, %cst_107 {dimension_numbers = #tpu.dot_dimension_numbers<[1], [0], [0], [1], [0, 0, 1, 1], [], []>} : vector<8x128xf32>, vector<128x384xf32>, vector<8x384xf32> -> vector<8x384xf32>
    %331 = vector.extract_strided_slice %328 {offsets = [0, 0], sizes = [8, 128], strides = [1, 1]} : vector<8x384xf32> to vector<8x128xf32>
    %332 = vector.extract_strided_slice %330 {offsets = [0, 0], sizes = [8, 128], strides = [1, 1]} : vector<8x384xf32> to vector<8x128xf32>
    %333 = arith.addf %331, %332 : vector<8x128xf32>
    %334 = arith.negf %333 : vector<8x128xf32>
    %335 = math.exp %334 : vector<8x128xf32>
    %cst_108 = arith.constant 1.000000e+00 : f32
    %336 = vector.broadcast %cst_108 : f32 to vector<8x128xf32>
    %337 = arith.addf %336, %335 : vector<8x128xf32>
    %338 = arith.divf %336, %337 : vector<8x128xf32>
    %339 = vector.extract_strided_slice %328 {offsets = [0, 128], sizes = [8, 128], strides = [1, 1]} : vector<8x384xf32> to vector<8x128xf32>
    %340 = vector.extract_strided_slice %330 {offsets = [0, 128], sizes = [8, 128], strides = [1, 1]} : vector<8x384xf32> to vector<8x128xf32>
    %341 = arith.addf %339, %340 : vector<8x128xf32>
    %342 = arith.negf %341 : vector<8x128xf32>
    %343 = math.exp %342 : vector<8x128xf32>
    %cst_109 = arith.constant 1.000000e+00 : f32
    %344 = vector.broadcast %cst_109 : f32 to vector<8x128xf32>
    %345 = arith.addf %344, %343 : vector<8x128xf32>
    %346 = arith.divf %344, %345 : vector<8x128xf32>
    %347 = vector.extract_strided_slice %328 {offsets = [0, 256], sizes = [8, 128], strides = [1, 1]} : vector<8x384xf32> to vector<8x128xf32>
    %348 = vector.extract_strided_slice %330 {offsets = [0, 256], sizes = [8, 128], strides = [1, 1]} : vector<8x384xf32> to vector<8x128xf32>
    %349 = arith.addf %348, %291 : vector<8x128xf32>
    %350 = arith.mulf %338, %349 : vector<8x128xf32>
    %351 = arith.addf %347, %350 : vector<8x128xf32>
    %352 = math.tanh %351 : vector<8x128xf32>
    %353 = arith.subf %324, %352 : vector<8x128xf32>
    %354 = arith.mulf %346, %353 : vector<8x128xf32>
    %355 = arith.addf %352, %354 : vector<8x128xf32>
    %c2_i32_110 = arith.constant 2 : i32
    %c8_i32_111 = arith.constant 8 : i32
    %356 = arith.muli %c2_i32_110, %c8_i32_111 : i32
    %357 = tpu.assume_multiple %356, 8 : i32
    %358 = arith.index_cast %357 : i32 to index
    %c0_112 = arith.constant 0 : index
    %359 = vector.load %arg17[%358, %c0_112] : memref<64x384xf32, #tpu.memory_space<vmem>>, vector<8x384xf32>
    %c0_113 = arith.constant 0 : index
    %c0_114 = arith.constant 0 : index
    %360 = vector.load %arg8[%c0_113, %c0_114] : memref<128x384xf32, #tpu.memory_space<vmem>>, vector<128x384xf32>
    %cst_115 = arith.constant dense<0.000000e+00> : vector<8x384xf32>
    %361 = tpu.matmul %355, %360, %cst_115 {dimension_numbers = #tpu.dot_dimension_numbers<[1], [0], [0], [1], [0, 0, 1, 1], [], []>} : vector<8x128xf32>, vector<128x384xf32>, vector<8x384xf32> -> vector<8x384xf32>
    %362 = vector.extract_strided_slice %359 {offsets = [0, 0], sizes = [8, 128], strides = [1, 1]} : vector<8x384xf32> to vector<8x128xf32>
    %363 = vector.extract_strided_slice %361 {offsets = [0, 0], sizes = [8, 128], strides = [1, 1]} : vector<8x384xf32> to vector<8x128xf32>
    %364 = arith.addf %362, %363 : vector<8x128xf32>
    %365 = arith.negf %364 : vector<8x128xf32>
    %366 = math.exp %365 : vector<8x128xf32>
    %cst_116 = arith.constant 1.000000e+00 : f32
    %367 = vector.broadcast %cst_116 : f32 to vector<8x128xf32>
    %368 = arith.addf %367, %366 : vector<8x128xf32>
    %369 = arith.divf %367, %368 : vector<8x128xf32>
    %370 = vector.extract_strided_slice %359 {offsets = [0, 128], sizes = [8, 128], strides = [1, 1]} : vector<8x384xf32> to vector<8x128xf32>
    %371 = vector.extract_strided_slice %361 {offsets = [0, 128], sizes = [8, 128], strides = [1, 1]} : vector<8x384xf32> to vector<8x128xf32>
    %372 = arith.addf %370, %371 : vector<8x128xf32>
    %373 = arith.negf %372 : vector<8x128xf32>
    %374 = math.exp %373 : vector<8x128xf32>
    %cst_117 = arith.constant 1.000000e+00 : f32
    %375 = vector.broadcast %cst_117 : f32 to vector<8x128xf32>
    %376 = arith.addf %375, %374 : vector<8x128xf32>
    %377 = arith.divf %375, %376 : vector<8x128xf32>
    %378 = vector.extract_strided_slice %359 {offsets = [0, 256], sizes = [8, 128], strides = [1, 1]} : vector<8x384xf32> to vector<8x128xf32>
    %379 = vector.extract_strided_slice %361 {offsets = [0, 256], sizes = [8, 128], strides = [1, 1]} : vector<8x384xf32> to vector<8x128xf32>
    %380 = arith.addf %379, %291 : vector<8x128xf32>
    %381 = arith.mulf %369, %380 : vector<8x128xf32>
    %382 = arith.addf %378, %381 : vector<8x128xf32>
    %383 = math.tanh %382 : vector<8x128xf32>
    %384 = arith.subf %355, %383 : vector<8x128xf32>
    %385 = arith.mulf %377, %384 : vector<8x128xf32>
    %386 = arith.addf %383, %385 : vector<8x128xf32>
    %c3_i32_118 = arith.constant 3 : i32
    %c8_i32_119 = arith.constant 8 : i32
    %387 = arith.muli %c3_i32_118, %c8_i32_119 : i32
    %388 = tpu.assume_multiple %387, 8 : i32
    %389 = arith.index_cast %388 : i32 to index
    %c0_120 = arith.constant 0 : index
    %390 = vector.load %arg17[%389, %c0_120] : memref<64x384xf32, #tpu.memory_space<vmem>>, vector<8x384xf32>
    %c0_121 = arith.constant 0 : index
    %c0_122 = arith.constant 0 : index
    %391 = vector.load %arg8[%c0_121, %c0_122] : memref<128x384xf32, #tpu.memory_space<vmem>>, vector<128x384xf32>
    %cst_123 = arith.constant dense<0.000000e+00> : vector<8x384xf32>
    %392 = tpu.matmul %386, %391, %cst_123 {dimension_numbers = #tpu.dot_dimension_numbers<[1], [0], [0], [1], [0, 0, 1, 1], [], []>} : vector<8x128xf32>, vector<128x384xf32>, vector<8x384xf32> -> vector<8x384xf32>
    %393 = vector.extract_strided_slice %390 {offsets = [0, 0], sizes = [8, 128], strides = [1, 1]} : vector<8x384xf32> to vector<8x128xf32>
    %394 = vector.extract_strided_slice %392 {offsets = [0, 0], sizes = [8, 128], strides = [1, 1]} : vector<8x384xf32> to vector<8x128xf32>
    %395 = arith.addf %393, %394 : vector<8x128xf32>
    %396 = arith.negf %395 : vector<8x128xf32>
    %397 = math.exp %396 : vector<8x128xf32>
    %cst_124 = arith.constant 1.000000e+00 : f32
    %398 = vector.broadcast %cst_124 : f32 to vector<8x128xf32>
    %399 = arith.addf %398, %397 : vector<8x128xf32>
    %400 = arith.divf %398, %399 : vector<8x128xf32>
    %401 = vector.extract_strided_slice %390 {offsets = [0, 128], sizes = [8, 128], strides = [1, 1]} : vector<8x384xf32> to vector<8x128xf32>
    %402 = vector.extract_strided_slice %392 {offsets = [0, 128], sizes = [8, 128], strides = [1, 1]} : vector<8x384xf32> to vector<8x128xf32>
    %403 = arith.addf %401, %402 : vector<8x128xf32>
    %404 = arith.negf %403 : vector<8x128xf32>
    %405 = math.exp %404 : vector<8x128xf32>
    %cst_125 = arith.constant 1.000000e+00 : f32
    %406 = vector.broadcast %cst_125 : f32 to vector<8x128xf32>
    %407 = arith.addf %406, %405 : vector<8x128xf32>
    %408 = arith.divf %406, %407 : vector<8x128xf32>
    %409 = vector.extract_strided_slice %390 {offsets = [0, 256], sizes = [8, 128], strides = [1, 1]} : vector<8x384xf32> to vector<8x128xf32>
    %410 = vector.extract_strided_slice %392 {offsets = [0, 256], sizes = [8, 128], strides = [1, 1]} : vector<8x384xf32> to vector<8x128xf32>
    %411 = arith.addf %410, %291 : vector<8x128xf32>
    %412 = arith.mulf %400, %411 : vector<8x128xf32>
    %413 = arith.addf %409, %412 : vector<8x128xf32>
    %414 = math.tanh %413 : vector<8x128xf32>
    %415 = arith.subf %386, %414 : vector<8x128xf32>
    %416 = arith.mulf %408, %415 : vector<8x128xf32>
    %417 = arith.addf %414, %416 : vector<8x128xf32>
    %c4_i32_126 = arith.constant 4 : i32
    %c8_i32_127 = arith.constant 8 : i32
    %418 = arith.muli %c4_i32_126, %c8_i32_127 : i32
    %419 = tpu.assume_multiple %418, 8 : i32
    %420 = arith.index_cast %419 : i32 to index
    %c0_128 = arith.constant 0 : index
    %421 = vector.load %arg17[%420, %c0_128] : memref<64x384xf32, #tpu.memory_space<vmem>>, vector<8x384xf32>
    %c0_129 = arith.constant 0 : index
    %c0_130 = arith.constant 0 : index
    %422 = vector.load %arg8[%c0_129, %c0_130] : memref<128x384xf32, #tpu.memory_space<vmem>>, vector<128x384xf32>
    %cst_131 = arith.constant dense<0.000000e+00> : vector<8x384xf32>
    %423 = tpu.matmul %417, %422, %cst_131 {dimension_numbers = #tpu.dot_dimension_numbers<[1], [0], [0], [1], [0, 0, 1, 1], [], []>} : vector<8x128xf32>, vector<128x384xf32>, vector<8x384xf32> -> vector<8x384xf32>
    %424 = vector.extract_strided_slice %421 {offsets = [0, 0], sizes = [8, 128], strides = [1, 1]} : vector<8x384xf32> to vector<8x128xf32>
    %425 = vector.extract_strided_slice %423 {offsets = [0, 0], sizes = [8, 128], strides = [1, 1]} : vector<8x384xf32> to vector<8x128xf32>
    %426 = arith.addf %424, %425 : vector<8x128xf32>
    %427 = arith.negf %426 : vector<8x128xf32>
    %428 = math.exp %427 : vector<8x128xf32>
    %cst_132 = arith.constant 1.000000e+00 : f32
    %429 = vector.broadcast %cst_132 : f32 to vector<8x128xf32>
    %430 = arith.addf %429, %428 : vector<8x128xf32>
    %431 = arith.divf %429, %430 : vector<8x128xf32>
    %432 = vector.extract_strided_slice %421 {offsets = [0, 128], sizes = [8, 128], strides = [1, 1]} : vector<8x384xf32> to vector<8x128xf32>
    %433 = vector.extract_strided_slice %423 {offsets = [0, 128], sizes = [8, 128], strides = [1, 1]} : vector<8x384xf32> to vector<8x128xf32>
    %434 = arith.addf %432, %433 : vector<8x128xf32>
    %435 = arith.negf %434 : vector<8x128xf32>
    %436 = math.exp %435 : vector<8x128xf32>
    %cst_133 = arith.constant 1.000000e+00 : f32
    %437 = vector.broadcast %cst_133 : f32 to vector<8x128xf32>
    %438 = arith.addf %437, %436 : vector<8x128xf32>
    %439 = arith.divf %437, %438 : vector<8x128xf32>
    %440 = vector.extract_strided_slice %421 {offsets = [0, 256], sizes = [8, 128], strides = [1, 1]} : vector<8x384xf32> to vector<8x128xf32>
    %441 = vector.extract_strided_slice %423 {offsets = [0, 256], sizes = [8, 128], strides = [1, 1]} : vector<8x384xf32> to vector<8x128xf32>
    %442 = arith.addf %441, %291 : vector<8x128xf32>
    %443 = arith.mulf %431, %442 : vector<8x128xf32>
    %444 = arith.addf %440, %443 : vector<8x128xf32>
    %445 = math.tanh %444 : vector<8x128xf32>
    %446 = arith.subf %417, %445 : vector<8x128xf32>
    %447 = arith.mulf %439, %446 : vector<8x128xf32>
    %448 = arith.addf %445, %447 : vector<8x128xf32>
    %c5_i32_134 = arith.constant 5 : i32
    %c8_i32_135 = arith.constant 8 : i32
    %449 = arith.muli %c5_i32_134, %c8_i32_135 : i32
    %450 = tpu.assume_multiple %449, 8 : i32
    %451 = arith.index_cast %450 : i32 to index
    %c0_136 = arith.constant 0 : index
    %452 = vector.load %arg17[%451, %c0_136] : memref<64x384xf32, #tpu.memory_space<vmem>>, vector<8x384xf32>
    %c0_137 = arith.constant 0 : index
    %c0_138 = arith.constant 0 : index
    %453 = vector.load %arg8[%c0_137, %c0_138] : memref<128x384xf32, #tpu.memory_space<vmem>>, vector<128x384xf32>
    %cst_139 = arith.constant dense<0.000000e+00> : vector<8x384xf32>
    %454 = tpu.matmul %448, %453, %cst_139 {dimension_numbers = #tpu.dot_dimension_numbers<[1], [0], [0], [1], [0, 0, 1, 1], [], []>} : vector<8x128xf32>, vector<128x384xf32>, vector<8x384xf32> -> vector<8x384xf32>
    %455 = vector.extract_strided_slice %452 {offsets = [0, 0], sizes = [8, 128], strides = [1, 1]} : vector<8x384xf32> to vector<8x128xf32>
    %456 = vector.extract_strided_slice %454 {offsets = [0, 0], sizes = [8, 128], strides = [1, 1]} : vector<8x384xf32> to vector<8x128xf32>
    %457 = arith.addf %455, %456 : vector<8x128xf32>
    %458 = arith.negf %457 : vector<8x128xf32>
    %459 = math.exp %458 : vector<8x128xf32>
    %cst_140 = arith.constant 1.000000e+00 : f32
    %460 = vector.broadcast %cst_140 : f32 to vector<8x128xf32>
    %461 = arith.addf %460, %459 : vector<8x128xf32>
    %462 = arith.divf %460, %461 : vector<8x128xf32>
    %463 = vector.extract_strided_slice %452 {offsets = [0, 128], sizes = [8, 128], strides = [1, 1]} : vector<8x384xf32> to vector<8x128xf32>
    %464 = vector.extract_strided_slice %454 {offsets = [0, 128], sizes = [8, 128], strides = [1, 1]} : vector<8x384xf32> to vector<8x128xf32>
    %465 = arith.addf %463, %464 : vector<8x128xf32>
    %466 = arith.negf %465 : vector<8x128xf32>
    %467 = math.exp %466 : vector<8x128xf32>
    %cst_141 = arith.constant 1.000000e+00 : f32
    %468 = vector.broadcast %cst_141 : f32 to vector<8x128xf32>
    %469 = arith.addf %468, %467 : vector<8x128xf32>
    %470 = arith.divf %468, %469 : vector<8x128xf32>
    %471 = vector.extract_strided_slice %452 {offsets = [0, 256], sizes = [8, 128], strides = [1, 1]} : vector<8x384xf32> to vector<8x128xf32>
    %472 = vector.extract_strided_slice %454 {offsets = [0, 256], sizes = [8, 128], strides = [1, 1]} : vector<8x384xf32> to vector<8x128xf32>
    %473 = arith.addf %472, %291 : vector<8x128xf32>
    %474 = arith.mulf %462, %473 : vector<8x128xf32>
    %475 = arith.addf %471, %474 : vector<8x128xf32>
    %476 = math.tanh %475 : vector<8x128xf32>
    %477 = arith.subf %448, %476 : vector<8x128xf32>
    %478 = arith.mulf %470, %477 : vector<8x128xf32>
    %479 = arith.addf %476, %478 : vector<8x128xf32>
    %c6_i32_142 = arith.constant 6 : i32
    %c8_i32_143 = arith.constant 8 : i32
    %480 = arith.muli %c6_i32_142, %c8_i32_143 : i32
    %481 = tpu.assume_multiple %480, 8 : i32
    %482 = arith.index_cast %481 : i32 to index
    %c0_144 = arith.constant 0 : index
    %483 = vector.load %arg17[%482, %c0_144] : memref<64x384xf32, #tpu.memory_space<vmem>>, vector<8x384xf32>
    %c0_145 = arith.constant 0 : index
    %c0_146 = arith.constant 0 : index
    %484 = vector.load %arg8[%c0_145, %c0_146] : memref<128x384xf32, #tpu.memory_space<vmem>>, vector<128x384xf32>
    %cst_147 = arith.constant dense<0.000000e+00> : vector<8x384xf32>
    %485 = tpu.matmul %479, %484, %cst_147 {dimension_numbers = #tpu.dot_dimension_numbers<[1], [0], [0], [1], [0, 0, 1, 1], [], []>} : vector<8x128xf32>, vector<128x384xf32>, vector<8x384xf32> -> vector<8x384xf32>
    %486 = vector.extract_strided_slice %483 {offsets = [0, 0], sizes = [8, 128], strides = [1, 1]} : vector<8x384xf32> to vector<8x128xf32>
    %487 = vector.extract_strided_slice %485 {offsets = [0, 0], sizes = [8, 128], strides = [1, 1]} : vector<8x384xf32> to vector<8x128xf32>
    %488 = arith.addf %486, %487 : vector<8x128xf32>
    %489 = arith.negf %488 : vector<8x128xf32>
    %490 = math.exp %489 : vector<8x128xf32>
    %cst_148 = arith.constant 1.000000e+00 : f32
    %491 = vector.broadcast %cst_148 : f32 to vector<8x128xf32>
    %492 = arith.addf %491, %490 : vector<8x128xf32>
    %493 = arith.divf %491, %492 : vector<8x128xf32>
    %494 = vector.extract_strided_slice %483 {offsets = [0, 128], sizes = [8, 128], strides = [1, 1]} : vector<8x384xf32> to vector<8x128xf32>
    %495 = vector.extract_strided_slice %485 {offsets = [0, 128], sizes = [8, 128], strides = [1, 1]} : vector<8x384xf32> to vector<8x128xf32>
    %496 = arith.addf %494, %495 : vector<8x128xf32>
    %497 = arith.negf %496 : vector<8x128xf32>
    %498 = math.exp %497 : vector<8x128xf32>
    %cst_149 = arith.constant 1.000000e+00 : f32
    %499 = vector.broadcast %cst_149 : f32 to vector<8x128xf32>
    %500 = arith.addf %499, %498 : vector<8x128xf32>
    %501 = arith.divf %499, %500 : vector<8x128xf32>
    %502 = vector.extract_strided_slice %483 {offsets = [0, 256], sizes = [8, 128], strides = [1, 1]} : vector<8x384xf32> to vector<8x128xf32>
    %503 = vector.extract_strided_slice %485 {offsets = [0, 256], sizes = [8, 128], strides = [1, 1]} : vector<8x384xf32> to vector<8x128xf32>
    %504 = arith.addf %503, %291 : vector<8x128xf32>
    %505 = arith.mulf %493, %504 : vector<8x128xf32>
    %506 = arith.addf %502, %505 : vector<8x128xf32>
    %507 = math.tanh %506 : vector<8x128xf32>
    %508 = arith.subf %479, %507 : vector<8x128xf32>
    %509 = arith.mulf %501, %508 : vector<8x128xf32>
    %510 = arith.addf %507, %509 : vector<8x128xf32>
    %c7_i32_150 = arith.constant 7 : i32
    %c8_i32_151 = arith.constant 8 : i32
    %511 = arith.muli %c7_i32_150, %c8_i32_151 : i32
    %512 = tpu.assume_multiple %511, 8 : i32
    %513 = arith.index_cast %512 : i32 to index
    %c0_152 = arith.constant 0 : index
    %514 = vector.load %arg17[%513, %c0_152] : memref<64x384xf32, #tpu.memory_space<vmem>>, vector<8x384xf32>
    %c0_153 = arith.constant 0 : index
    %c0_154 = arith.constant 0 : index
    %515 = vector.load %arg8[%c0_153, %c0_154] : memref<128x384xf32, #tpu.memory_space<vmem>>, vector<128x384xf32>
    %cst_155 = arith.constant dense<0.000000e+00> : vector<8x384xf32>
    %516 = tpu.matmul %510, %515, %cst_155 {dimension_numbers = #tpu.dot_dimension_numbers<[1], [0], [0], [1], [0, 0, 1, 1], [], []>} : vector<8x128xf32>, vector<128x384xf32>, vector<8x384xf32> -> vector<8x384xf32>
    %517 = vector.extract_strided_slice %514 {offsets = [0, 0], sizes = [8, 128], strides = [1, 1]} : vector<8x384xf32> to vector<8x128xf32>
    %518 = vector.extract_strided_slice %516 {offsets = [0, 0], sizes = [8, 128], strides = [1, 1]} : vector<8x384xf32> to vector<8x128xf32>
    %519 = arith.addf %517, %518 : vector<8x128xf32>
    %520 = arith.negf %519 : vector<8x128xf32>
    %521 = math.exp %520 : vector<8x128xf32>
    %cst_156 = arith.constant 1.000000e+00 : f32
    %522 = vector.broadcast %cst_156 : f32 to vector<8x128xf32>
    %523 = arith.addf %522, %521 : vector<8x128xf32>
    %524 = arith.divf %522, %523 : vector<8x128xf32>
    %525 = vector.extract_strided_slice %514 {offsets = [0, 128], sizes = [8, 128], strides = [1, 1]} : vector<8x384xf32> to vector<8x128xf32>
    %526 = vector.extract_strided_slice %516 {offsets = [0, 128], sizes = [8, 128], strides = [1, 1]} : vector<8x384xf32> to vector<8x128xf32>
    %527 = arith.addf %525, %526 : vector<8x128xf32>
    %528 = arith.negf %527 : vector<8x128xf32>
    %529 = math.exp %528 : vector<8x128xf32>
    %cst_157 = arith.constant 1.000000e+00 : f32
    %530 = vector.broadcast %cst_157 : f32 to vector<8x128xf32>
    %531 = arith.addf %530, %529 : vector<8x128xf32>
    %532 = arith.divf %530, %531 : vector<8x128xf32>
    %533 = vector.extract_strided_slice %514 {offsets = [0, 256], sizes = [8, 128], strides = [1, 1]} : vector<8x384xf32> to vector<8x128xf32>
    %534 = vector.extract_strided_slice %516 {offsets = [0, 256], sizes = [8, 128], strides = [1, 1]} : vector<8x384xf32> to vector<8x128xf32>
    %535 = arith.addf %534, %291 : vector<8x128xf32>
    %536 = arith.mulf %524, %535 : vector<8x128xf32>
    %537 = arith.addf %533, %536 : vector<8x128xf32>
    %538 = math.tanh %537 : vector<8x128xf32>
    %539 = arith.subf %510, %538 : vector<8x128xf32>
    %540 = arith.mulf %532, %539 : vector<8x128xf32>
    %541 = arith.addf %538, %540 : vector<8x128xf32>
    %c8_i32_158 = arith.constant 8 : i32
    %c1_159 = arith.constant 1 : index
    %c0_160 = arith.constant 0 : index
    %c0_161 = arith.constant 0 : index
    %542 = vector.load %arg16[%c1_159, %c0_160, %c0_161] : memref<2x8x128xf32, #tpu.memory_space<vmem>>, vector<1x8x128xf32>
    %543 = vector.shape_cast %542 : vector<1x8x128xf32> to vector<8x128xf32>
    %544 = vector.shape_cast %541 : vector<8x128xf32> to vector<1x8x128xf32>
    tpu.vector_store %arg16[%c1_159, %c0_160, %c0_161], %544 {strides = array<i32>} : memref<2x8x128xf32, #tpu.memory_space<vmem>>, vector<1x8x128xf32>,
    %c0_i32_162 = arith.constant 0 : i32
    %545 = arith.cmpi eq, %arg1, %c0_i32_162 : i32
    %546 = arith.extui %545 : i1 to i32
    %c0_i32_163 = arith.constant 0 : i32
    %547 = arith.cmpi ne, %546, %c0_i32_163 : i32
    scf.if %547 {
      %c0_164 = arith.constant 0 : index
      %c0_165 = arith.constant 0 : index
      %548 = vector.load %arg11[%c0_164, %c0_165] : memref<128x128xf32, #tpu.memory_space<vmem>>, vector<128x128xf32>
      %cst_166 = arith.constant dense<0.000000e+00> : vector<8x128xf32>
      %549 = tpu.matmul %541, %548, %cst_166 {dimension_numbers = #tpu.dot_dimension_numbers<[1], [0], [0], [1], [0, 0, 1, 1], [], []>} : vector<8x128xf32>, vector<128x128xf32>, vector<8x128xf32> -> vector<8x128xf32>
      %c0_167 = arith.constant 0 : index
      %c0_168 = arith.constant 0 : index
      %550 = vector.load %arg12[%c0_167, %c0_168] : memref<1x128xf32, #tpu.memory_space<vmem>>, vector<1x128xf32>
      %551 = vector.broadcast %550 : vector<1x128xf32> to vector<8x128xf32>
      %552 = arith.addf %549, %551 : vector<8x128xf32>
      %cst_169 = arith.constant 0.000000e+00 : f32
      %553 = vector.broadcast %cst_169 : f32 to vector<8x128xf32>
      %554 = arith.maximumf %552, %553 : vector<8x128xf32>
      %c0_170 = arith.constant 0 : index
      %c0_171 = arith.constant 0 : index
      %555 = vector.load %arg13[%c0_170, %c0_171] : memref<128x128xf32, #tpu.memory_space<vmem>>, vector<128x128xf32>
      %cst_172 = arith.constant dense<0.000000e+00> : vector<8x128xf32>
      %556 = tpu.matmul %554, %555, %cst_172 {dimension_numbers = #tpu.dot_dimension_numbers<[1], [0], [0], [1], [0, 0, 1, 1], [], []>} : vector<8x128xf32>, vector<128x128xf32>, vector<8x128xf32> -> vector<8x128xf32>
      %c0_173 = arith.constant 0 : index
      %c0_174 = arith.constant 0 : index
      %557 = vector.load %arg14[%c0_173, %c0_174] : memref<1x128xf32, #tpu.memory_space<vmem>>, vector<1x128xf32>
      %558 = vector.broadcast %557 : vector<1x128xf32> to vector<8x128xf32>
      %559 = arith.addf %556, %558 : vector<8x128xf32>
      %c0_175 = arith.constant 0 : index
      %c0_176 = arith.constant 0 : index
      %560 = vector.load %arg15[%c0_175, %c0_176] : memref<8x128xf32, #tpu.memory_space<vmem>>, vector<8x128xf32>
      tpu.vector_store %arg15[%c0_175, %c0_176], %559 {strides = array<i32>} : memref<8x128xf32, #tpu.memory_space<vmem>>, vector<8x128xf32>,
    } else {
    }
    return
  }
  func.func @transform_0(%arg0: i32, %arg1: i32) -> (i32, i32) {
    %c1_i32 = arith.constant 1 : i32
    %0 = arith.muli %arg0, %c1_i32 : i32
    %1 = arith.addi %0, %arg1 : i32
    %c0_i32 = arith.constant 0 : i32
    %c0_i32_0 = arith.constant 0 : i32
    return %1, %c0_i32 : i32, i32
  }
  func.func @transform_1(%arg0: i32, %arg1: i32) -> (i32, i32) {
    %c0_i32 = arith.constant 0 : i32
    %c0_i32_0 = arith.constant 0 : i32
    %c0_i32_1 = arith.constant 0 : i32
    return %c0_i32, %c0_i32_0 : i32, i32
  }
  func.func @transform_2(%arg0: i32, %arg1: i32) -> (i32, i32) {
    %c0_i32 = arith.constant 0 : i32
    %c0_i32_0 = arith.constant 0 : i32
    %c0_i32_1 = arith.constant 0 : i32
    return %c0_i32, %c0_i32_0 : i32, i32
  }
  func.func @transform_3(%arg0: i32, %arg1: i32) -> (i32, i32) {
    %c0_i32 = arith.constant 0 : i32
    %c0_i32_0 = arith.constant 0 : i32
    %c0_i32_1 = arith.constant 0 : i32
    return %c0_i32, %c0_i32_0 : i32, i32
  }
  func.func @transform_4(%arg0: i32, %arg1: i32) -> (i32, i32) {
    %c0_i32 = arith.constant 0 : i32
    %c0_i32_0 = arith.constant 0 : i32
    %c0_i32_1 = arith.constant 0 : i32
    return %c0_i32, %c0_i32_0 : i32, i32
  }
  func.func @transform_5(%arg0: i32, %arg1: i32) -> (i32, i32) {
    %c0_i32 = arith.constant 0 : i32
    %c0_i32_0 = arith.constant 0 : i32
    %c0_i32_1 = arith.constant 0 : i32
    return %c0_i32, %c0_i32_0 : i32, i32
  }
  func.func @transform_6(%arg0: i32, %arg1: i32) -> (i32, i32) {
    %c0_i32 = arith.constant 0 : i32
    %c0_i32_0 = arith.constant 0 : i32
    %c0_i32_1 = arith.constant 0 : i32
    return %c0_i32, %c0_i32_0 : i32, i32
  }
  func.func @transform_7(%arg0: i32, %arg1: i32) -> (i32, i32) {
    %c0_i32 = arith.constant 0 : i32
    %c0_i32_0 = arith.constant 0 : i32
    %c0_i32_1 = arith.constant 0 : i32
    return %c0_i32, %c0_i32_0 : i32, i32
  }
  func.func @transform_8(%arg0: i32, %arg1: i32) -> (i32, i32) {
    %c0_i32 = arith.constant 0 : i32
    %c0_i32_0 = arith.constant 0 : i32
    %c0_i32_1 = arith.constant 0 : i32
    return %c0_i32, %c0_i32_0 : i32, i32
  }
  func.func @transform_9(%arg0: i32, %arg1: i32) -> (i32, i32) {
    %c0_i32 = arith.constant 0 : i32
    %c0_i32_0 = arith.constant 0 : i32
    %c0_i32_1 = arith.constant 0 : i32
    return %c0_i32, %c0_i32_0 : i32, i32
  }
  func.func @transform_10(%arg0: i32, %arg1: i32) -> (i32, i32) {
    %c0_i32 = arith.constant 0 : i32
    %c0_i32_0 = arith.constant 0 : i32
    %c0_i32_1 = arith.constant 0 : i32
    return %c0_i32, %c0_i32_0 : i32, i32
  }
  func.func @transform_11(%arg0: i32, %arg1: i32) -> (i32, i32) {
    %c0_i32 = arith.constant 0 : i32
    %c0_i32_0 = arith.constant 0 : i32
    %c0_i32_1 = arith.constant 0 : i32
    return %c0_i32, %c0_i32_0 : i32, i32
  }
  func.func @transform_12(%arg0: i32, %arg1: i32) -> (i32, i32) {
    %c0_i32 = arith.constant 0 : i32
    %c0_i32_0 = arith.constant 0 : i32
    %c0_i32_1 = arith.constant 0 : i32
    return %c0_i32, %c0_i32_0 : i32, i32
  }
  func.func @transform_13(%arg0: i32, %arg1: i32) -> (i32, i32) {
    %c0_i32 = arith.constant 0 : i32
    %c0_i32_0 = arith.constant 0 : i32
    return %arg0, %c0_i32 : i32, i32
  }
}

</mosaic_0001>

<llo_original>
// kernel: tpu_custom_call.1
$region0: #{tpu_custom_call.1}
  #allocation0 [shape = 'u32[]', space=smem, size = 0x4, offset = 0x4, fixed_abs, tag = 'smem constant byte address 0x4 - core index']
  #allocation1 [shape = 'u32[144,128]{1,0:T(1,128)}', space=vmem, size = 0x12000, scoped, tag = 'internal scratch']
  #allocation2 [shape = 'f32[2,8,128]{2,1,0:T(8,128)}', space=vmem, size = 0x2000, scoped, tag = 'scratch operand']
  #allocation3 [shape = 'f32[64,384]{1,0:T(8,128)}', space=vmem, size = 0x18000, scoped, tag = 'scratch operand']
  #allocation4 [shape = 'f32[64,128]{1,0:T(8,128)}', space=vmem, size = 0x8000, scoped, tag = 'scratch operand']
  %s0 = inlined_call_operand.hbm [shape: f32[64,128], index: 0, kind: input, shape index: {}]
  %s1 = inlined_call_operand.hbm [shape: f32[128,384], index: 1, kind: input, shape index: {}]
  %s2 = inlined_call_operand.hbm [shape: f32[128,384], index: 2, kind: input, shape index: {}]
  %s3 = inlined_call_operand.vmem [shape: f32[1,384], index: 3, kind: input, shape index: {}]
  %s4 = inlined_call_operand.vmem [shape: f32[1,128], index: 4, kind: input, shape index: {}]
  %s5 = inlined_call_operand.hbm [shape: f32[128,384], index: 5, kind: input, shape index: {}]
  %s6 = inlined_call_operand.hbm [shape: f32[128,384], index: 6, kind: input, shape index: {}]
  %s7 = inlined_call_operand.vmem [shape: f32[1,384], index: 7, kind: input, shape index: {}]
  %s8 = inlined_call_operand.vmem [shape: f32[1,128], index: 8, kind: input, shape index: {}]
  %s9 = inlined_call_operand.hbm [shape: f32[128,128], index: 9, kind: input, shape index: {}]
  %s10 = inlined_call_operand.vmem [shape: f32[1,128], index: 10, kind: input, shape index: {}]
  %s11 = inlined_call_operand.hbm [shape: f32[128,128], index: 11, kind: input, shape index: {}]
  %s12 = inlined_call_operand.vmem [shape: f32[1,128], index: 12, kind: input, shape index: {}]
  %s13 = inlined_call_operand.hbm [shape: f32[8,128], index: 13, kind: output, shape index: {}]
  %s14 = sld [smem:[#allocation0]]
  $region98: #{tpu_custom_call.1} parent=0
    _
  %s16 = ssub.s32 1, %s14
  %s17 = scalar_select 0, %s16, %s14
  $region1: #{tpu_custom_call.1} parent=0
    #allocation5 [shape = 'u8[32768]{0}', space=vmem, size = 0x8000, scoped, tag = 'input window, operand 0, single buffered']
    #allocation6 [shape = 's32[1]{0}', space=sflag, size = 0x4, scoped, tag = 'scoped memory for tpu_custom_call.1']
    #allocation7 [shape = 's32[1]{0}', space=sflag, size = 0x4, scoped, tag = 'scoped memory for tpu_custom_call.1']
    #allocation8 [shape = 'u8[196608]{0}', space=vmem, size = 0x30000, scoped, tag = 'input window, operand 1, single buffered']
    #allocation9 [shape = 's32[1]{0}', space=sflag, size = 0x4, scoped, tag = 'scoped memory for tpu_custom_call.1']
    #allocation10 [shape = 'u8[196608]{0}', space=vmem, size = 0x30000, scoped, tag = 'input window, operand 2, single buffered']
    #allocation11 [shape = 'u8[196608]{0}', space=vmem, size = 0x30000, scoped, tag = 'input window, operand 5, single buffered']
    #allocation12 [shape = 's32[1]{0}', space=sflag, size = 0x4, scoped, tag = 'scoped memory for tpu_custom_call.1']
    #allocation13 [shape = 'u8[196608]{0}', space=vmem, size = 0x30000, scoped, tag = 'input window, operand 6, single buffered']
    #allocation14 [shape = 'u8[65536]{0}', space=vmem, size = 0x10000, scoped, tag = 'input window, operand 9, single buffered']
    #allocation15 [shape = 's32[1]{0}', space=sflag, size = 0x4, scoped, tag = 'scoped memory for tpu_custom_call.1']
    #allocation16 [shape = 'u8[65536]{0}', space=vmem, size = 0x10000, scoped, tag = 'input window, operand 11, single buffered']
    #allocation17 [shape = 'u8[4096]{0}', space=vmem, size = 0x1000, scoped, tag = 'output window, operand 0, single buffered']
    %18 = vsyncpa [#allocation6], 0
    %19 = vsyncpa [#allocation9], 0
    %20 = vsyncpa [#allocation12], 0
    %21 = vsyncpa [#allocation15], 0
    %22 = vsyncpa [#allocation7], 0
    // Predicated region
    $region2: #{tpu_custom_call.1} parent=1 // pred_check
      _
    $region3: #{tpu_custom_call.1} parent=1 // pred_check_branch
      %24 = sbr.rel (0) target = $region5
    $region4: #{tpu_custom_call.1} parent=1 // pred_region
      %s25 = sadd.s32 0, 0
      %s26 = smul.u32 8, %s25
      %s28 = ssub.s32 1024, 1024
      %29 = vsyncadd [#allocation6], %s28
      %s30 = smul.addr %s26, 128
      %s31 = scalar_lea.hbm %s0, %s30
      %s32 = sshll.u32 [#allocation5], 4
      %s33 = int_to_ptr.vmem [resolvable:$true] %s32
      %38 = dma.hbm_to_vmem [thread:$0]  %s31, 1024, %s33, [#allocation6], 128, 128, 8
    $region5: #{tpu_custom_call.1} parent=1 // pred_fallthru
      _
    // Predicated region
    $region6: #{tpu_custom_call.1} parent=1 // pred_check
      _
    $region7: #{tpu_custom_call.1} parent=1 // pred_check_branch
      %40 = sbr.rel (0) target = $region9
    $region8: #{tpu_custom_call.1} parent=1 // pred_region
      %s42 = ssub.s32 6144, 6144
      %43 = vsyncadd [#allocation9], %s42
      %s44 = sshll.u32 [#allocation8], 4
      %s45 = int_to_ptr.vmem [resolvable:$true] %s44
      %50 = dma.hbm_to_vmem [thread:$0]  %s1, 6144, %s45, [#allocation9], 384, 384, 24
    $region9: #{tpu_custom_call.1} parent=1 // pred_fallthru
      _
    // Predicated region
    $region10: #{tpu_custom_call.1} parent=1 // pred_check
      _
    $region11: #{tpu_custom_call.1} parent=1 // pred_check_branch
      %52 = sbr.rel (0) target = $region13
    $region12: #{tpu_custom_call.1} parent=1 // pred_region
      %s54 = ssub.s32 6144, 6144
      %55 = vsyncadd [#allocation9], %s54
      %s56 = sshll.u32 [#allocation10], 4
      %s57 = int_to_ptr.vmem [resolvable:$true] %s56
      %62 = dma.hbm_to_vmem [thread:$0]  %s2, 6144, %s57, [#allocation9], 384, 384, 24
    $region13: #{tpu_custom_call.1} parent=1 // pred_fallthru
      _
    // Predicated region
    $region14: #{tpu_custom_call.1} parent=1 // pred_check
      _
    $region15: #{tpu_custom_call.1} parent=1 // pred_check_branch
      %64 = sbr.rel (0) target = $region17
    $region16: #{tpu_custom_call.1} parent=1 // pred_region
      _
    $region17: #{tpu_custom_call.1} parent=1 // pred_fallthru
      _
    // Predicated region
    $region18: #{tpu_custom_call.1} parent=1 // pred_check
      _
    $region19: #{tpu_custom_call.1} parent=1 // pred_check_branch
      %66 = sbr.rel (0) target = $region21
    $region20: #{tpu_custom_call.1} parent=1 // pred_region
      _
    $region21: #{tpu_custom_call.1} parent=1 // pred_fallthru
      _
    // Predicated region
    $region22: #{tpu_custom_call.1} parent=1 // pred_check
      _
    $region23: #{tpu_custom_call.1} parent=1 // pred_check_branch
      %68 = sbr.rel (0) target = $region25
    $region24: #{tpu_custom_call.1} parent=1 // pred_region
      %s70 = ssub.s32 6144, 6144
      %71 = vsyncadd [#allocation12], %s70
      %s72 = sshll.u32 [#allocation11], 4
      %s73 = int_to_ptr.vmem [resolvable:$true] %s72
      %78 = dma.hbm_to_vmem [thread:$0]  %s5, 6144, %s73, [#allocation12], 384, 384, 24
    $region25: #{tpu_custom_call.1} parent=1 // pred_fallthru
      _
    // Predicated region
    $region26: #{tpu_custom_call.1} parent=1 // pred_check
      _
    $region27: #{tpu_custom_call.1} parent=1 // pred_check_branch
      %80 = sbr.rel (0) target = $region29
    $region28: #{tpu_custom_call.1} parent=1 // pred_region
      %s82 = ssub.s32 6144, 6144
      %83 = vsyncadd [#allocation12], %s82
      %s84 = sshll.u32 [#allocation13], 4
      %s85 = int_to_ptr.vmem [resolvable:$true] %s84
      %90 = dma.hbm_to_vmem [thread:$0]  %s6, 6144, %s85, [#allocation12], 384, 384, 24
    $region29: #{tpu_custom_call.1} parent=1 // pred_fallthru
      _
    // Predicated region
    $region30: #{tpu_custom_call.1} parent=1 // pred_check
      _
    $region31: #{tpu_custom_call.1} parent=1 // pred_check_branch
      %92 = sbr.rel (0) target = $region33
    $region32: #{tpu_custom_call.1} parent=1 // pred_region
      _
    $region33: #{tpu_custom_call.1} parent=1 // pred_fallthru
      _
    // Predicated region
    $region34: #{tpu_custom_call.1} parent=1 // pred_check
      _
    $region35: #{tpu_custom_call.1} parent=1 // pred_check_branch
      %94 = sbr.rel (0) target = $region37
    $region36: #{tpu_custom_call.1} parent=1 // pred_region
      _
    $region37: #{tpu_custom_call.1} parent=1 // pred_fallthru
      _
    // Predicated region
    $region38: #{tpu_custom_call.1} parent=1 // pred_check
      _
    $region39: #{tpu_custom_call.1} parent=1 // pred_check_branch
      %96 = sbr.rel (0) target = $region41
    $region40: #{tpu_custom_call.1} parent=1 // pred_region
      %s98 = ssub.s32 2048, 2048
      %99 = vsyncadd [#allocation15], %s98
      %s100 = sshll.u32 [#allocation14], 4
      %s101 = int_to_ptr.vmem [resolvable:$true] %s100
      %106 = dma.hbm_to_vmem [thread:$0]  %s9, 2048, %s101, [#allocation15], 128, 128, 8
    $region41: #{tpu_custom_call.1} parent=1 // pred_fallthru
      _
    // Predicated region
    $region42: #{tpu_custom_call.1} parent=1 // pred_check
      _
    $region43: #{tpu_custom_call.1} parent=1 // pred_check_branch
      %108 = sbr.rel (0) target = $region45
    $region44: #{tpu_custom_call.1} parent=1 // pred_region
      _
    $region45: #{tpu_custom_call.1} parent=1 // pred_fallthru
      _
    // Predicated region
    $region46: #{tpu_custom_call.1} parent=1 // pred_check
      _
    $region47: #{tpu_custom_call.1} parent=1 // pred_check_branch
      %110 = sbr.rel (0) target = $region49
    $region48: #{tpu_custom_call.1} parent=1 // pred_region
      %s112 = ssub.s32 2048, 2048
      %113 = vsyncadd [#allocation15], %s112
      %s114 = sshll.u32 [#allocation16], 4
      %s115 = int_to_ptr.vmem [resolvable:$true] %s114
      %120 = dma.hbm_to_vmem [thread:$0]  %s11, 2048, %s115, [#allocation15], 128, 128, 8
    $region49: #{tpu_custom_call.1} parent=1 // pred_fallthru
      _
    // Predicated region
    $region50: #{tpu_custom_call.1} parent=1 // pred_check
      _
    $region51: #{tpu_custom_call.1} parent=1 // pred_check_branch
      %122 = sbr.rel (0) target = $region53
    $region52: #{tpu_custom_call.1} parent=1 // pred_region
      _
    $region53: #{tpu_custom_call.1} parent=1 // pred_fallthru
      _
    // Predicated region
    $region54: #{tpu_custom_call.1} parent=1 // pred_check
      _
    $region55: #{tpu_custom_call.1} parent=1 // pred_check_branch
      %124 = sbr.rel (0) target = $region57
    $region56: #{tpu_custom_call.1} parent=1 // pred_region
      %125 = dma.done [#allocation6], 1024
    $region57: #{tpu_custom_call.1} parent=1 // pred_fallthru
      _
    // Predicated region
    $region58: #{tpu_custom_call.1} parent=1 // pred_check
      _
    $region59: #{tpu_custom_call.1} parent=1 // pred_check_branch
      %127 = sbr.rel (0) target = $region61
    $region60: #{tpu_custom_call.1} parent=1 // pred_region
      %128 = dma.done [#allocation9], 6144
    $region61: #{tpu_custom_call.1} parent=1 // pred_fallthru
      _
    // Predicated region
    $region62: #{tpu_custom_call.1} parent=1 // pred_check
      _
    $region63: #{tpu_custom_call.1} parent=1 // pred_check_branch
      %130 = sbr.rel (0) target = $region65
    $region64: #{tpu_custom_call.1} parent=1 // pred_region
      %131 = dma.done [#allocation9], 6144
    $region65: #{tpu_custom_call.1} parent=1 // pred_fallthru
      _
    // Predicated region
    $region66: #{tpu_custom_call.1} parent=1 // pred_check
      _
    $region67: #{tpu_custom_call.1} parent=1 // pred_check_branch
      %133 = sbr.rel (0) target = $region69
    $region68: #{tpu_custom_call.1} parent=1 // pred_region
      %134 = dma.done [#allocation12], 6144
    $region69: #{tpu_custom_call.1} parent=1 // pred_fallthru
      _
    // Predicated region
    $region70: #{tpu_custom_call.1} parent=1 // pred_check
      _
    $region71: #{tpu_custom_call.1} parent=1 // pred_check_branch
      %136 = sbr.rel (0) target = $region73
    $region72: #{tpu_custom_call.1} parent=1 // pred_region
      %137 = dma.done [#allocation12], 6144
    $region73: #{tpu_custom_call.1} parent=1 // pred_fallthru
      _
    // Predicated region
    $region74: #{tpu_custom_call.1} parent=1 // pred_check
      _
    $region75: #{tpu_custom_call.1} parent=1 // pred_check_branch
      %139 = sbr.rel (0) target = $region77
    $region76: #{tpu_custom_call.1} parent=1 // pred_region
      %140 = dma.done [#allocation15], 2048
    $region77: #{tpu_custom_call.1} parent=1 // pred_fallthru
      _
    // Predicated region
    $region78: #{tpu_custom_call.1} parent=1 // pred_check
      _
    $region79: #{tpu_custom_call.1} parent=1 // pred_check_branch
      %142 = sbr.rel (0) target = $region81
    $region80: #{tpu_custom_call.1} parent=1 // pred_region
      %143 = dma.done [#allocation15], 2048
    $region81: #{tpu_custom_call.1} parent=1 // pred_fallthru
      _
    %s144 = sadd.s32 0, 0
    %s145 = smul.u32 8, %s144
    %p146 = scmp.eq.s32.totalorder 0, 0
    // Predicated region
    $region82: #{tpu_custom_call.1} parent=1 // pred_check
      %p147 = pneg %p146
    $region83: #{tpu_custom_call.1} parent=1 // pred_check_branch
      %149 = sbr.rel (%p147) target = $region85
    $region84: #{tpu_custom_call.1} parent=1 // pred_region
      %150 = vst [vmem:[#allocation2] sm:$0xff] 0.0
      %151 = vst [vmem:[#allocation2 + $0x8] sm:$0xff] 0.0
    $region85: #{tpu_custom_call.1} parent=1 // pred_fallthru
      _
    %v152 = vld [vmem:[#allocation5] sm:$0xff]
    %v153 = vld [vmem:[#allocation5 + $0x8] sm:$0xff]
    %v154 = vld [vmem:[#allocation5 + $0x10] sm:$0xff]
    %v155 = vld [vmem:[#allocation5 + $0x18] sm:$0xff]
    %v156 = vld [vmem:[#allocation5 + $0x20] sm:$0xff]
    %v157 = vld [vmem:[#allocation5 + $0x28] sm:$0xff]
    %v158 = vld [vmem:[#allocation5 + $0x30] sm:$0xff]
    %v159 = vld [vmem:[#allocation5 + $0x38] sm:$0xff]
    %v160 = vld [vmem:[#allocation8] sm:$0xff]
    %v161 = vld [vmem:[#allocation8 + $0x8] sm:$0xff]
    %v162 = vld [vmem:[#allocation8 + $0x10] sm:$0xff]
    %v163 = vld [vmem:[#allocation8 + $0x18] sm:$0xff]
    %v164 = vld [vmem:[#allocation8 + $0x20] sm:$0xff]
    %v165 = vld [vmem:[#allocation8 + $0x28] sm:$0xff]
    %v166 = vld [vmem:[#allocation8 + $0x30] sm:$0xff]
    %v167 = vld [vmem:[#allocation8 + $0x38] sm:$0xff]
    %v168 = vld [vmem:[#allocation8 + $0x40] sm:$0xff]
    %v169 = vld [vmem:[#allocation8 + $0x48] sm:$0xff]
    %v170 = vld [vmem:[#allocation8 + $0x50] sm:$0xff]
    %v171 = vld [vmem:[#allocation8 + $0x58] sm:$0xff]
    %v172 = vld [vmem:[#allocation8 + $0x60] sm:$0xff]
    %v173 = vld [vmem:[#allocation8 + $0x68] sm:$0xff]
    %v174 = vld [vmem:[#allocation8 + $0x70] sm:$0xff]
    %v175 = vld [vmem:[#allocation8 + $0x78] sm:$0xff]
    %v176 = vld [vmem:[#allocation8 + $0x80] sm:$0xff]
    %v177 = vld [vmem:[#allocation8 + $0x88] sm:$0xff]
    %v178 = vld [vmem:[#allocation8 + $0x90] sm:$0xff]
    %v179 = vld [vmem:[#allocation8 + $0x98] sm:$0xff]
    %v180 = vld [vmem:[#allocation8 + $0xa0] sm:$0xff]
    %v181 = vld [vmem:[#allocation8 + $0xa8] sm:$0xff]
    %v182 = vld [vmem:[#allocation8 + $0xb0] sm:$0xff]
    %v183 = vld [vmem:[#allocation8 + $0xb8] sm:$0xff]
    %v184 = vld [vmem:[#allocation8 + $0xc0] sm:$0xff]
    %v185 = vld [vmem:[#allocation8 + $0xc8] sm:$0xff]
    %v186 = vld [vmem:[#allocation8 + $0xd0] sm:$0xff]
    %v187 = vld [vmem:[#allocation8 + $0xd8] sm:$0xff]
    %v188 = vld [vmem:[#allocation8 + $0xe0] sm:$0xff]
    %v189 = vld [vmem:[#allocation8 + $0xe8] sm:$0xff]
    %v190 = vld [vmem:[#allocation8 + $0xf0] sm:$0xff]
    %v191 = vld [vmem:[#allocation8 + $0xf8] sm:$0xff]
    %v192 = vld [vmem:[#allocation8 + $0x100] sm:$0xff]
    %v193 = vld [vmem:[#allocation8 + $0x108] sm:$0xff]
    %v194 = vld [vmem:[#allocation8 + $0x110] sm:$0xff]
    %v195 = vld [vmem:[#allocation8 + $0x118] sm:$0xff]
    %v196 = vld [vmem:[#allocation8 + $0x120] sm:$0xff]
    %v197 = vld [vmem:[#allocation8 + $0x128] sm:$0xff]
    %v198 = vld [vmem:[#allocation8 + $0x130] sm:$0xff]
    %v199 = vld [vmem:[#allocation8 + $0x138] sm:$0xff]
    %v200 = vld [vmem:[#allocation8 + $0x140] sm:$0xff]
    %v201 = vld [vmem:[#allocation8 + $0x148] sm:$0xff]
    %v202 = vld [vmem:[#allocation8 + $0x150] sm:$0xff]
    %v203 = vld [vmem:[#allocation8 + $0x158] sm:$0xff]
    %v204 = vld [vmem:[#allocation8 + $0x160] sm:$0xff]
    %v205 = vld [vmem:[#allocation8 + $0x168] sm:$0xff]
    %v206 = vld [vmem:[#allocation8 + $0x170] sm:$0xff]
    %v207 = vld [vmem:[#allocation8 + $0x178] sm:$0xff]
    %v208 = vld [vmem:[%s3] sm:$0x7]
    %v210 = vlaneseq
    %v211 = vshrl.u32 %v210, 7
    %v212 = vsub.s32 0, %v211
    %v213 = vrot.slane %v208, %v212
    %v214 = vlaneseq
    %v215 = vshrl.u32 %v214, 7
    %v216 = vsub.s32 1, %v215
    %v217 = vrot.slane %v208, %v216
    %v218 = vlaneseq
    %v219 = vshrl.u32 %v218, 7
    %v220 = vsub.s32 2, %v219
    %v221 = vrot.slane %v208, %v220
    %225 = vmatprep.subr.mxu0 %v161
    %226 = vmatpush1.msra.mxu0 %v160
    %227 = vmatprep.subr.mxu0 %v164
    %228 = vmatpush1.msra.mxu0 %v163
    %229 = vmatprep.subr.mxu0 %v167
    %230 = vmatpush1.msra.mxu0 %v166
    %231 = vmatprep.subr.mxu0 %v170
    %232 = vmatpush1.msra.mxu0 %v169
    %233 = vmatprep.subr.mxu0 %v173
    %234 = vmatpush1.msra.mxu0 %v172
    %235 = vmatprep.subr.mxu0 %v176
    %236 = vmatpush1.msra.mxu0 %v175
    %237 = vmatprep.subr.mxu0 %v179
    %238 = vmatpush1.msra.mxu0 %v178
    %239 = vmatprep.subr.mxu0 %v182
    %240 = vmatpush1.msra.mxu0 %v181
    %241 = vmatprep.subr.mxu0 %v185
    %242 = vmatpush1.msra.mxu0 %v184
    %243 = vmatprep.subr.mxu0 %v188
    %244 = vmatpush1.msra.mxu0 %v187
    %245 = vmatprep.subr.mxu0 %v191
    %246 = vmatpush1.msra.mxu0 %v190
    %247 = vmatprep.subr.mxu0 %v194
    %248 = vmatpush1.msra.mxu0 %v193
    %249 = vmatprep.subr.mxu0 %v197
    %250 = vmatpush1.msra.mxu0 %v196
    %251 = vmatprep.subr.mxu0 %v200
    %252 = vmatpush1.msra.mxu0 %v199
    %253 = vmatprep.subr.mxu0 %v203
    %254 = vmatpush1.msra.mxu0 %v202
    %255 = vmatprep.subr.mxu0 %v206
    %256 = vmatpush1.msra.mxu0 %v205
    %257 = vmatprep.subr.mxu0 0.0
    %258 = vmatpush1.msra.mxu0 0.0
    %259 = vmatprep.subr.mxu0 0.0
    %260 = vmatpush1.msra.mxu0 0.0
    %261 = vmatprep.subr.mxu0 0.0
    %262 = vmatpush1.msra.mxu0 0.0
    %263 = vmatprep.subr.mxu0 0.0
    %264 = vmatpush1.msra.mxu0 0.0
    %265 = vmatprep.subr.mxu0 0.0
    %266 = vmatpush1.msra.mxu0 0.0
    %267 = vmatprep.subr.mxu0 0.0
    %268 = vmatpush1.msra.mxu0 0.0
    %269 = vmatprep.subr.mxu0 0.0
    %270 = vmatpush1.msra.mxu0 0.0
    %271 = vmatprep.subr.mxu0 0.0
    %272 = vmatpush1.msra.mxu0 0.0
    %273 = vmatprep.subr.mxu0 0.0
    %274 = vmatpush1.msra.mxu0 0.0
    %275 = vmatprep.subr.mxu0 0.0
    %276 = vmatpush1.msra.mxu0 0.0
    %277 = vmatprep.subr.mxu0 0.0
    %278 = vmatpush1.msra.mxu0 0.0
    %279 = vmatprep.subr.mxu0 0.0
    %280 = vmatpush1.msra.mxu0 0.0
    %281 = vmatprep.subr.mxu0 0.0
    %282 = vmatpush1.msra.mxu0 0.0
    %283 = vmatprep.subr.mxu0 0.0
    %284 = vmatpush1.msra.mxu0 0.0
    %285 = vmatprep.subr.mxu0 0.0
    %286 = vmatpush1.msra.mxu0 0.0
    %287 = vmatprep.subr.mxu0 0.0
    %288 = vmatpush1.msra.mxu0 0.0
    %289 = vmatprep.mubr.f32.mxu0 0.0
    %290 = vmatmul.mubr.f32.gmra.mrb[0].mxu0 %v152
    %v291 = vpop.f32.mrb[0].mxu0
    %v292 = vadd.f32 %v213, %v291
    %v293 = vpop.f32.mrb[0].mxu0
    %v294 = vadd.f32 %v217, %v293
    %295 = vmatprep.mubr.f32.mxu0 0.0
    %296 = vmatmul.mubr.f32.gmra.mrb[0].mxu0 %v153
    %v297 = vpop.f32.mrb[0].mxu0
    %v298 = vadd.f32 %v213, %v297
    %v299 = vpop.f32.mrb[0].mxu0
    %v300 = vadd.f32 %v217, %v299
    %301 = vmatprep.mubr.f32.mxu0 0.0
    %302 = vmatmul.mubr.f32.gmra.mrb[0].mxu0 %v154
    %v303 = vpop.f32.mrb[0].mxu0
    %v304 = vadd.f32 %v213, %v303
    %v305 = vpop.f32.mrb[0].mxu0
    %v306 = vadd.f32 %v217, %v305
    %307 = vmatprep.mubr.f32.mxu0 0.0
    %308 = vmatmul.mubr.f32.gmra.mrb[0].mxu0 %v155
    %v309 = vpop.f32.mrb[0].mxu0
    %v310 = vadd.f32 %v213, %v309
    %v311 = vpop.f32.mrb[0].mxu0
    %v312 = vadd.f32 %v217, %v311
    %313 = vmatprep.mubr.f32.mxu0 0.0
    %314 = vmatmul.mubr.f32.gmra.mrb[0].mxu0 %v156
    %v315 = vpop.f32.mrb[0].mxu0
    %v316 = vadd.f32 %v213, %v315
    %v317 = vpop.f32.mrb[0].mxu0
    %v318 = vadd.f32 %v217, %v317
    %319 = vmatprep.mubr.f32.mxu0 0.0
    %320 = vmatmul.mubr.f32.gmra.mrb[0].mxu0 %v157
    %v321 = vpop.f32.mrb[0].mxu0
    %v322 = vadd.f32 %v213, %v321
    %v323 = vpop.f32.mrb[0].mxu0
    %v324 = vadd.f32 %v217, %v323
    %325 = vmatprep.mubr.f32.mxu0 0.0
    %326 = vmatmul.mubr.f32.gmra.mrb[0].mxu0 %v158
    %v327 = vpop.f32.mrb[0].mxu0
    %v328 = vadd.f32 %v213, %v327
    %v329 = vpop.f32.mrb[0].mxu0
    %v330 = vadd.f32 %v217, %v329
    %331 = vmatprep.mubr.f32.mxu0 0.0
    %332 = vmatmul.mubr.f32.gmra.mrb[0].mxu0 %v159
    %v333 = vpop.f32.mrb[0].mxu0
    %v334 = vadd.f32 %v213, %v333
    %v335 = vpop.f32.mrb[0].mxu0
    %v336 = vadd.f32 %v217, %v335
    %337 = vdwg.mxu0
    %338 = vmatprep.subr.mxu0 0.0
    %339 = vmatpush1.msra.mxu0 %v162
    %340 = vmatprep.subr.mxu0 0.0
    %341 = vmatpush1.msra.mxu0 %v165
    %342 = vmatprep.subr.mxu0 0.0
    %343 = vmatpush1.msra.mxu0 %v168
    %344 = vmatprep.subr.mxu0 0.0
    %345 = vmatpush1.msra.mxu0 %v171
    %346 = vmatprep.subr.mxu0 0.0
    %347 = vmatpush1.msra.mxu0 %v174
    %348 = vmatprep.subr.mxu0 0.0
    %349 = vmatpush1.msra.mxu0 %v177
    %350 = vmatprep.subr.mxu0 0.0
    %351 = vmatpush1.msra.mxu0 %v180
    %352 = vmatprep.subr.mxu0 0.0
    %353 = vmatpush1.msra.mxu0 %v183
    %354 = vmatprep.subr.mxu0 0.0
    %355 = vmatpush1.msra.mxu0 %v186
    %356 = vmatprep.subr.mxu0 0.0
    %357 = vmatpush1.msra.mxu0 %v189
    %358 = vmatprep.subr.mxu0 0.0
    %359 = vmatpush1.msra.mxu0 %v192
    %360 = vmatprep.subr.mxu0 0.0
    %361 = vmatpush1.msra.mxu0 %v195
    %362 = vmatprep.subr.mxu0 0.0
    %363 = vmatpush1.msra.mxu0 %v198
    %364 = vmatprep.subr.mxu0 0.0
    %365 = vmatpush1.msra.mxu0 %v201
    %366 = vmatprep.subr.mxu0 0.0
    %367 = vmatpush1.msra.mxu0 %v204
    %368 = vmatprep.subr.mxu0 0.0
    %369 = vmatpush1.msra.mxu0 %v207
    %370 = vmatprep.subr.mxu0 0.0
    %371 = vmatpush1.msra.mxu0 0.0
    %372 = vmatprep.subr.mxu0 0.0
    %373 = vmatpush1.msra.mxu0 0.0
    %374 = vmatprep.subr.mxu0 0.0
    %375 = vmatpush1.msra.mxu0 0.0
    %376 = vmatprep.subr.mxu0 0.0
    %377 = vmatpush1.msra.mxu0 0.0
    %378 = vmatprep.subr.mxu0 0.0
    %379 = vmatpush1.msra.mxu0 0.0
    %380 = vmatprep.subr.mxu0 0.0
    %381 = vmatpush1.msra.mxu0 0.0
    %382 = vmatprep.subr.mxu0 0.0
    %383 = vmatpush1.msra.mxu0 0.0
    %384 = vmatprep.subr.mxu0 0.0
    %385 = vmatpush1.msra.mxu0 0.0
    %386 = vmatprep.subr.mxu0 0.0
    %387 = vmatpush1.msra.mxu0 0.0
    %388 = vmatprep.subr.mxu0 0.0
    %389 = vmatpush1.msra.mxu0 0.0
    %390 = vmatprep.subr.mxu0 0.0
    %391 = vmatpush1.msra.mxu0 0.0
    %392 = vmatprep.subr.mxu0 0.0
    %393 = vmatpush1.msra.mxu0 0.0
    %394 = vmatprep.subr.mxu0 0.0
    %395 = vmatpush1.msra.mxu0 0.0
    %396 = vmatprep.subr.mxu0 0.0
    %397 = vmatpush1.msra.mxu0 0.0
    %398 = vmatprep.subr.mxu0 0.0
    %399 = vmatpush1.msra.mxu0 0.0
    %400 = vmatprep.subr.mxu0 0.0
    %401 = vmatpush1.msra.mxu0 0.0
    %402 = vmatprep.mubr.f32.mxu0 0.0
    %403 = vmatmul.mubr.f32.gmra.mrb[0].mxu0 %v152
    %v404 = vpop.f32.mrb[0].mxu0
    %v405 = vadd.f32 %v221, %v404
    %v406 = vpop.f32.mrb[0].mxu0
    %407 = vmatprep.mubr.f32.mxu0 0.0
    %408 = vmatmul.mubr.f32.gmra.mrb[0].mxu0 %v153
    %v409 = vpop.f32.mrb[0].mxu0
    %v410 = vadd.f32 %v221, %v409
    %v411 = vpop.f32.mrb[0].mxu0
    %412 = vmatprep.mubr.f32.mxu0 0.0
    %413 = vmatmul.mubr.f32.gmra.mrb[0].mxu0 %v154
    %v414 = vpop.f32.mrb[0].mxu0
    %v415 = vadd.f32 %v221, %v414
    %v416 = vpop.f32.mrb[0].mxu0
    %417 = vmatprep.mubr.f32.mxu0 0.0
    %418 = vmatmul.mubr.f32.gmra.mrb[0].mxu0 %v155
    %v419 = vpop.f32.mrb[0].mxu0
    %v420 = vadd.f32 %v221, %v419
    %v421 = vpop.f32.mrb[0].mxu0
    %422 = vmatprep.mubr.f32.mxu0 0.0
    %423 = vmatmul.mubr.f32.gmra.mrb[0].mxu0 %v156
    %v424 = vpop.f32.mrb[0].mxu0
    %v425 = vadd.f32 %v221, %v424
    %v426 = vpop.f32.mrb[0].mxu0
    %427 = vmatprep.mubr.f32.mxu0 0.0
    %428 = vmatmul.mubr.f32.gmra.mrb[0].mxu0 %v157
    %v429 = vpop.f32.mrb[0].mxu0
    %v430 = vadd.f32 %v221, %v429
    %v431 = vpop.f32.mrb[0].mxu0
    %432 = vmatprep.mubr.f32.mxu0 0.0
    %433 = vmatmul.mubr.f32.gmra.mrb[0].mxu0 %v158
    %v434 = vpop.f32.mrb[0].mxu0
    %v435 = vadd.f32 %v221, %v434
    %v436 = vpop.f32.mrb[0].mxu0
    %437 = vmatprep.mubr.f32.mxu0 0.0
    %438 = vmatmul.mubr.f32.gmra.mrb[0].mxu0 %v159
    %v439 = vpop.f32.mrb[0].mxu0
    %v440 = vadd.f32 %v221, %v439
    %v441 = vpop.f32.mrb[0].mxu0
    %442 = vdwg.mxu0
    %443 = vst [vmem:[#allocation3] sm:$0xff] %v292
    %444 = vst [vmem:[#allocation3 + $0x8] sm:$0xff] %v294
    %445 = vst [vmem:[#allocation3 + $0x10] sm:$0xff] %v405
    %446 = vst [vmem:[#allocation3 + $0x18] sm:$0xff] %v298
    %447 = vst [vmem:[#allocation3 + $0x20] sm:$0xff] %v300
    %448 = vst [vmem:[#allocation3 + $0x28] sm:$0xff] %v410
    %449 = vst [vmem:[#allocation3 + $0x30] sm:$0xff] %v304
    %450 = vst [vmem:[#allocation3 + $0x38] sm:$0xff] %v306
    %451 = vst [vmem:[#allocation3 + $0x40] sm:$0xff] %v415
    %452 = vst [vmem:[#allocation3 + $0x48] sm:$0xff] %v310
    %453 = vst [vmem:[#allocation3 + $0x50] sm:$0xff] %v312
    %454 = vst [vmem:[#allocation3 + $0x58] sm:$0xff] %v420
    %455 = vst [vmem:[#allocation3 + $0x60] sm:$0xff] %v316
    %456 = vst [vmem:[#allocation3 + $0x68] sm:$0xff] %v318
    %457 = vst [vmem:[#allocation3 + $0x70] sm:$0xff] %v425
    %458 = vst [vmem:[#allocation3 + $0x78] sm:$0xff] %v322
    %459 = vst [vmem:[#allocation3 + $0x80] sm:$0xff] %v324
    %460 = vst [vmem:[#allocation3 + $0x88] sm:$0xff] %v430
    %461 = vst [vmem:[#allocation3 + $0x90] sm:$0xff] %v328
    %462 = vst [vmem:[#allocation3 + $0x98] sm:$0xff] %v330
    %463 = vst [vmem:[#allocation3 + $0xa0] sm:$0xff] %v435
    %464 = vst [vmem:[#allocation3 + $0xa8] sm:$0xff] %v334
    %465 = vst [vmem:[#allocation3 + $0xb0] sm:$0xff] %v336
    %466 = vst [vmem:[#allocation3 + $0xb8] sm:$0xff] %v440
    %v467 = vld [vmem:[%s4] sm:$0x1]
    %v469 = vlaneseq
    %v470 = vshrl.u32 %v469, 7
    %v471 = vsub.s32 0, %v470
    %v472 = vrot.slane %v467, %v471
    %v474 = vld [vmem:[#allocation2] sm:$0xff]
    %s475 = smul.u32 0, 3
    %s476 = smul.addr %s475, 8
    %s477 = scalar_lea.vmem [#allocation3], %s476
    %v478 = vld [vmem:[%s477] sm:$0xff]
    %v479 = vld [vmem:[%s477 + $0x8] sm:$0xff]
    %v480 = vld [vmem:[%s477 + $0x10] sm:$0xff]
    %v481 = vld [vmem:[#allocation10] sm:$0xff]
    %v482 = vld [vmem:[#allocation10 + $0x8] sm:$0xff]
    %v483 = vld [vmem:[#allocation10 + $0x10] sm:$0xff]
    %v484 = vld [vmem:[#allocation10 + $0x18] sm:$0xff]
    %v485 = vld [vmem:[#allocation10 + $0x20] sm:$0xff]
    %v486 = vld [vmem:[#allocation10 + $0x28] sm:$0xff]
    %v487 = vld [vmem:[#allocation10 + $0x30] sm:$0xff]
    %v488 = vld [vmem:[#allocation10 + $0x38] sm:$0xff]
    %v489 = vld [vmem:[#allocation10 + $0x40] sm:$0xff]
    %v490 = vld [vmem:[#allocation10 + $0x48] sm:$0xff]
    %v491 = vld [vmem:[#allocation10 + $0x50] sm:$0xff]
    %v492 = vld [vmem:[#allocation10 + $0x58] sm:$0xff]
    %v493 = vld [vmem:[#allocation10 + $0x60] sm:$0xff]
    %v494 = vld [vmem:[#allocation10 + $0x68] sm:$0xff]
    %v495 = vld [vmem:[#allocation10 + $0x70] sm:$0xff]
    %v496 = vld [vmem:[#allocation10 + $0x78] sm:$0xff]
    %v497 = vld [vmem:[#allocation10 + $0x80] sm:$0xff]
    %v498 = vld [vmem:[#allocation10 + $0x88] sm:$0xff]
    %v499 = vld [vmem:[#allocation10 + $0x90] sm:$0xff]
    %v500 = vld [vmem:[#allocation10 + $0x98] sm:$0xff]
    %v501 = vld [vmem:[#allocation10 + $0xa0] sm:$0xff]
    %v502 = vld [vmem:[#allocation10 + $0xa8] sm:$0xff]
    %v503 = vld [vmem:[#allocation10 + $0xb0] sm:$0xff]
    %v504 = vld [vmem:[#allocation10 + $0xb8] sm:$0xff]
    %v505 = vld [vmem:[#allocation10 + $0xc0] sm:$0xff]
    %v506 = vld [vmem:[#allocation10 + $0xc8] sm:$0xff]
    %v507 = vld [vmem:[#allocation10 + $0xd0] sm:$0xff]
    %v508 = vld [vmem:[#allocation10 + $0xd8] sm:$0xff]
    %v509 = vld [vmem:[#allocation10 + $0xe0] sm:$0xff]
    %v510 = vld [vmem:[#allocation10 + $0xe8] sm:$0xff]
    %v511 = vld [vmem:[#allocation10 + $0xf0] sm:$0xff]
    %v512 = vld [vmem:[#allocation10 + $0xf8] sm:$0xff]
    %v513 = vld [vmem:[#allocation10 + $0x100] sm:$0xff]
    %v514 = vld [vmem:[#allocation10 + $0x108] sm:$0xff]
    %v515 = vld [vmem:[#allocation10 + $0x110] sm:$0xff]
    %v516 = vld [vmem:[#allocation10 + $0x118] sm:$0xff]
    %v517 = vld [vmem:[#allocation10 + $0x120] sm:$0xff]
    %v518 = vld [vmem:[#allocation10 + $0x128] sm:$0xff]
    %v519 = vld [vmem:[#allocation10 + $0x130] sm:$0xff]
    %v520 = vld [vmem:[#allocation10 + $0x138] sm:$0xff]
    %v521 = vld [vmem:[#allocation10 + $0x140] sm:$0xff]
    %v522 = vld [vmem:[#allocation10 + $0x148] sm:$0xff]
    %v523 = vld [vmem:[#allocation10 + $0x150] sm:$0xff]
    %v524 = vld [vmem:[#allocation10 + $0x158] sm:$0xff]
    %v525 = vld [vmem:[#allocation10 + $0x160] sm:$0xff]
    %v526 = vld [vmem:[#allocation10 + $0x168] sm:$0xff]
    %v527 = vld [vmem:[#allocation10 + $0x170] sm:$0xff]
    %v528 = vld [vmem:[#allocation10 + $0x178] sm:$0xff]
    %529 = vmatprep.subr.mxu0 %v482
    %530 = vmatpush1.msra.mxu0 %v481
    %531 = vmatprep.subr.mxu0 %v485
    %532 = vmatpush1.msra.mxu0 %v484
    %533 = vmatprep.subr.mxu0 %v488
    %534 = vmatpush1.msra.mxu0 %v487
    %535 = vmatprep.subr.mxu0 %v491
    %536 = vmatpush1.msra.mxu0 %v490
    %537 = vmatprep.subr.mxu0 %v494
    %538 = vmatpush1.msra.mxu0 %v493
    %539 = vmatprep.subr.mxu0 %v497
    %540 = vmatpush1.msra.mxu0 %v496
    %541 = vmatprep.subr.mxu0 %v500
    %542 = vmatpush1.msra.mxu0 %v499
    %543 = vmatprep.subr.mxu0 %v503
    %544 = vmatpush1.msra.mxu0 %v502
    %545 = vmatprep.subr.mxu0 %v506
    %546 = vmatpush1.msra.mxu0 %v505
    %547 = vmatprep.subr.mxu0 %v509
    %548 = vmatpush1.msra.mxu0 %v508
    %549 = vmatprep.subr.mxu0 %v512
    %550 = vmatpush1.msra.mxu0 %v511
    %551 = vmatprep.subr.mxu0 %v515
    %552 = vmatpush1.msra.mxu0 %v514
    %553 = vmatprep.subr.mxu0 %v518
    %554 = vmatpush1.msra.mxu0 %v517
    %555 = vmatprep.subr.mxu0 %v521
    %556 = vmatpush1.msra.mxu0 %v520
    %557 = vmatprep.subr.mxu0 %v524
    %558 = vmatpush1.msra.mxu0 %v523
    %559 = vmatprep.subr.mxu0 %v527
    %560 = vmatpush1.msra.mxu0 %v526
    %561 = vmatprep.subr.mxu0 0.0
    %562 = vmatpush1.msra.mxu0 0.0
    %563 = vmatprep.subr.mxu0 0.0
    %564 = vmatpush1.msra.mxu0 0.0
    %565 = vmatprep.subr.mxu0 0.0
    %566 = vmatpush1.msra.mxu0 0.0
    %567 = vmatprep.subr.mxu0 0.0
    %568 = vmatpush1.msra.mxu0 0.0
    %569 = vmatprep.subr.mxu0 0.0
    %570 = vmatpush1.msra.mxu0 0.0
    %571 = vmatprep.subr.mxu0 0.0
    %572 = vmatpush1.msra.mxu0 0.0
    %573 = vmatprep.subr.mxu0 0.0
    %574 = vmatpush1.msra.mxu0 0.0
    %575 = vmatprep.subr.mxu0 0.0
    %576 = vmatpush1.msra.mxu0 0.0
    %577 = vmatprep.subr.mxu0 0.0
    %578 = vmatpush1.msra.mxu0 0.0
    %579 = vmatprep.subr.mxu0 0.0
    %580 = vmatpush1.msra.mxu0 0.0
    %581 = vmatprep.subr.mxu0 0.0
    %582 = vmatpush1.msra.mxu0 0.0
    %583 = vmatprep.subr.mxu0 0.0
    %584 = vmatpush1.msra.mxu0 0.0
    %585 = vmatprep.subr.mxu0 0.0
    %586 = vmatpush1.msra.mxu0 0.0
    %587 = vmatprep.subr.mxu0 0.0
    %588 = vmatpush1.msra.mxu0 0.0
    %589 = vmatprep.subr.mxu0 0.0
    %590 = vmatpush1.msra.mxu0 0.0
    %591 = vmatprep.subr.mxu0 0.0
    %592 = vmatpush1.msra.mxu0 0.0
    %593 = vmatprep.mubr.f32.mxu0 0.0
    %594 = vmatmul.mubr.f32.gmra.mrb[0].mxu0 %v474
    %v595 = vpop.f32.mrb[0].mxu0
    %v596 = vadd.f32 0.0, %v595
    %v597 = vpop.f32.mrb[0].mxu0
    %v598 = vadd.f32 0.0, %v597
    %599 = vdwg.mxu0
    %600 = vmatprep.subr.mxu0 0.0
    %601 = vmatpush1.msra.mxu0 %v483
    %602 = vmatprep.subr.mxu0 0.0
    %603 = vmatpush1.msra.mxu0 %v486
    %604 = vmatprep.subr.mxu0 0.0
    %605 = vmatpush1.msra.mxu0 %v489
    %606 = vmatprep.subr.mxu0 0.0
    %607 = vmatpush1.msra.mxu0 %v492
    %608 = vmatprep.subr.mxu0 0.0
    %609 = vmatpush1.msra.mxu0 %v495
    %610 = vmatprep.subr.mxu0 0.0
    %611 = vmatpush1.msra.mxu0 %v498
    %612 = vmatprep.subr.mxu0 0.0
    %613 = vmatpush1.msra.mxu0 %v501
    %614 = vmatprep.subr.mxu0 0.0
    %615 = vmatpush1.msra.mxu0 %v504
    %616 = vmatprep.subr.mxu0 0.0
    %617 = vmatpush1.msra.mxu0 %v507
    %618 = vmatprep.subr.mxu0 0.0
    %619 = vmatpush1.msra.mxu0 %v510
    %620 = vmatprep.subr.mxu0 0.0
    %621 = vmatpush1.msra.mxu0 %v513
    %622 = vmatprep.subr.mxu0 0.0
    %623 = vmatpush1.msra.mxu0 %v516
    %624 = vmatprep.subr.mxu0 0.0
    %625 = vmatpush1.msra.mxu0 %v519
    %626 = vmatprep.subr.mxu0 0.0
    %627 = vmatpush1.msra.mxu0 %v522
    %628 = vmatprep.subr.mxu0 0.0
    %629 = vmatpush1.msra.mxu0 %v525
    %630 = vmatprep.subr.mxu0 0.0
    %631 = vmatpush1.msra.mxu0 %v528
    %632 = vmatprep.subr.mxu0 0.0
    %633 = vmatpush1.msra.mxu0 0.0
    %634 = vmatprep.subr.mxu0 0.0
    %635 = vmatpush1.msra.mxu0 0.0
    %636 = vmatprep.subr.mxu0 0.0
    %637 = vmatpush1.msra.mxu0 0.0
    %638 = vmatprep.subr.mxu0 0.0
    %639 = vmatpush1.msra.mxu0 0.0
    %640 = vmatprep.subr.mxu0 0.0
    %641 = vmatpush1.msra.mxu0 0.0
    %642 = vmatprep.subr.mxu0 0.0
    %643 = vmatpush1.msra.mxu0 0.0
    %644 = vmatprep.subr.mxu0 0.0
    %645 = vmatpush1.msra.mxu0 0.0
    %646 = vmatprep.subr.mxu0 0.0
    %647 = vmatpush1.msra.mxu0 0.0
    %648 = vmatprep.subr.mxu0 0.0
    %649 = vmatpush1.msra.mxu0 0.0
    %650 = vmatprep.subr.mxu0 0.0
    %651 = vmatpush1.msra.mxu0 0.0
    %652 = vmatprep.subr.mxu0 0.0
    %653 = vmatpush1.msra.mxu0 0.0
    %654 = vmatprep.subr.mxu0 0.0
    %655 = vmatpush1.msra.mxu0 0.0
    %656 = vmatprep.subr.mxu0 0.0
    %657 = vmatpush1.msra.mxu0 0.0
    %658 = vmatprep.subr.mxu0 0.0
    %659 = vmatpush1.msra.mxu0 0.0
    %660 = vmatprep.subr.mxu0 0.0
    %661 = vmatpush1.msra.mxu0 0.0
    %662 = vmatprep.subr.mxu0 0.0
    %663 = vmatpush1.msra.mxu0 0.0
    %664 = vmatprep.mubr.f32.mxu0 0.0
    %665 = vmatmul.mubr.f32.gmra.mrb[0].mxu0 %v474
    %v666 = vpop.f32.mrb[0].mxu0
    %v667 = vadd.f32 0.0, %v666
    %v668 = vpop.f32.mrb[0].mxu0
    %669 = vdwg.mxu0
    %v670 = vadd.f32 %v478, %v596
    %v671 = vxor.u32 %v670, 2147483648
    %v672 = vmul.f32 %v671, 1.442695
    %v673 = vpow.pop %v672
    %v674 = vadd.f32 %v673, 1.0
    %v675 = vrcp.pop %v674
    %v676 = vmul.f32 1.0, %v675
    %v677 = vadd.f32 %v479, %v598
    %v678 = vxor.u32 %v677, 2147483648
    %v679 = vmul.f32 %v678, 1.442695
    %v680 = vpow.pop %v679
    %v681 = vadd.f32 %v680, 1.0
    %v682 = vrcp.pop %v681
    %v683 = vmul.f32 1.0, %v682
    %v684 = vadd.f32 %v667, %v472
    %v685 = vmul.f32 %v676, %v684
    %v686 = vadd.f32 %v480, %v685
    %v687 = vtanh.pop %v686
    %v688 = vsub.f32 %v474, %v687
    %v689 = vmul.f32 %v683, %v688
    %v690 = vadd.f32 %v687, %v689
    %691 = vst [vmem:[#allocation4] sm:$0xff] %v690
    %s692 = smul.u32 1, 3
    %s693 = smul.addr %s692, 8
    %s694 = scalar_lea.vmem [#allocation3], %s693
    %v695 = vld [vmem:[%s694] sm:$0xff]
    %v696 = vld [vmem:[%s694 + $0x8] sm:$0xff]
    %v697 = vld [vmem:[%s694 + $0x10] sm:$0xff]
    %v698 = vld [vmem:[#allocation10] sm:$0xff]
    %v699 = vld [vmem:[#allocation10 + $0x8] sm:$0xff]
    %v700 = vld [vmem:[#allocation10 + $0x10] sm:$0xff]
    %v701 = vld [vmem:[#allocation10 + $0x18] sm:$0xff]
    %v702 = vld [vmem:[#allocation10 + $0x20] sm:$0xff]
    %v703 = vld [vmem:[#allocation10 + $0x28] sm:$0xff]
    %v704 = vld [vmem:[#allocation10 + $0x30] sm:$0xff]
    %v705 = vld [vmem:[#allocation10 + $0x38] sm:$0xff]
    %v706 = vld [vmem:[#allocation10 + $0x40] sm:$0xff]
    %v707 = vld [vmem:[#allocation10 + $0x48] sm:$0xff]
    %v708 = vld [vmem:[#allocation10 + $0x50] sm:$0xff]
    %v709 = vld [vmem:[#allocation10 + $0x58] sm:$0xff]
    %v710 = vld [vmem:[#allocation10 + $0x60] sm:$0xff]
    %v711 = vld [vmem:[#allocation10 + $0x68] sm:$0xff]
    %v712 = vld [vmem:[#allocation10 + $0x70] sm:$0xff]
    %v713 = vld [vmem:[#allocation10 + $0x78] sm:$0xff]
    %v714 = vld [vmem:[#allocation10 + $0x80] sm:$0xff]
    %v715 = vld [vmem:[#allocation10 + $0x88] sm:$0xff]
    %v716 = vld [vmem:[#allocation10 + $0x90] sm:$0xff]
    %v717 = vld [vmem:[#allocation10 + $0x98] sm:$0xff]
    %v718 = vld [vmem:[#allocation10 + $0xa0] sm:$0xff]
    %v719 = vld [vmem:[#allocation10 + $0xa8] sm:$0xff]
    %v720 = vld [vmem:[#allocation10 + $0xb0] sm:$0xff]
    %v721 = vld [vmem:[#allocation10 + $0xb8] sm:$0xff]
    %v722 = vld [vmem:[#allocation10 + $0xc0] sm:$0xff]
    %v723 = vld [vmem:[#allocation10 + $0xc8] sm:$0xff]
    %v724 = vld [vmem:[#allocation10 + $0xd0] sm:$0xff]
    %v725 = vld [vmem:[#allocation10 + $0xd8] sm:$0xff]
    %v726 = vld [vmem:[#allocation10 + $0xe0] sm:$0xff]
    %v727 = vld [vmem:[#allocation10 + $0xe8] sm:$0xff]
    %v728 = vld [vmem:[#allocation10 + $0xf0] sm:$0xff]
    %v729 = vld [vmem:[#allocation10 + $0xf8] sm:$0xff]
    %v730 = vld [vmem:[#allocation10 + $0x100] sm:$0xff]
    %v731 = vld [vmem:[#allocation10 + $0x108] sm:$0xff]
    %v732 = vld [vmem:[#allocation10 + $0x110] sm:$0xff]
    %v733 = vld [vmem:[#allocation10 + $0x118] sm:$0xff]
    %v734 = vld [vmem:[#allocation10 + $0x120] sm:$0xff]
    %v735 = vld [vmem:[#allocation10 + $0x128] sm:$0xff]
    %v736 = vld [vmem:[#allocation10 + $0x130] sm:$0xff]
    %v737 = vld [vmem:[#allocation10 + $0x138] sm:$0xff]
    %v738 = vld [vmem:[#allocation10 + $0x140] sm:$0xff]
    %v739 = vld [vmem:[#allocation10 + $0x148] sm:$0xff]
    %v740 = vld [vmem:[#allocation10 + $0x150] sm:$0xff]
    %v741 = vld [vmem:[#allocation10 + $0x158] sm:$0xff]
    %v742 = vld [vmem:[#allocation10 + $0x160] sm:$0xff]
    %v743 = vld [vmem:[#allocation10 + $0x168] sm:$0xff]
    %v744 = vld [vmem:[#allocation10 + $0x170] sm:$0xff]
    %v745 = vld [vmem:[#allocation10 + $0x178] sm:$0xff]
    %746 = vmatprep.subr.mxu0 %v699
    %747 = vmatpush1.msra.mxu0 %v698
    %748 = vmatprep.subr.mxu0 %v702
    %749 = vmatpush1.msra.mxu0 %v701
    %750 = vmatprep.subr.mxu0 %v705
    %751 = vmatpush1.msra.mxu0 %v704
    %752 = vmatprep.subr.mxu0 %v708
    %753 = vmatpush1.msra.mxu0 %v707
    %754 = vmatprep.subr.mxu0 %v711
    %755 = vmatpush1.msra.mxu0 %v710
    %756 = vmatprep.subr.mxu0 %v714
    %757 = vmatpush1.msra.mxu0 %v713
    %758 = vmatprep.subr.mxu0 %v717
    %759 = vmatpush1.msra.mxu0 %v716
    %760 = vmatprep.subr.mxu0 %v720
    %761 = vmatpush1.msra.mxu0 %v719
    %762 = vmatprep.subr.mxu0 %v723
    %763 = vmatpush1.msra.mxu0 %v722
    %764 = vmatprep.subr.mxu0 %v726
    %765 = vmatpush1.msra.mxu0 %v725
    %766 = vmatprep.subr.mxu0 %v729
    %767 = vmatpush1.msra.mxu0 %v728
    %768 = vmatprep.subr.mxu0 %v732
    %769 = vmatpush1.msra.mxu0 %v731
    %770 = vmatprep.subr.mxu0 %v735
    %771 = vmatpush1.msra.mxu0 %v734
    %772 = vmatprep.subr.mxu0 %v738
    %773 = vmatpush1.msra.mxu0 %v737
    %774 = vmatprep.subr.mxu0 %v741
    %775 = vmatpush1.msra.mxu0 %v740
    %776 = vmatprep.subr.mxu0 %v744
    %777 = vmatpush1.msra.mxu0 %v743
    %778 = vmatprep.subr.mxu0 0.0
    %779 = vmatpush1.msra.mxu0 0.0
    %780 = vmatprep.subr.mxu0 0.0
    %781 = vmatpush1.msra.mxu0 0.0
    %782 = vmatprep.subr.mxu0 0.0
    %783 = vmatpush1.msra.mxu0 0.0
    %784 = vmatprep.subr.mxu0 0.0
    %785 = vmatpush1.msra.mxu0 0.0
    %786 = vmatprep.subr.mxu0 0.0
    %787 = vmatpush1.msra.mxu0 0.0
    %788 = vmatprep.subr.mxu0 0.0
    %789 = vmatpush1.msra.mxu0 0.0
    %790 = vmatprep.subr.mxu0 0.0
    %791 = vmatpush1.msra.mxu0 0.0
    %792 = vmatprep.subr.mxu0 0.0
    %793 = vmatpush1.msra.mxu0 0.0
    %794 = vmatprep.subr.mxu0 0.0
    %795 = vmatpush1.msra.mxu0 0.0
    %796 = vmatprep.subr.mxu0 0.0
    %797 = vmatpush1.msra.mxu0 0.0
    %798 = vmatprep.subr.mxu0 0.0
    %799 = vmatpush1.msra.mxu0 0.0
    %800 = vmatprep.subr.mxu0 0.0
    %801 = vmatpush1.msra.mxu0 0.0
    %802 = vmatprep.subr.mxu0 0.0
    %803 = vmatpush1.msra.mxu0 0.0
    %804 = vmatprep.subr.mxu0 0.0
    %805 = vmatpush1.msra.mxu0 0.0
    %806 = vmatprep.subr.mxu0 0.0
    %807 = vmatpush1.msra.mxu0 0.0
    %808 = vmatprep.subr.mxu0 0.0
    %809 = vmatpush1.msra.mxu0 0.0
    %810 = vmatprep.mubr.f32.mxu0 0.0
    %811 = vmatmul.mubr.f32.gmra.mrb[0].mxu0 %v690
    %v812 = vpop.f32.mrb[0].mxu0
    %v813 = vadd.f32 0.0, %v812
    %v814 = vpop.f32.mrb[0].mxu0
    %v815 = vadd.f32 0.0, %v814
    %816 = vdwg.mxu0
    %817 = vmatprep.subr.mxu0 0.0
    %818 = vmatpush1.msra.mxu0 %v700
    %819 = vmatprep.subr.mxu0 0.0
    %820 = vmatpush1.msra.mxu0 %v703
    %821 = vmatprep.subr.mxu0 0.0
    %822 = vmatpush1.msra.mxu0 %v706
    %823 = vmatprep.subr.mxu0 0.0
    %824 = vmatpush1.msra.mxu0 %v709
    %825 = vmatprep.subr.mxu0 0.0
    %826 = vmatpush1.msra.mxu0 %v712
    %827 = vmatprep.subr.mxu0 0.0
    %828 = vmatpush1.msra.mxu0 %v715
    %829 = vmatprep.subr.mxu0 0.0
    %830 = vmatpush1.msra.mxu0 %v718
    %831 = vmatprep.subr.mxu0 0.0
    %832 = vmatpush1.msra.mxu0 %v721
    %833 = vmatprep.subr.mxu0 0.0
    %834 = vmatpush1.msra.mxu0 %v724
    %835 = vmatprep.subr.mxu0 0.0
    %836 = vmatpush1.msra.mxu0 %v727
    %837 = vmatprep.subr.mxu0 0.0
    %838 = vmatpush1.msra.mxu0 %v730
    %839 = vmatprep.subr.mxu0 0.0
    %840 = vmatpush1.msra.mxu0 %v733
    %841 = vmatprep.subr.mxu0 0.0
    %842 = vmatpush1.msra.mxu0 %v736
    %843 = vmatprep.subr.mxu0 0.0
    %844 = vmatpush1.msra.mxu0 %v739
    %845 = vmatprep.subr.mxu0 0.0
    %846 = vmatpush1.msra.mxu0 %v742
    %847 = vmatprep.subr.mxu0 0.0
    %848 = vmatpush1.msra.mxu0 %v745
    %849 = vmatprep.subr.mxu0 0.0
    %850 = vmatpush1.msra.mxu0 0.0
    %851 = vmatprep.subr.mxu0 0.0
    %852 = vmatpush1.msra.mxu0 0.0
    %853 = vmatprep.subr.mxu0 0.0
    %854 = vmatpush1.msra.mxu0 0.0
    %855 = vmatprep.subr.mxu0 0.0
    %856 = vmatpush1.msra.mxu0 0.0
    %857 = vmatprep.subr.mxu0 0.0
    %858 = vmatpush1.msra.mxu0 0.0
    %859 = vmatprep.subr.mxu0 0.0
    %860 = vmatpush1.msra.mxu0 0.0
    %861 = vmatprep.subr.mxu0 0.0
    %862 = vmatpush1.msra.mxu0 0.0
    %863 = vmatprep.subr.mxu0 0.0
    %864 = vmatpush1.msra.mxu0 0.0
    %865 = vmatprep.subr.mxu0 0.0
    %866 = vmatpush1.msra.mxu0 0.0
    %867 = vmatprep.subr.mxu0 0.0
    %868 = vmatpush1.msra.mxu0 0.0
    %869 = vmatprep.subr.mxu0 0.0
    %870 = vmatpush1.msra.mxu0 0.0
    %871 = vmatprep.subr.mxu0 0.0
    %872 = vmatpush1.msra.mxu0 0.0
    %873 = vmatprep.subr.mxu0 0.0
    %874 = vmatpush1.msra.mxu0 0.0
    %875 = vmatprep.subr.mxu0 0.0
    %876 = vmatpush1.msra.mxu0 0.0
    %877 = vmatprep.subr.mxu0 0.0
    %878 = vmatpush1.msra.mxu0 0.0
    %879 = vmatprep.subr.mxu0 0.0
    %880 = vmatpush1.msra.mxu0 0.0
    %881 = vmatprep.mubr.f32.mxu0 0.0
    %882 = vmatmul.mubr.f32.gmra.mrb[0].mxu0 %v690
    %v883 = vpop.f32.mrb[0].mxu0
    %v884 = vadd.f32 0.0, %v883
    %v885 = vpop.f32.mrb[0].mxu0
    %886 = vdwg.mxu0
    %v887 = vadd.f32 %v695, %v813
    %v888 = vxor.u32 %v887, 2147483648
    %v889 = vmul.f32 %v888, 1.442695
    %v890 = vpow.pop %v889
    %v891 = vadd.f32 %v890, 1.0
    %v892 = vrcp.pop %v891
    %v893 = vmul.f32 1.0, %v892
    %v894 = vadd.f32 %v696, %v815
    %v895 = vxor.u32 %v894, 2147483648
    %v896 = vmul.f32 %v895, 1.442695
    %v897 = vpow.pop %v896
    %v898 = vadd.f32 %v897, 1.0
    %v899 = vrcp.pop %v898
    %v900 = vmul.f32 1.0, %v899
    %v901 = vadd.f32 %v884, %v472
    %v902 = vmul.f32 %v893, %v901
    %v903 = vadd.f32 %v697, %v902
    %v904 = vtanh.pop %v903
    %v905 = vsub.f32 %v690, %v904
    %v906 = vmul.f32 %v900, %v905
    %v907 = vadd.f32 %v904, %v906
    %s908 = scalar_lea.vmem [#allocation4], 8
    %909 = vst [vmem:[%s908] sm:$0xff] %v907
    %s910 = smul.u32 2, 3
    %s911 = smul.addr %s910, 8
    %s912 = scalar_lea.vmem [#allocation3], %s911
    %v913 = vld [vmem:[%s912] sm:$0xff]
    %v914 = vld [vmem:[%s912 + $0x8] sm:$0xff]
    %v915 = vld [vmem:[%s912 + $0x10] sm:$0xff]
    %v916 = vld [vmem:[#allocation10] sm:$0xff]
    %v917 = vld [vmem:[#allocation10 + $0x8] sm:$0xff]
    %v918 = vld [vmem:[#allocation10 + $0x10] sm:$0xff]
    %v919 = vld [vmem:[#allocation10 + $0x18] sm:$0xff]
    %v920 = vld [vmem:[#allocation10 + $0x20] sm:$0xff]
    %v921 = vld [vmem:[#allocation10 + $0x28] sm:$0xff]
    %v922 = vld [vmem:[#allocation10 + $0x30] sm:$0xff]
    %v923 = vld [vmem:[#allocation10 + $0x38] sm:$0xff]
    %v924 = vld [vmem:[#allocation10 + $0x40] sm:$0xff]
    %v925 = vld [vmem:[#allocation10 + $0x48] sm:$0xff]
    %v926 = vld [vmem:[#allocation10 + $0x50] sm:$0xff]
    %v927 = vld [vmem:[#allocation10 + $0x58] sm:$0xff]
    %v928 = vld [vmem:[#allocation10 + $0x60] sm:$0xff]
    %v929 = vld [vmem:[#allocation10 + $0x68] sm:$0xff]
    %v930 = vld [vmem:[#allocation10 + $0x70] sm:$0xff]
    %v931 = vld [vmem:[#allocation10 + $0x78] sm:$0xff]
    %v932 = vld [vmem:[#allocation10 + $0x80] sm:$0xff]
    %v933 = vld [vmem:[#allocation10 + $0x88] sm:$0xff]
    %v934 = vld [vmem:[#allocation10 + $0x90] sm:$0xff]
    %v935 = vld [vmem:[#allocation10 + $0x98] sm:$0xff]
    %v936 = vld [vmem:[#allocation10 + $0xa0] sm:$0xff]
    %v937 = vld [vmem:[#allocation10 + $0xa8] sm:$0xff]
    %v938 = vld [vmem:[#allocation10 + $0xb0] sm:$0xff]
    %v939 = vld [vmem:[#allocation10 + $0xb8] sm:$0xff]
    %v940 = vld [vmem:[#allocation10 + $0xc0] sm:$0xff]
    %v941 = vld [vmem:[#allocation10 + $0xc8] sm:$0xff]
    %v942 = vld [vmem:[#allocation10 + $0xd0] sm:$0xff]
    %v943 = vld [vmem:[#allocation10 + $0xd8] sm:$0xff]
    %v944 = vld [vmem:[#allocation10 + $0xe0] sm:$0xff]
    %v945 = vld [vmem:[#allocation10 + $0xe8] sm:$0xff]
    %v946 = vld [vmem:[#allocation10 + $0xf0] sm:$0xff]
    %v947 = vld [vmem:[#allocation10 + $0xf8] sm:$0xff]
    %v948 = vld [vmem:[#allocation10 + $0x100] sm:$0xff]
    %v949 = vld [vmem:[#allocation10 + $0x108] sm:$0xff]
    %v950 = vld [vmem:[#allocation10 + $0x110] sm:$0xff]
    %v951 = vld [vmem:[#allocation10 + $0x118] sm:$0xff]
    %v952 = vld [vmem:[#allocation10 + $0x120] sm:$0xff]
    %v953 = vld [vmem:[#allocation10 + $0x128] sm:$0xff]
    %v954 = vld [vmem:[#allocation10 + $0x130] sm:$0xff]
    %v955 = vld [vmem:[#allocation10 + $0x138] sm:$0xff]
    %v956 = vld [vmem:[#allocation10 + $0x140] sm:$0xff]
    %v957 = vld [vmem:[#allocation10 + $0x148] sm:$0xff]
    %v958 = vld [vmem:[#allocation10 + $0x150] sm:$0xff]
    %v959 = vld [vmem:[#allocation10 + $0x158] sm:$0xff]
    %v960 = vld [vmem:[#allocation10 + $0x160] sm:$0xff]
    %v961 = vld [vmem:[#allocation10 + $0x168] sm:$0xff]
    %v962 = vld [vmem:[#allocation10 + $0x170] sm:$0xff]
    %v963 = vld [vmem:[#allocation10 + $0x178] sm:$0xff]
    %964 = vmatprep.subr.mxu0 %v917
    %965 = vmatpush1.msra.mxu0 %v916
    %966 = vmatprep.subr.mxu0 %v920
    %967 = vmatpush1.msra.mxu0 %v919
    %968 = vmatprep.subr.mxu0 %v923
    %969 = vmatpush1.msra.mxu0 %v922
    %970 = vmatprep.subr.mxu0 %v926
    %971 = vmatpush1.msra.mxu0 %v925
    %972 = vmatprep.subr.mxu0 %v929
    %973 = vmatpush1.msra.mxu0 %v928
    %974 = vmatprep.subr.mxu0 %v932
    %975 = vmatpush1.msra.mxu0 %v931
    %976 = vmatprep.subr.mxu0 %v935
    %977 = vmatpush1.msra.mxu0 %v934
    %978 = vmatprep.subr.mxu0 %v938
    %979 = vmatpush1.msra.mxu0 %v937
    %980 = vmatprep.subr.mxu0 %v941
    %981 = vmatpush1.msra.mxu0 %v940
    %982 = vmatprep.subr.mxu0 %v944
    %983 = vmatpush1.msra.mxu0 %v943
    %984 = vmatprep.subr.mxu0 %v947
    %985 = vmatpush1.msra.mxu0 %v946
    %986 = vmatprep.subr.mxu0 %v950
    %987 = vmatpush1.msra.mxu0 %v949
    %988 = vmatprep.subr.mxu0 %v953
    %989 = vmatpush1.msra.mxu0 %v952
    %990 = vmatprep.subr.mxu0 %v956
    %991 = vmatpush1.msra.mxu0 %v955
    %992 = vmatprep.subr.mxu0 %v959
    %993 = vmatpush1.msra.mxu0 %v958
    %994 = vmatprep.subr.mxu0 %v962
    %995 = vmatpush1.msra.mxu0 %v961
    %996 = vmatprep.subr.mxu0 0.0
    %997 = vmatpush1.msra.mxu0 0.0
    %998 = vmatprep.subr.mxu0 0.0
    %999 = vmatpush1.msra.mxu0 0.0
    %1000 = vmatprep.subr.mxu0 0.0
    %1001 = vmatpush1.msra.mxu0 0.0
    %1002 = vmatprep.subr.mxu0 0.0
    %1003 = vmatpush1.msra.mxu0 0.0
    %1004 = vmatprep.subr.mxu0 0.0
    %1005 = vmatpush1.msra.mxu0 0.0
    %1006 = vmatprep.subr.mxu0 0.0
    %1007 = vmatpush1.msra.mxu0 0.0
    %1008 = vmatprep.subr.mxu0 0.0
    %1009 = vmatpush1.msra.mxu0 0.0
    %1010 = vmatprep.subr.mxu0 0.0
    %1011 = vmatpush1.msra.mxu0 0.0
    %1012 = vmatprep.subr.mxu0 0.0
    %1013 = vmatpush1.msra.mxu0 0.0
    %1014 = vmatprep.subr.mxu0 0.0
    %1015 = vmatpush1.msra.mxu0 0.0
    %1016 = vmatprep.subr.mxu0 0.0
    %1017 = vmatpush1.msra.mxu0 0.0
    %1018 = vmatprep.subr.mxu0 0.0
    %1019 = vmatpush1.msra.mxu0 0.0
    %1020 = vmatprep.subr.mxu0 0.0
    %1021 = vmatpush1.msra.mxu0 0.0
    %1022 = vmatprep.subr.mxu0 0.0
    %1023 = vmatpush1.msra.mxu0 0.0
    %1024 = vmatprep.subr.mxu0 0.0
    %1025 = vmatpush1.msra.mxu0 0.0
    %1026 = vmatprep.subr.mxu0 0.0
    %1027 = vmatpush1.msra.mxu0 0.0
    %1028 = vmatprep.mubr.f32.mxu0 0.0
    %1029 = vmatmul.mubr.f32.gmra.mrb[0].mxu0 %v907
    %v1030 = vpop.f32.mrb[0].mxu0
    %v1031 = vadd.f32 0.0, %v1030
    %v1032 = vpop.f32.mrb[0].mxu0
    %v1033 = vadd.f32 0.0, %v1032
    %1034 = vdwg.mxu0
    %1035 = vmatprep.subr.mxu0 0.0
    %1036 = vmatpush1.msra.mxu0 %v918
    %1037 = vmatprep.subr.mxu0 0.0
    %1038 = vmatpush1.msra.mxu0 %v921
    %1039 = vmatprep.subr.mxu0 0.0
    %1040 = vmatpush1.msra.mxu0 %v924
    %1041 = vmatprep.subr.mxu0 0.0
    %1042 = vmatpush1.msra.mxu0 %v927
    %1043 = vmatprep.subr.mxu0 0.0
    %1044 = vmatpush1.msra.mxu0 %v930
    %1045 = vmatprep.subr.mxu0 0.0
    %1046 = vmatpush1.msra.mxu0 %v933
    %1047 = vmatprep.subr.mxu0 0.0
    %1048 = vmatpush1.msra.mxu0 %v936
    %1049 = vmatprep.subr.mxu0 0.0
    %1050 = vmatpush1.msra.mxu0 %v939
    %1051 = vmatprep.subr.mxu0 0.0
    %1052 = vmatpush1.msra.mxu0 %v942
    %1053 = vmatprep.subr.mxu0 0.0
    %1054 = vmatpush1.msra.mxu0 %v945
    %1055 = vmatprep.subr.mxu0 0.0
    %1056 = vmatpush1.msra.mxu0 %v948
    %1057 = vmatprep.subr.mxu0 0.0
    %1058 = vmatpush1.msra.mxu0 %v951
    %1059 = vmatprep.subr.mxu0 0.0
    %1060 = vmatpush1.msra.mxu0 %v954
    %1061 = vmatprep.subr.mxu0 0.0
    %1062 = vmatpush1.msra.mxu0 %v957
    %1063 = vmatprep.subr.mxu0 0.0
    %1064 = vmatpush1.msra.mxu0 %v960
    %1065 = vmatprep.subr.mxu0 0.0
    %1066 = vmatpush1.msra.mxu0 %v963
    %1067 = vmatprep.subr.mxu0 0.0
    %1068 = vmatpush1.msra.mxu0 0.0
    %1069 = vmatprep.subr.mxu0 0.0
    %1070 = vmatpush1.msra.mxu0 0.0
    %1071 = vmatprep.subr.mxu0 0.0
    %1072 = vmatpush1.msra.mxu0 0.0
    %1073 = vmatprep.subr.mxu0 0.0
    %1074 = vmatpush1.msra.mxu0 0.0
    %1075 = vmatprep.subr.mxu0 0.0
    %1076 = vmatpush1.msra.mxu0 0.0
    %1077 = vmatprep.subr.mxu0 0.0
    %1078 = vmatpush1.msra.mxu0 0.0
    %1079 = vmatprep.subr.mxu0 0.0
    %1080 = vmatpush1.msra.mxu0 0.0
    %1081 = vmatprep.subr.mxu0 0.0
    %1082 = vmatpush1.msra.mxu0 0.0
    %1083 = vmatprep.subr.mxu0 0.0
    %1084 = vmatpush1.msra.mxu0 0.0
    %1085 = vmatprep.subr.mxu0 0.0
    %1086 = vmatpush1.msra.mxu0 0.0
    %1087 = vmatprep.subr.mxu0 0.0
    %1088 = vmatpush1.msra.mxu0 0.0
    %1089 = vmatprep.subr.mxu0 0.0
    %1090 = vmatpush1.msra.mxu0 0.0
    %1091 = vmatprep.subr.mxu0 0.0
    %1092 = vmatpush1.msra.mxu0 0.0
    %1093 = vmatprep.subr.mxu0 0.0
    %1094 = vmatpush1.msra.mxu0 0.0
    %1095 = vmatprep.subr.mxu0 0.0
    %1096 = vmatpush1.msra.mxu0 0.0
    %1097 = vmatprep.subr.mxu0 0.0
    %1098 = vmatpush1.msra.mxu0 0.0
    %1099 = vmatprep.mubr.f32.mxu0 0.0
    %1100 = vmatmul.mubr.f32.gmra.mrb[0].mxu0 %v907
    %v1101 = vpop.f32.mrb[0].mxu0
    %v1102 = vadd.f32 0.0, %v1101
    %v1103 = vpop.f32.mrb[0].mxu0
    %1104 = vdwg.mxu0
    %v1105 = vadd.f32 %v913, %v1031
    %v1106 = vxor.u32 %v1105, 2147483648
    %v1107 = vmul.f32 %v1106, 1.442695
    %v1108 = vpow.pop %v1107
    %v1109 = vadd.f32 %v1108, 1.0
    %v1110 = vrcp.pop %v1109
    %v1111 = vmul.f32 1.0, %v1110
    %v1112 = vadd.f32 %v914, %v1033
    %v1113 = vxor.u32 %v1112, 2147483648
    %v1114 = vmul.f32 %v1113, 1.442695
    %v1115 = vpow.pop %v1114
    %v1116 = vadd.f32 %v1115, 1.0
    %v1117 = vrcp.pop %v1116
    %v1118 = vmul.f32 1.0, %v1117
    %v1119 = vadd.f32 %v1102, %v472
    %v1120 = vmul.f32 %v1111, %v1119
    %v1121 = vadd.f32 %v915, %v1120
    %v1122 = vtanh.pop %v1121
    %v1123 = vsub.f32 %v907, %v1122
    %v1124 = vmul.f32 %v1118, %v1123
    %v1125 = vadd.f32 %v1122, %v1124
    %s1126 = scalar_lea.vmem [#allocation4], 16
    %1127 = vst [vmem:[%s1126] sm:$0xff] %v1125
    %s1128 = smul.u32 3, 3
    %s1129 = smul.addr %s1128, 8
    %s1130 = scalar_lea.vmem [#allocation3], %s1129
    %v1131 = vld [vmem:[%s1130] sm:$0xff]
    %v1132 = vld [vmem:[%s1130 + $0x8] sm:$0xff]
    %v1133 = vld [vmem:[%s1130 + $0x10] sm:$0xff]
    %v1134 = vld [vmem:[#allocation10] sm:$0xff]
    %v1135 = vld [vmem:[#allocation10 + $0x8] sm:$0xff]
    %v1136 = vld [vmem:[#allocation10 + $0x10] sm:$0xff]
    %v1137 = vld [vmem:[#allocation10 + $0x18] sm:$0xff]
    %v1138 = vld [vmem:[#allocation10 + $0x20] sm:$0xff]
    %v1139 = vld [vmem:[#allocation10 + $0x28] sm:$0xff]
    %v1140 = vld [vmem:[#allocation10 + $0x30] sm:$0xff]
    %v1141 = vld [vmem:[#allocation10 + $0x38] sm:$0xff]
    %v1142 = vld [vmem:[#allocation10 + $0x40] sm:$0xff]
    %v1143 = vld [vmem:[#allocation10 + $0x48] sm:$0xff]
    %v1144 = vld [vmem:[#allocation10 + $0x50] sm:$0xff]
    %v1145 = vld [vmem:[#allocation10 + $0x58] sm:$0xff]
    %v1146 = vld [vmem:[#allocation10 + $0x60] sm:$0xff]
    %v1147 = vld [vmem:[#allocation10 + $0x68] sm:$0xff]
    %v1148 = vld [vmem:[#allocation10 + $0x70] sm:$0xff]
    %v1149 = vld [vmem:[#allocation10 + $0x78] sm:$0xff]
    %v1150 = vld [vmem:[#allocation10 + $0x80] sm:$0xff]
    %v1151 = vld [vmem:[#allocation10 + $0x88] sm:$0xff]
    %v1152 = vld [vmem:[#allocation10 + $0x90] sm:$0xff]
    %v1153 = vld [vmem:[#allocation10 + $0x98] sm:$0xff]
    %v1154 = vld [vmem:[#allocation10 + $0xa0] sm:$0xff]
    %v1155 = vld [vmem:[#allocation10 + $0xa8] sm:$0xff]
    %v1156 = vld [vmem:[#allocation10 + $0xb0] sm:$0xff]
    %v1157 = vld [vmem:[#allocation10 + $0xb8] sm:$0xff]
    %v1158 = vld [vmem:[#allocation10 + $0xc0] sm:$0xff]
    %v1159 = vld [vmem:[#allocation10 + $0xc8] sm:$0xff]
    %v1160 = vld [vmem:[#allocation10 + $0xd0] sm:$0xff]
    %v1161 = vld [vmem:[#allocation10 + $0xd8] sm:$0xff]
    %v1162 = vld [vmem:[#allocation10 + $0xe0] sm:$0xff]
    %v1163 = vld [vmem:[#allocation10 + $0xe8] sm:$0xff]
    %v1164 = vld [vmem:[#allocation10 + $0xf0] sm:$0xff]
    %v1165 = vld [vmem:[#allocation10 + $0xf8] sm:$0xff]
    %v1166 = vld [vmem:[#allocation10 + $0x100] sm:$0xff]
    %v1167 = vld [vmem:[#allocation10 + $0x108] sm:$0xff]
    %v1168 = vld [vmem:[#allocation10 + $0x110] sm:$0xff]
    %v1169 = vld [vmem:[#allocation10 + $0x118] sm:$0xff]
    %v1170 = vld [vmem:[#allocation10 + $0x120] sm:$0xff]
    %v1171 = vld [vmem:[#allocation10 + $0x128] sm:$0xff]
    %v1172 = vld [vmem:[#allocation10 + $0x130] sm:$0xff]
    %v1173 = vld [vmem:[#allocation10 + $0x138] sm:$0xff]
    %v1174 = vld [vmem:[#allocation10 + $0x140] sm:$0xff]
    %v1175 = vld [vmem:[#allocation10 + $0x148] sm:$0xff]
    %v1176 = vld [vmem:[#allocation10 + $0x150] sm:$0xff]
    %v1177 = vld [vmem:[#allocation10 + $0x158] sm:$0xff]
    %v1178 = vld [vmem:[#allocation10 + $0x160] sm:$0xff]
    %v1179 = vld [vmem:[#allocation10 + $0x168] sm:$0xff]
    %v1180 = vld [vmem:[#allocation10 + $0x170] sm:$0xff]
    %v1181 = vld [vmem:[#allocation10 + $0x178] sm:$0xff]
    %1182 = vmatprep.subr.mxu0 %v1135
    %1183 = vmatpush1.msra.mxu0 %v1134
    %1184 = vmatprep.subr.mxu0 %v1138
    %1185 = vmatpush1.msra.mxu0 %v1137
    %1186 = vmatprep.subr.mxu0 %v1141
    %1187 = vmatpush1.msra.mxu0 %v1140
    %1188 = vmatprep.subr.mxu0 %v1144
    %1189 = vmatpush1.msra.mxu0 %v1143
    %1190 = vmatprep.subr.mxu0 %v1147
    %1191 = vmatpush1.msra.mxu0 %v1146
    %1192 = vmatprep.subr.mxu0 %v1150
    %1193 = vmatpush1.msra.mxu0 %v1149
    %1194 = vmatprep.subr.mxu0 %v1153
    %1195 = vmatpush1.msra.mxu0 %v1152
    %1196 = vmatprep.subr.mxu0 %v1156
    %1197 = vmatpush1.msra.mxu0 %v1155
    %1198 = vmatprep.subr.mxu0 %v1159
    %1199 = vmatpush1.msra.mxu0 %v1158
    %1200 = vmatprep.subr.mxu0 %v1162
    %1201 = vmatpush1.msra.mxu0 %v1161
    %1202 = vmatprep.subr.mxu0 %v1165
    %1203 = vmatpush1.msra.mxu0 %v1164
    %1204 = vmatprep.subr.mxu0 %v1168
    %1205 = vmatpush1.msra.mxu0 %v1167
    %1206 = vmatprep.subr.mxu0 %v1171
    %1207 = vmatpush1.msra.mxu0 %v1170
    %1208 = vmatprep.subr.mxu0 %v1174
    %1209 = vmatpush1.msra.mxu0 %v1173
    %1210 = vmatprep.subr.mxu0 %v1177
    %1211 = vmatpush1.msra.mxu0 %v1176
    %1212 = vmatprep.subr.mxu0 %v1180
    %1213 = vmatpush1.msra.mxu0 %v1179
    %1214 = vmatprep.subr.mxu0 0.0
    %1215 = vmatpush1.msra.mxu0 0.0
    %1216 = vmatprep.subr.mxu0 0.0
    %1217 = vmatpush1.msra.mxu0 0.0
    %1218 = vmatprep.subr.mxu0 0.0
    %1219 = vmatpush1.msra.mxu0 0.0
    %1220 = vmatprep.subr.mxu0 0.0
    %1221 = vmatpush1.msra.mxu0 0.0
    %1222 = vmatprep.subr.mxu0 0.0
    %1223 = vmatpush1.msra.mxu0 0.0
    %1224 = vmatprep.subr.mxu0 0.0
    %1225 = vmatpush1.msra.mxu0 0.0
    %1226 = vmatprep.subr.mxu0 0.0
    %1227 = vmatpush1.msra.mxu0 0.0
    %1228 = vmatprep.subr.mxu0 0.0
    %1229 = vmatpush1.msra.mxu0 0.0
    %1230 = vmatprep.subr.mxu0 0.0
    %1231 = vmatpush1.msra.mxu0 0.0
    %1232 = vmatprep.subr.mxu0 0.0
    %1233 = vmatpush1.msra.mxu0 0.0
    %1234 = vmatprep.subr.mxu0 0.0
    %1235 = vmatpush1.msra.mxu0 0.0
    %1236 = vmatprep.subr.mxu0 0.0
    %1237 = vmatpush1.msra.mxu0 0.0
    %1238 = vmatprep.subr.mxu0 0.0
    %1239 = vmatpush1.msra.mxu0 0.0
    %1240 = vmatprep.subr.mxu0 0.0
    %1241 = vmatpush1.msra.mxu0 0.0
    %1242 = vmatprep.subr.mxu0 0.0
    %1243 = vmatpush1.msra.mxu0 0.0
    %1244 = vmatprep.subr.mxu0 0.0
    %1245 = vmatpush1.msra.mxu0 0.0
    %1246 = vmatprep.mubr.f32.mxu0 0.0
    %1247 = vmatmul.mubr.f32.gmra.mrb[0].mxu0 %v1125
    %v1248 = vpop.f32.mrb[0].mxu0
    %v1249 = vadd.f32 0.0, %v1248
    %v1250 = vpop.f32.mrb[0].mxu0
    %v1251 = vadd.f32 0.0, %v1250
    %1252 = vdwg.mxu0
    %1253 = vmatprep.subr.mxu0 0.0
    %1254 = vmatpush1.msra.mxu0 %v1136
    %1255 = vmatprep.subr.mxu0 0.0
    %1256 = vmatpush1.msra.mxu0 %v1139
    %1257 = vmatprep.subr.mxu0 0.0
    %1258 = vmatpush1.msra.mxu0 %v1142
    %1259 = vmatprep.subr.mxu0 0.0
    %1260 = vmatpush1.msra.mxu0 %v1145
    %1261 = vmatprep.subr.mxu0 0.0
    %1262 = vmatpush1.msra.mxu0 %v1148
    %1263 = vmatprep.subr.mxu0 0.0
    %1264 = vmatpush1.msra.mxu0 %v1151
    %1265 = vmatprep.subr.mxu0 0.0
    %1266 = vmatpush1.msra.mxu0 %v1154
    %1267 = vmatprep.subr.mxu0 0.0
    %1268 = vmatpush1.msra.mxu0 %v1157
    %1269 = vmatprep.subr.mxu0 0.0
    %1270 = vmatpush1.msra.mxu0 %v1160
    %1271 = vmatprep.subr.mxu0 0.0
    %1272 = vmatpush1.msra.mxu0 %v1163
    %1273 = vmatprep.subr.mxu0 0.0
    %1274 = vmatpush1.msra.mxu0 %v1166
    %1275 = vmatprep.subr.mxu0 0.0
    %1276 = vmatpush1.msra.mxu0 %v1169
    %1277 = vmatprep.subr.mxu0 0.0
    %1278 = vmatpush1.msra.mxu0 %v1172
    %1279 = vmatprep.subr.mxu0 0.0
    %1280 = vmatpush1.msra.mxu0 %v1175
    %1281 = vmatprep.subr.mxu0 0.0
    %1282 = vmatpush1.msra.mxu0 %v1178
    %1283 = vmatprep.subr.mxu0 0.0
    %1284 = vmatpush1.msra.mxu0 %v1181
    %1285 = vmatprep.subr.mxu0 0.0
    %1286 = vmatpush1.msra.mxu0 0.0
    %1287 = vmatprep.subr.mxu0 0.0
    %1288 = vmatpush1.msra.mxu0 0.0
    %1289 = vmatprep.subr.mxu0 0.0
    %1290 = vmatpush1.msra.mxu0 0.0
    %1291 = vmatprep.subr.mxu0 0.0
    %1292 = vmatpush1.msra.mxu0 0.0
    %1293 = vmatprep.subr.mxu0 0.0
    %1294 = vmatpush1.msra.mxu0 0.0
    %1295 = vmatprep.subr.mxu0 0.0
    %1296 = vmatpush1.msra.mxu0 0.0
    %1297 = vmatprep.subr.mxu0 0.0
    %1298 = vmatpush1.msra.mxu0 0.0
    %1299 = vmatprep.subr.mxu0 0.0
    %1300 = vmatpush1.msra.mxu0 0.0
    %1301 = vmatprep.subr.mxu0 0.0
    %1302 = vmatpush1.msra.mxu0 0.0
    %1303 = vmatprep.subr.mxu0 0.0
    %1304 = vmatpush1.msra.mxu0 0.0
    %1305 = vmatprep.subr.mxu0 0.0
    %1306 = vmatpush1.msra.mxu0 0.0
    %1307 = vmatprep.subr.mxu0 0.0
    %1308 = vmatpush1.msra.mxu0 0.0
    %1309 = vmatprep.subr.mxu0 0.0
    %1310 = vmatpush1.msra.mxu0 0.0
    %1311 = vmatprep.subr.mxu0 0.0
    %1312 = vmatpush1.msra.mxu0 0.0
    %1313 = vmatprep.subr.mxu0 0.0
    %1314 = vmatpush1.msra.mxu0 0.0
    %1315 = vmatprep.subr.mxu0 0.0
    %1316 = vmatpush1.msra.mxu0 0.0
    %1317 = vmatprep.mubr.f32.mxu0 0.0
    %1318 = vmatmul.mubr.f32.gmra.mrb[0].mxu0 %v1125
    %v1319 = vpop.f32.mrb[0].mxu0
    %v1320 = vadd.f32 0.0, %v1319
    %v1321 = vpop.f32.mrb[0].mxu0
    %1322 = vdwg.mxu0
    %v1323 = vadd.f32 %v1131, %v1249
    %v1324 = vxor.u32 %v1323, 2147483648
    %v1325 = vmul.f32 %v1324, 1.442695
    %v1326 = vpow.pop %v1325
    %v1327 = vadd.f32 %v1326, 1.0
    %v1328 = vrcp.pop %v1327
    %v1329 = vmul.f32 1.0, %v1328
    %v1330 = vadd.f32 %v1132, %v1251
    %v1331 = vxor.u32 %v1330, 2147483648
    %v1332 = vmul.f32 %v1331, 1.442695
    %v1333 = vpow.pop %v1332
    %v1334 = vadd.f32 %v1333, 1.0
    %v1335 = vrcp.pop %v1334
    %v1336 = vmul.f32 1.0, %v1335
    %v1337 = vadd.f32 %v1320, %v472
    %v1338 = vmul.f32 %v1329, %v1337
    %v1339 = vadd.f32 %v1133, %v1338
    %v1340 = vtanh.pop %v1339
    %v1341 = vsub.f32 %v1125, %v1340
    %v1342 = vmul.f32 %v1336, %v1341
    %v1343 = vadd.f32 %v1340, %v1342
    %s1344 = scalar_lea.vmem [#allocation4], 24
    %1345 = vst [vmem:[%s1344] sm:$0xff] %v1343
    %s1346 = smul.u32 4, 3
    %s1347 = smul.addr %s1346, 8
    %s1348 = scalar_lea.vmem [#allocation3], %s1347
    %v1349 = vld [vmem:[%s1348] sm:$0xff]
    %v1350 = vld [vmem:[%s1348 + $0x8] sm:$0xff]
    %v1351 = vld [vmem:[%s1348 + $0x10] sm:$0xff]
    %v1352 = vld [vmem:[#allocation10] sm:$0xff]
    %v1353 = vld [vmem:[#allocation10 + $0x8] sm:$0xff]
    %v1354 = vld [vmem:[#allocation10 + $0x10] sm:$0xff]
    %v1355 = vld [vmem:[#allocation10 + $0x18] sm:$0xff]
    %v1356 = vld [vmem:[#allocation10 + $0x20] sm:$0xff]
    %v1357 = vld [vmem:[#allocation10 + $0x28] sm:$0xff]
    %v1358 = vld [vmem:[#allocation10 + $0x30] sm:$0xff]
    %v1359 = vld [vmem:[#allocation10 + $0x38] sm:$0xff]
    %v1360 = vld [vmem:[#allocation10 + $0x40] sm:$0xff]
    %v1361 = vld [vmem:[#allocation10 + $0x48] sm:$0xff]
    %v1362 = vld [vmem:[#allocation10 + $0x50] sm:$0xff]
    %v1363 = vld [vmem:[#allocation10 + $0x58] sm:$0xff]
    %v1364 = vld [vmem:[#allocation10 + $0x60] sm:$0xff]
    %v1365 = vld [vmem:[#allocation10 + $0x68] sm:$0xff]
    %v1366 = vld [vmem:[#allocation10 + $0x70] sm:$0xff]
    %v1367 = vld [vmem:[#allocation10 + $0x78] sm:$0xff]
    %v1368 = vld [vmem:[#allocation10 + $0x80] sm:$0xff]
    %v1369 = vld [vmem:[#allocation10 + $0x88] sm:$0xff]
    %v1370 = vld [vmem:[#allocation10 + $0x90] sm:$0xff]
    %v1371 = vld [vmem:[#allocation10 + $0x98] sm:$0xff]
    %v1372 = vld [vmem:[#allocation10 + $0xa0] sm:$0xff]
    %v1373 = vld [vmem:[#allocation10 + $0xa8] sm:$0xff]
    %v1374 = vld [vmem:[#allocation10 + $0xb0] sm:$0xff]
    %v1375 = vld [vmem:[#allocation10 + $0xb8] sm:$0xff]
    %v1376 = vld [vmem:[#allocation10 + $0xc0] sm:$0xff]
    %v1377 = vld [vmem:[#allocation10 + $0xc8] sm:$0xff]
    %v1378 = vld [vmem:[#allocation10 + $0xd0] sm:$0xff]
    %v1379 = vld [vmem:[#allocation10 + $0xd8] sm:$0xff]
    %v1380 = vld [vmem:[#allocation10 + $0xe0] sm:$0xff]
    %v1381 = vld [vmem:[#allocation10 + $0xe8] sm:$0xff]
    %v1382 = vld [vmem:[#allocation10 + $0xf0] sm:$0xff]
    %v1383 = vld [vmem:[#allocation10 + $0xf8] sm:$0xff]
    %v1384 = vld [vmem:[#allocation10 + $0x100] sm:$0xff]
    %v1385 = vld [vmem:[#allocation10 + $0x108] sm:$0xff]
    %v1386 = vld [vmem:[#allocation10 + $0x110] sm:$0xff]
    %v1387 = vld [vmem:[#allocation10 + $0x118] sm:$0xff]
    %v1388 = vld [vmem:[#allocation10 + $0x120] sm:$0xff]
    %v1389 = vld [vmem:[#allocation10 + $0x128] sm:$0xff]
    %v1390 = vld [vmem:[#allocation10 + $0x130] sm:$0xff]
    %v1391 = vld [vmem:[#allocation10 + $0x138] sm:$0xff]
    %v1392 = vld [vmem:[#allocation10 + $0x140] sm:$0xff]
    %v1393 = vld [vmem:[#allocation10 + $0x148] sm:$0xff]
    %v1394 = vld [vmem:[#allocation10 + $0x150] sm:$0xff]
    %v1395 = vld [vmem:[#allocation10 + $0x158] sm:$0xff]
    %v1396 = vld [vmem:[#allocation10 + $0x160] sm:$0xff]
    %v1397 = vld [vmem:[#allocation10 + $0x168] sm:$0xff]
    %v1398 = vld [vmem:[#allocation10 + $0x170] sm:$0xff]
    %v1399 = vld [vmem:[#allocation10 + $0x178] sm:$0xff]
    %1400 = vmatprep.subr.mxu0 %v1353
    %1401 = vmatpush1.msra.mxu0 %v1352
    %1402 = vmatprep.subr.mxu0 %v1356
    %1403 = vmatpush1.msra.mxu0 %v1355
    %1404 = vmatprep.subr.mxu0 %v1359
    %1405 = vmatpush1.msra.mxu0 %v1358
    %1406 = vmatprep.subr.mxu0 %v1362
    %1407 = vmatpush1.msra.mxu0 %v1361
    %1408 = vmatprep.subr.mxu0 %v1365
    %1409 = vmatpush1.msra.mxu0 %v1364
    %1410 = vmatprep.subr.mxu0 %v1368
    %1411 = vmatpush1.msra.mxu0 %v1367
    %1412 = vmatprep.subr.mxu0 %v1371
    %1413 = vmatpush1.msra.mxu0 %v1370
    %1414 = vmatprep.subr.mxu0 %v1374
    %1415 = vmatpush1.msra.mxu0 %v1373
    %1416 = vmatprep.subr.mxu0 %v1377
    %1417 = vmatpush1.msra.mxu0 %v1376
    %1418 = vmatprep.subr.mxu0 %v1380
    %1419 = vmatpush1.msra.mxu0 %v1379
    %1420 = vmatprep.subr.mxu0 %v1383
    %1421 = vmatpush1.msra.mxu0 %v1382
    %1422 = vmatprep.subr.mxu0 %v1386
    %1423 = vmatpush1.msra.mxu0 %v1385
    %1424 = vmatprep.subr.mxu0 %v1389
    %1425 = vmatpush1.msra.mxu0 %v1388
    %1426 = vmatprep.subr.mxu0 %v1392
    %1427 = vmatpush1.msra.mxu0 %v1391
    %1428 = vmatprep.subr.mxu0 %v1395
    %1429 = vmatpush1.msra.mxu0 %v1394
    %1430 = vmatprep.subr.mxu0 %v1398
    %1431 = vmatpush1.msra.mxu0 %v1397
    %1432 = vmatprep.subr.mxu0 0.0
    %1433 = vmatpush1.msra.mxu0 0.0
    %1434 = vmatprep.subr.mxu0 0.0
    %1435 = vmatpush1.msra.mxu0 0.0
    %1436 = vmatprep.subr.mxu0 0.0
    %1437 = vmatpush1.msra.mxu0 0.0
    %1438 = vmatprep.subr.mxu0 0.0
    %1439 = vmatpush1.msra.mxu0 0.0
    %1440 = vmatprep.subr.mxu0 0.0
    %1441 = vmatpush1.msra.mxu0 0.0
    %1442 = vmatprep.subr.mxu0 0.0
    %1443 = vmatpush1.msra.mxu0 0.0
    %1444 = vmatprep.subr.mxu0 0.0
    %1445 = vmatpush1.msra.mxu0 0.0
    %1446 = vmatprep.subr.mxu0 0.0
    %1447 = vmatpush1.msra.mxu0 0.0
    %1448 = vmatprep.subr.mxu0 0.0
    %1449 = vmatpush1.msra.mxu0 0.0
    %1450 = vmatprep.subr.mxu0 0.0
    %1451 = vmatpush1.msra.mxu0 0.0
    %1452 = vmatprep.subr.mxu0 0.0
    %1453 = vmatpush1.msra.mxu0 0.0
    %1454 = vmatprep.subr.mxu0 0.0
    %1455 = vmatpush1.msra.mxu0 0.0
    %1456 = vmatprep.subr.mxu0 0.0
    %1457 = vmatpush1.msra.mxu0 0.0
    %1458 = vmatprep.subr.mxu0 0.0
    %1459 = vmatpush1.msra.mxu0 0.0
    %1460 = vmatprep.subr.mxu0 0.0
    %1461 = vmatpush1.msra.mxu0 0.0
    %1462 = vmatprep.subr.mxu0 0.0
    %1463 = vmatpush1.msra.mxu0 0.0
    %1464 = vmatprep.mubr.f32.mxu0 0.0
    %1465 = vmatmul.mubr.f32.gmra.mrb[0].mxu0 %v1343
    %v1466 = vpop.f32.mrb[0].mxu0
    %v1467 = vadd.f32 0.0, %v1466
    %v1468 = vpop.f32.mrb[0].mxu0
    %v1469 = vadd.f32 0.0, %v1468
    %1470 = vdwg.mxu0
    %1471 = vmatprep.subr.mxu0 0.0
    %1472 = vmatpush1.msra.mxu0 %v1354
    %1473 = vmatprep.subr.mxu0 0.0
    %1474 = vmatpush1.msra.mxu0 %v1357
    %1475 = vmatprep.subr.mxu0 0.0
    %1476 = vmatpush1.msra.mxu0 %v1360
    %1477 = vmatprep.subr.mxu0 0.0
    %1478 = vmatpush1.msra.mxu0 %v1363
    %1479 = vmatprep.subr.mxu0 0.0
    %1480 = vmatpush1.msra.mxu0 %v1366
    %1481 = vmatprep.subr.mxu0 0.0
    %1482 = vmatpush1.msra.mxu0 %v1369
    %1483 = vmatprep.subr.mxu0 0.0
    %1484 = vmatpush1.msra.mxu0 %v1372
    %1485 = vmatprep.subr.mxu0 0.0
    %1486 = vmatpush1.msra.mxu0 %v1375
    %1487 = vmatprep.subr.mxu0 0.0
    %1488 = vmatpush1.msra.mxu0 %v1378
    %1489 = vmatprep.subr.mxu0 0.0
    %1490 = vmatpush1.msra.mxu0 %v1381
    %1491 = vmatprep.subr.mxu0 0.0
    %1492 = vmatpush1.msra.mxu0 %v1384
    %1493 = vmatprep.subr.mxu0 0.0
    %1494 = vmatpush1.msra.mxu0 %v1387
    %1495 = vmatprep.subr.mxu0 0.0
    %1496 = vmatpush1.msra.mxu0 %v1390
    %1497 = vmatprep.subr.mxu0 0.0
    %1498 = vmatpush1.msra.mxu0 %v1393
    %1499 = vmatprep.subr.mxu0 0.0
    %1500 = vmatpush1.msra.mxu0 %v1396
    %1501 = vmatprep.subr.mxu0 0.0
    %1502 = vmatpush1.msra.mxu0 %v1399
    %1503 = vmatprep.subr.mxu0 0.0
    %1504 = vmatpush1.msra.mxu0 0.0
    %1505 = vmatprep.subr.mxu0 0.0
    %1506 = vmatpush1.msra.mxu0 0.0
    %1507 = vmatprep.subr.mxu0 0.0
    %1508 = vmatpush1.msra.mxu0 0.0
    %1509 = vmatprep.subr.mxu0 0.0
    %1510 = vmatpush1.msra.mxu0 0.0
    %1511 = vmatprep.subr.mxu0 0.0
    %1512 = vmatpush1.msra.mxu0 0.0
    %1513 = vmatprep.subr.mxu0 0.0
    %1514 = vmatpush1.msra.mxu0 0.0
    %1515 = vmatprep.subr.mxu0 0.0
    %1516 = vmatpush1.msra.mxu0 0.0
    %1517 = vmatprep.subr.mxu0 0.0
    %1518 = vmatpush1.msra.mxu0 0.0
    %1519 = vmatprep.subr.mxu0 0.0
    %1520 = vmatpush1.msra.mxu0 0.0
    %1521 = vmatprep.subr.mxu0 0.0
    %1522 = vmatpush1.msra.mxu0 0.0
    %1523 = vmatprep.subr.mxu0 0.0
    %1524 = vmatpush1.msra.mxu0 0.0
    %1525 = vmatprep.subr.mxu0 0.0
    %1526 = vmatpush1.msra.mxu0 0.0
    %1527 = vmatprep.subr.mxu0 0.0
    %1528 = vmatpush1.msra.mxu0 0.0
    %1529 = vmatprep.subr.mxu0 0.0
    %1530 = vmatpush1.msra.mxu0 0.0
    %1531 = vmatprep.subr.mxu0 0.0
    %1532 = vmatpush1.msra.mxu0 0.0
    %1533 = vmatprep.subr.mxu0 0.0
    %1534 = vmatpush1.msra.mxu0 0.0
    %1535 = vmatprep.mubr.f32.mxu0 0.0
    %1536 = vmatmul.mubr.f32.gmra.mrb[0].mxu0 %v1343
    %v1537 = vpop.f32.mrb[0].mxu0
    %v1538 = vadd.f32 0.0, %v1537
    %v1539 = vpop.f32.mrb[0].mxu0
    %1540 = vdwg.mxu0
    %v1541 = vadd.f32 %v1349, %v1467
    %v1542 = vxor.u32 %v1541, 2147483648
    %v1543 = vmul.f32 %v1542, 1.442695
    %v1544 = vpow.pop %v1543
    %v1545 = vadd.f32 %v1544, 1.0
    %v1546 = vrcp.pop %v1545
    %v1547 = vmul.f32 1.0, %v1546
    %v1548 = vadd.f32 %v1350, %v1469
    %v1549 = vxor.u32 %v1548, 2147483648
    %v1550 = vmul.f32 %v1549, 1.442695
    %v1551 = vpow.pop %v1550
    %v1552 = vadd.f32 %v1551, 1.0
    %v1553 = vrcp.pop %v1552
    %v1554 = vmul.f32 1.0, %v1553
    %v1555 = vadd.f32 %v1538, %v472
    %v1556 = vmul.f32 %v1547, %v1555
    %v1557 = vadd.f32 %v1351, %v1556
    %v1558 = vtanh.pop %v1557
    %v1559 = vsub.f32 %v1343, %v1558
    %v1560 = vmul.f32 %v1554, %v1559
    %v1561 = vadd.f32 %v1558, %v1560
    %s1562 = scalar_lea.vmem [#allocation4], 32
    %1563 = vst [vmem:[%s1562] sm:$0xff] %v1561
    %s1564 = smul.u32 5, 3
    %s1565 = smul.addr %s1564, 8
    %s1566 = scalar_lea.vmem [#allocation3], %s1565
    %v1567 = vld [vmem:[%s1566] sm:$0xff]
    %v1568 = vld [vmem:[%s1566 + $0x8] sm:$0xff]
    %v1569 = vld [vmem:[%s1566 + $0x10] sm:$0xff]
    %v1570 = vld [vmem:[#allocation10] sm:$0xff]
    %v1571 = vld [vmem:[#allocation10 + $0x8] sm:$0xff]
    %v1572 = vld [vmem:[#allocation10 + $0x10] sm:$0xff]
    %v1573 = vld [vmem:[#allocation10 + $0x18] sm:$0xff]
    %v1574 = vld [vmem:[#allocation10 + $0x20] sm:$0xff]
    %v1575 = vld [vmem:[#allocation10 + $0x28] sm:$0xff]
    %v1576 = vld [vmem:[#allocation10 + $0x30] sm:$0xff]
    %v1577 = vld [vmem:[#allocation10 + $0x38] sm:$0xff]
    %v1578 = vld [vmem:[#allocation10 + $0x40] sm:$0xff]
    %v1579 = vld [vmem:[#allocation10 + $0x48] sm:$0xff]
    %v1580 = vld [vmem:[#allocation10 + $0x50] sm:$0xff]
    %v1581 = vld [vmem:[#allocation10 + $0x58] sm:$0xff]
    %v1582 = vld [vmem:[#allocation10 + $0x60] sm:$0xff]
    %v1583 = vld [vmem:[#allocation10 + $0x68] sm:$0xff]
    %v1584 = vld [vmem:[#allocation10 + $0x70] sm:$0xff]
    %v1585 = vld [vmem:[#allocation10 + $0x78] sm:$0xff]
    %v1586 = vld [vmem:[#allocation10 + $0x80] sm:$0xff]
    %v1587 = vld [vmem:[#allocation10 + $0x88] sm:$0xff]
    %v1588 = vld [vmem:[#allocation10 + $0x90] sm:$0xff]
    %v1589 = vld [vmem:[#allocation10 + $0x98] sm:$0xff]
    %v1590 = vld [vmem:[#allocation10 + $0xa0] sm:$0xff]
    %v1591 = vld [vmem:[#allocation10 + $0xa8] sm:$0xff]
    %v1592 = vld [vmem:[#allocation10 + $0xb0] sm:$0xff]
    %v1593 = vld [vmem:[#allocation10 + $0xb8] sm:$0xff]
    %v1594 = vld [vmem:[#allocation10 + $0xc0] sm:$0xff]
    %v1595 = vld [vmem:[#allocation10 + $0xc8] sm:$0xff]
    %v1596 = vld [vmem:[#allocation10 + $0xd0] sm:$0xff]
    %v1597 = vld [vmem:[#allocation10 + $0xd8] sm:$0xff]
    %v1598 = vld [vmem:[#allocation10 + $0xe0] sm:$0xff]
    %v1599 = vld [vmem:[#allocation10 + $0xe8] sm:$0xff]
    %v1600 = vld [vmem:[#allocation10 + $0xf0] sm:$0xff]
    %v1601 = vld [vmem:[#allocation10 + $0xf8] sm:$0xff]
    %v1602 = vld [vmem:[#allocation10 + $0x100] sm:$0xff]
    %v1603 = vld [vmem:[#allocation10 + $0x108] sm:$0xff]
    %v1604 = vld [vmem:[#allocation10 + $0x110] sm:$0xff]
    %v1605 = vld [vmem:[#allocation10 + $0x118] sm:$0xff]
    %v1606 = vld [vmem:[#allocation10 + $0x120] sm:$0xff]
    %v1607 = vld [vmem:[#allocation10 + $0x128] sm:$0xff]
    %v1608 = vld [vmem:[#allocation10 + $0x130] sm:$0xff]
    %v1609 = vld [vmem:[#allocation10 + $0x138] sm:$0xff]
    %v1610 = vld [vmem:[#allocation10 + $0x140] sm:$0xff]
    %v1611 = vld [vmem:[#allocation10 + $0x148] sm:$0xff]
    %v1612 = vld [vmem:[#allocation10 + $0x150] sm:$0xff]
    %v1613 = vld [vmem:[#allocation10 + $0x158] sm:$0xff]
    %v1614 = vld [vmem:[#allocation10 + $0x160] sm:$0xff]
    %v1615 = vld [vmem:[#allocation10 + $0x168] sm:$0xff]
    %v1616 = vld [vmem:[#allocation10 + $0x170] sm:$0xff]
    %v1617 = vld [vmem:[#allocation10 + $0x178] sm:$0xff]
    %1618 = vmatprep.subr.mxu0 %v1571
    %1619 = vmatpush1.msra.mxu0 %v1570
    %1620 = vmatprep.subr.mxu0 %v1574
    %1621 = vmatpush1.msra.mxu0 %v1573
    %1622 = vmatprep.subr.mxu0 %v1577
    %1623 = vmatpush1.msra.mxu0 %v1576
    %1624 = vmatprep.subr.mxu0 %v1580
    %1625 = vmatpush1.msra.mxu0 %v1579
    %1626 = vmatprep.subr.mxu0 %v1583
    %1627 = vmatpush1.msra.mxu0 %v1582
    %1628 = vmatprep.subr.mxu0 %v1586
    %1629 = vmatpush1.msra.mxu0 %v1585
    %1630 = vmatprep.subr.mxu0 %v1589
    %1631 = vmatpush1.msra.mxu0 %v1588
    %1632 = vmatprep.subr.mxu0 %v1592
    %1633 = vmatpush1.msra.mxu0 %v1591
    %1634 = vmatprep.subr.mxu0 %v1595
    %1635 = vmatpush1.msra.mxu0 %v1594
    %1636 = vmatprep.subr.mxu0 %v1598
    %1637 = vmatpush1.msra.mxu0 %v1597
    %1638 = vmatprep.subr.mxu0 %v1601
    %1639 = vmatpush1.msra.mxu0 %v1600
    %1640 = vmatprep.subr.mxu0 %v1604
    %1641 = vmatpush1.msra.mxu0 %v1603
    %1642 = vmatprep.subr.mxu0 %v1607
    %1643 = vmatpush1.msra.mxu0 %v1606
    %1644 = vmatprep.subr.mxu0 %v1610
    %1645 = vmatpush1.msra.mxu0 %v1609
    %1646 = vmatprep.subr.mxu0 %v1613
    %1647 = vmatpush1.msra.mxu0 %v1612
    %1648 = vmatprep.subr.mxu0 %v1616
    %1649 = vmatpush1.msra.mxu0 %v1615
    %1650 = vmatprep.subr.mxu0 0.0
    %1651 = vmatpush1.msra.mxu0 0.0
    %1652 = vmatprep.subr.mxu0 0.0
    %1653 = vmatpush1.msra.mxu0 0.0
    %1654 = vmatprep.subr.mxu0 0.0
    %1655 = vmatpush1.msra.mxu0 0.0
    %1656 = vmatprep.subr.mxu0 0.0
    %1657 = vmatpush1.msra.mxu0 0.0
    %1658 = vmatprep.subr.mxu0 0.0
    %1659 = vmatpush1.msra.mxu0 0.0
    %1660 = vmatprep.subr.mxu0 0.0
    %1661 = vmatpush1.msra.mxu0 0.0
    %1662 = vmatprep.subr.mxu0 0.0
    %1663 = vmatpush1.msra.mxu0 0.0
    %1664 = vmatprep.subr.mxu0 0.0
    %1665 = vmatpush1.msra.mxu0 0.0
    %1666 = vmatprep.subr.mxu0 0.0
    %1667 = vmatpush1.msra.mxu0 0.0
    %1668 = vmatprep.subr.mxu0 0.0
    %1669 = vmatpush1.msra.mxu0 0.0
    %1670 = vmatprep.subr.mxu0 0.0
    %1671 = vmatpush1.msra.mxu0 0.0
    %1672 = vmatprep.subr.mxu0 0.0
    %1673 = vmatpush1.msra.mxu0 0.0
    %1674 = vmatprep.subr.mxu0 0.0
    %1675 = vmatpush1.msra.mxu0 0.0
    %1676 = vmatprep.subr.mxu0 0.0
    %1677 = vmatpush1.msra.mxu0 0.0
    %1678 = vmatprep.subr.mxu0 0.0
    %1679 = vmatpush1.msra.mxu0 0.0
    %1680 = vmatprep.subr.mxu0 0.0
    %1681 = vmatpush1.msra.mxu0 0.0
    %1682 = vmatprep.mubr.f32.mxu0 0.0
    %1683 = vmatmul.mubr.f32.gmra.mrb[0].mxu0 %v1561
    %v1684 = vpop.f32.mrb[0].mxu0
    %v1685 = vadd.f32 0.0, %v1684
    %v1686 = vpop.f32.mrb[0].mxu0
    %v1687 = vadd.f32 0.0, %v1686
    %1688 = vdwg.mxu0
    %1689 = vmatprep.subr.mxu0 0.0
    %1690 = vmatpush1.msra.mxu0 %v1572
    %1691 = vmatprep.subr.mxu0 0.0
    %1692 = vmatpush1.msra.mxu0 %v1575
    %1693 = vmatprep.subr.mxu0 0.0
    %1694 = vmatpush1.msra.mxu0 %v1578
    %1695 = vmatprep.subr.mxu0 0.0
    %1696 = vmatpush1.msra.mxu0 %v1581
    %1697 = vmatprep.subr.mxu0 0.0
    %1698 = vmatpush1.msra.mxu0 %v1584
    %1699 = vmatprep.subr.mxu0 0.0
    %1700 = vmatpush1.msra.mxu0 %v1587
    %1701 = vmatprep.subr.mxu0 0.0
    %1702 = vmatpush1.msra.mxu0 %v1590
    %1703 = vmatprep.subr.mxu0 0.0
    %1704 = vmatpush1.msra.mxu0 %v1593
    %1705 = vmatprep.subr.mxu0 0.0
    %1706 = vmatpush1.msra.mxu0 %v1596
    %1707 = vmatprep.subr.mxu0 0.0
    %1708 = vmatpush1.msra.mxu0 %v1599
    %1709 = vmatprep.subr.mxu0 0.0
    %1710 = vmatpush1.msra.mxu0 %v1602
    %1711 = vmatprep.subr.mxu0 0.0
    %1712 = vmatpush1.msra.mxu0 %v1605
    %1713 = vmatprep.subr.mxu0 0.0
    %1714 = vmatpush1.msra.mxu0 %v1608
    %1715 = vmatprep.subr.mxu0 0.0
    %1716 = vmatpush1.msra.mxu0 %v1611
    %1717 = vmatprep.subr.mxu0 0.0
    %1718 = vmatpush1.msra.mxu0 %v1614
    %1719 = vmatprep.subr.mxu0 0.0
    %1720 = vmatpush1.msra.mxu0 %v1617
    %1721 = vmatprep.subr.mxu0 0.0
    %1722 = vmatpush1.msra.mxu0 0.0
    %1723 = vmatprep.subr.mxu0 0.0
    %1724 = vmatpush1.msra.mxu0 0.0
    %1725 = vmatprep.subr.mxu0 0.0
    %1726 = vmatpush1.msra.mxu0 0.0
    %1727 = vmatprep.subr.mxu0 0.0
    %1728 = vmatpush1.msra.mxu0 0.0
    %1729 = vmatprep.subr.mxu0 0.0
    %1730 = vmatpush1.msra.mxu0 0.0
    %1731 = vmatprep.subr.mxu0 0.0
    %1732 = vmatpush1.msra.mxu0 0.0
    %1733 = vmatprep.subr.mxu0 0.0
    %1734 = vmatpush1.msra.mxu0 0.0
    %1735 = vmatprep.subr.mxu0 0.0
    %1736 = vmatpush1.msra.mxu0 0.0
    %1737 = vmatprep.subr.mxu0 0.0
    %1738 = vmatpush1.msra.mxu0 0.0
    %1739 = vmatprep.subr.mxu0 0.0
    %1740 = vmatpush1.msra.mxu0 0.0
    %1741 = vmatprep.subr.mxu0 0.0
    %1742 = vmatpush1.msra.mxu0 0.0
    %1743 = vmatprep.subr.mxu0 0.0
    %1744 = vmatpush1.msra.mxu0 0.0
    %1745 = vmatprep.subr.mxu0 0.0
    %1746 = vmatpush1.msra.mxu0 0.0
    %1747 = vmatprep.subr.mxu0 0.0
    %1748 = vmatpush1.msra.mxu0 0.0
    %1749 = vmatprep.subr.mxu0 0.0
    %1750 = vmatpush1.msra.mxu0 0.0
    %1751 = vmatprep.subr.mxu0 0.0
    %1752 = vmatpush1.msra.mxu0 0.0
    %1753 = vmatprep.mubr.f32.mxu0 0.0
    %1754 = vmatmul.mubr.f32.gmra.mrb[0].mxu0 %v1561
    %v1755 = vpop.f32.mrb[0].mxu0
    %v1756 = vadd.f32 0.0, %v1755
    %v1757 = vpop.f32.mrb[0].mxu0
    %1758 = vdwg.mxu0
    %v1759 = vadd.f32 %v1567, %v1685
    %v1760 = vxor.u32 %v1759, 2147483648
    %v1761 = vmul.f32 %v1760, 1.442695
    %v1762 = vpow.pop %v1761
    %v1763 = vadd.f32 %v1762, 1.0
    %v1764 = vrcp.pop %v1763
    %v1765 = vmul.f32 1.0, %v1764
    %v1766 = vadd.f32 %v1568, %v1687
    %v1767 = vxor.u32 %v1766, 2147483648
    %v1768 = vmul.f32 %v1767, 1.442695
    %v1769 = vpow.pop %v1768
    %v1770 = vadd.f32 %v1769, 1.0
    %v1771 = vrcp.pop %v1770
    %v1772 = vmul.f32 1.0, %v1771
    %v1773 = vadd.f32 %v1756, %v472
    %v1774 = vmul.f32 %v1765, %v1773
    %v1775 = vadd.f32 %v1569, %v1774
    %v1776 = vtanh.pop %v1775
    %v1777 = vsub.f32 %v1561, %v1776
    %v1778 = vmul.f32 %v1772, %v1777
    %v1779 = vadd.f32 %v1776, %v1778
    %s1780 = scalar_lea.vmem [#allocation4], 40
    %1781 = vst [vmem:[%s1780] sm:$0xff] %v1779
    %s1782 = smul.u32 6, 3
    %s1783 = smul.addr %s1782, 8
    %s1784 = scalar_lea.vmem [#allocation3], %s1783
    %v1785 = vld [vmem:[%s1784] sm:$0xff]
    %v1786 = vld [vmem:[%s1784 + $0x8] sm:$0xff]
    %v1787 = vld [vmem:[%s1784 + $0x10] sm:$0xff]
    %v1788 = vld [vmem:[#allocation10] sm:$0xff]
    %v1789 = vld [vmem:[#allocation10 + $0x8] sm:$0xff]
    %v1790 = vld [vmem:[#allocation10 + $0x10] sm:$0xff]
    %v1791 = vld [vmem:[#allocation10 + $0x18] sm:$0xff]
    %v1792 = vld [vmem:[#allocation10 + $0x20] sm:$0xff]
    %v1793 = vld [vmem:[#allocation10 + $0x28] sm:$0xff]
    %v1794 = vld [vmem:[#allocation10 + $0x30] sm:$0xff]
    %v1795 = vld [vmem:[#allocation10 + $0x38] sm:$0xff]
    %v1796 = vld [vmem:[#allocation10 + $0x40] sm:$0xff]
    %v1797 = vld [vmem:[#allocation10 + $0x48] sm:$0xff]
    %v1798 = vld [vmem:[#allocation10 + $0x50] sm:$0xff]
    %v1799 = vld [vmem:[#allocation10 + $0x58] sm:$0xff]
    %v1800 = vld [vmem:[#allocation10 + $0x60] sm:$0xff]
    %v1801 = vld [vmem:[#allocation10 + $0x68] sm:$0xff]
    %v1802 = vld [vmem:[#allocation10 + $0x70] sm:$0xff]
    %v1803 = vld [vmem:[#allocation10 + $0x78] sm:$0xff]
    %v1804 = vld [vmem:[#allocation10 + $0x80] sm:$0xff]
    %v1805 = vld [vmem:[#allocation10 + $0x88] sm:$0xff]
    %v1806 = vld [vmem:[#allocation10 + $0x90] sm:$0xff]
    %v1807 = vld [vmem:[#allocation10 + $0x98] sm:$0xff]
    %v1808 = vld [vmem:[#allocation10 + $0xa0] sm:$0xff]
    %v1809 = vld [vmem:[#allocation10 + $0xa8] sm:$0xff]
    %v1810 = vld [vmem:[#allocation10 + $0xb0] sm:$0xff]
    %v1811 = vld [vmem:[#allocation10 + $0xb8] sm:$0xff]
    %v1812 = vld [vmem:[#allocation10 + $0xc0] sm:$0xff]
    %v1813 = vld [vmem:[#allocation10 + $0xc8] sm:$0xff]
    %v1814 = vld [vmem:[#allocation10 + $0xd0] sm:$0xff]
    %v1815 = vld [vmem:[#allocation10 + $0xd8] sm:$0xff]
    %v1816 = vld [vmem:[#allocation10 + $0xe0] sm:$0xff]
    %v1817 = vld [vmem:[#allocation10 + $0xe8] sm:$0xff]
    %v1818 = vld [vmem:[#allocation10 + $0xf0] sm:$0xff]
    %v1819 = vld [vmem:[#allocation10 + $0xf8] sm:$0xff]
    %v1820 = vld [vmem:[#allocation10 + $0x100] sm:$0xff]
    %v1821 = vld [vmem:[#allocation10 + $0x108] sm:$0xff]
    %v1822 = vld [vmem:[#allocation10 + $0x110] sm:$0xff]
    %v1823 = vld [vmem:[#allocation10 + $0x118] sm:$0xff]
    %v1824 = vld [vmem:[#allocation10 + $0x120] sm:$0xff]
    %v1825 = vld [vmem:[#allocation10 + $0x128] sm:$0xff]
    %v1826 = vld [vmem:[#allocation10 + $0x130] sm:$0xff]
    %v1827 = vld [vmem:[#allocation10 + $0x138] sm:$0xff]
    %v1828 = vld [vmem:[#allocation10 + $0x140] sm:$0xff]
    %v1829 = vld [vmem:[#allocation10 + $0x148] sm:$0xff]
    %v1830 = vld [vmem:[#allocation10 + $0x150] sm:$0xff]
    %v1831 = vld [vmem:[#allocation10 + $0x158] sm:$0xff]
    %v1832 = vld [vmem:[#allocation10 + $0x160] sm:$0xff]
    %v1833 = vld [vmem:[#allocation10 + $0x168] sm:$0xff]
    %v1834 = vld [vmem:[#allocation10 + $0x170] sm:$0xff]
    %v1835 = vld [vmem:[#allocation10 + $0x178] sm:$0xff]
    %1836 = vmatprep.subr.mxu0 %v1789
    %1837 = vmatpush1.msra.mxu0 %v1788
    %1838 = vmatprep.subr.mxu0 %v1792
    %1839 = vmatpush1.msra.mxu0 %v1791
    %1840 = vmatprep.subr.mxu0 %v1795
    %1841 = vmatpush1.msra.mxu0 %v1794
    %1842 = vmatprep.subr.mxu0 %v1798
    %1843 = vmatpush1.msra.mxu0 %v1797
    %1844 = vmatprep.subr.mxu0 %v1801
    %1845 = vmatpush1.msra.mxu0 %v1800
    %1846 = vmatprep.subr.mxu0 %v1804
    %1847 = vmatpush1.msra.mxu0 %v1803
    %1848 = vmatprep.subr.mxu0 %v1807
    %1849 = vmatpush1.msra.mxu0 %v1806
    %1850 = vmatprep.subr.mxu0 %v1810
    %1851 = vmatpush1.msra.mxu0 %v1809
    %1852 = vmatprep.subr.mxu0 %v1813
    %1853 = vmatpush1.msra.mxu0 %v1812
    %1854 = vmatprep.subr.mxu0 %v1816
    %1855 = vmatpush1.msra.mxu0 %v1815
    %1856 = vmatprep.subr.mxu0 %v1819
    %1857 = vmatpush1.msra.mxu0 %v1818
    %1858 = vmatprep.subr.mxu0 %v1822
    %1859 = vmatpush1.msra.mxu0 %v1821
    %1860 = vmatprep.subr.mxu0 %v1825
    %1861 = vmatpush1.msra.mxu0 %v1824
    %1862 = vmatprep.subr.mxu0 %v1828
    %1863 = vmatpush1.msra.mxu0 %v1827
    %1864 = vmatprep.subr.mxu0 %v1831
    %1865 = vmatpush1.msra.mxu0 %v1830
    %1866 = vmatprep.subr.mxu0 %v1834
    %1867 = vmatpush1.msra.mxu0 %v1833
    %1868 = vmatprep.subr.mxu0 0.0
    %1869 = vmatpush1.msra.mxu0 0.0
    %1870 = vmatprep.subr.mxu0 0.0
    %1871 = vmatpush1.msra.mxu0 0.0
    %1872 = vmatprep.subr.mxu0 0.0
    %1873 = vmatpush1.msra.mxu0 0.0
    %1874 = vmatprep.subr.mxu0 0.0
    %1875 = vmatpush1.msra.mxu0 0.0
    %1876 = vmatprep.subr.mxu0 0.0
    %1877 = vmatpush1.msra.mxu0 0.0
    %1878 = vmatprep.subr.mxu0 0.0
    %1879 = vmatpush1.msra.mxu0 0.0
    %1880 = vmatprep.subr.mxu0 0.0
    %1881 = vmatpush1.msra.mxu0 0.0
    %1882 = vmatprep.subr.mxu0 0.0
    %1883 = vmatpush1.msra.mxu0 0.0
    %1884 = vmatprep.subr.mxu0 0.0
    %1885 = vmatpush1.msra.mxu0 0.0
    %1886 = vmatprep.subr.mxu0 0.0
    %1887 = vmatpush1.msra.mxu0 0.0
    %1888 = vmatprep.subr.mxu0 0.0
    %1889 = vmatpush1.msra.mxu0 0.0
    %1890 = vmatprep.subr.mxu0 0.0
    %1891 = vmatpush1.msra.mxu0 0.0
    %1892 = vmatprep.subr.mxu0 0.0
    %1893 = vmatpush1.msra.mxu0 0.0
    %1894 = vmatprep.subr.mxu0 0.0
    %1895 = vmatpush1.msra.mxu0 0.0
    %1896 = vmatprep.subr.mxu0 0.0
    %1897 = vmatpush1.msra.mxu0 0.0
    %1898 = vmatprep.subr.mxu0 0.0
    %1899 = vmatpush1.msra.mxu0 0.0
    %1900 = vmatprep.mubr.f32.mxu0 0.0
    %1901 = vmatmul.mubr.f32.gmra.mrb[0].mxu0 %v1779
    %v1902 = vpop.f32.mrb[0].mxu0
    %v1903 = vadd.f32 0.0, %v1902
    %v1904 = vpop.f32.mrb[0].mxu0
    %v1905 = vadd.f32 0.0, %v1904
    %1906 = vdwg.mxu0
    %1907 = vmatprep.subr.mxu0 0.0
    %1908 = vmatpush1.msra.mxu0 %v1790
    %1909 = vmatprep.subr.mxu0 0.0
    %1910 = vmatpush1.msra.mxu0 %v1793
    %1911 = vmatprep.subr.mxu0 0.0
    %1912 = vmatpush1.msra.mxu0 %v1796
    %1913 = vmatprep.subr.mxu0 0.0
    %1914 = vmatpush1.msra.mxu0 %v1799
    %1915 = vmatprep.subr.mxu0 0.0
    %1916 = vmatpush1.msra.mxu0 %v1802
    %1917 = vmatprep.subr.mxu0 0.0
    %1918 = vmatpush1.msra.mxu0 %v1805
    %1919 = vmatprep.subr.mxu0 0.0
    %1920 = vmatpush1.msra.mxu0 %v1808
    %1921 = vmatprep.subr.mxu0 0.0
    %1922 = vmatpush1.msra.mxu0 %v1811
    %1923 = vmatprep.subr.mxu0 0.0
    %1924 = vmatpush1.msra.mxu0 %v1814
    %1925 = vmatprep.subr.mxu0 0.0
    %1926 = vmatpush1.msra.mxu0 %v1817
    %1927 = vmatprep.subr.mxu0 0.0
    %1928 = vmatpush1.msra.mxu0 %v1820
    %1929 = vmatprep.subr.mxu0 0.0
    %1930 = vmatpush1.msra.mxu0 %v1823
    %1931 = vmatprep.subr.mxu0 0.0
    %1932 = vmatpush1.msra.mxu0 %v1826
    %1933 = vmatprep.subr.mxu0 0.0
    %1934 = vmatpush1.msra.mxu0 %v1829
    %1935 = vmatprep.subr.mxu0 0.0
    %1936 = vmatpush1.msra.mxu0 %v1832
    %1937 = vmatprep.subr.mxu0 0.0
    %1938 = vmatpush1.msra.mxu0 %v1835
    %1939 = vmatprep.subr.mxu0 0.0
    %1940 = vmatpush1.msra.mxu0 0.0
    %1941 = vmatprep.subr.mxu0 0.0
    %1942 = vmatpush1.msra.mxu0 0.0
    %1943 = vmatprep.subr.mxu0 0.0
    %1944 = vmatpush1.msra.mxu0 0.0
    %1945 = vmatprep.subr.mxu0 0.0
    %1946 = vmatpush1.msra.mxu0 0.0
    %1947 = vmatprep.subr.mxu0 0.0
    %1948 = vmatpush1.msra.mxu0 0.0
    %1949 = vmatprep.subr.mxu0 0.0
    %1950 = vmatpush1.msra.mxu0 0.0
    %1951 = vmatprep.subr.mxu0 0.0
    %1952 = vmatpush1.msra.mxu0 0.0
    %1953 = vmatprep.subr.mxu0 0.0
    %1954 = vmatpush1.msra.mxu0 0.0
    %1955 = vmatprep.subr.mxu0 0.0
    %1956 = vmatpush1.msra.mxu0 0.0
    %1957 = vmatprep.subr.mxu0 0.0
    %1958 = vmatpush1.msra.mxu0 0.0
    %1959 = vmatprep.subr.mxu0 0.0
    %1960 = vmatpush1.msra.mxu0 0.0
    %1961 = vmatprep.subr.mxu0 0.0
    %1962 = vmatpush1.msra.mxu0 0.0
    %1963 = vmatprep.subr.mxu0 0.0
    %1964 = vmatpush1.msra.mxu0 0.0
    %1965 = vmatprep.subr.mxu0 0.0
    %1966 = vmatpush1.msra.mxu0 0.0
    %1967 = vmatprep.subr.mxu0 0.0
    %1968 = vmatpush1.msra.mxu0 0.0
    %1969 = vmatprep.subr.mxu0 0.0
    %1970 = vmatpush1.msra.mxu0 0.0
    %1971 = vmatprep.mubr.f32.mxu0 0.0
    %1972 = vmatmul.mubr.f32.gmra.mrb[0].mxu0 %v1779
    %v1973 = vpop.f32.mrb[0].mxu0
    %v1974 = vadd.f32 0.0, %v1973
    %v1975 = vpop.f32.mrb[0].mxu0
    %1976 = vdwg.mxu0
    %v1977 = vadd.f32 %v1785, %v1903
    %v1978 = vxor.u32 %v1977, 2147483648
    %v1979 = vmul.f32 %v1978, 1.442695
    %v1980 = vpow.pop %v1979
    %v1981 = vadd.f32 %v1980, 1.0
    %v1982 = vrcp.pop %v1981
    %v1983 = vmul.f32 1.0, %v1982
    %v1984 = vadd.f32 %v1786, %v1905
    %v1985 = vxor.u32 %v1984, 2147483648
    %v1986 = vmul.f32 %v1985, 1.442695
    %v1987 = vpow.pop %v1986
    %v1988 = vadd.f32 %v1987, 1.0
    %v1989 = vrcp.pop %v1988
    %v1990 = vmul.f32 1.0, %v1989
    %v1991 = vadd.f32 %v1974, %v472
    %v1992 = vmul.f32 %v1983, %v1991
    %v1993 = vadd.f32 %v1787, %v1992
    %v1994 = vtanh.pop %v1993
    %v1995 = vsub.f32 %v1779, %v1994
    %v1996 = vmul.f32 %v1990, %v1995
    %v1997 = vadd.f32 %v1994, %v1996
    %s1998 = scalar_lea.vmem [#allocation4], 48
    %1999 = vst [vmem:[%s1998] sm:$0xff] %v1997
    %s2000 = smul.u32 7, 3
    %s2001 = smul.addr %s2000, 8
    %s2002 = scalar_lea.vmem [#allocation3], %s2001
    %v2003 = vld [vmem:[%s2002] sm:$0xff]
    %v2004 = vld [vmem:[%s2002 + $0x8] sm:$0xff]
    %v2005 = vld [vmem:[%s2002 + $0x10] sm:$0xff]
    %v2006 = vld [vmem:[#allocation10] sm:$0xff]
    %v2007 = vld [vmem:[#allocation10 + $0x8] sm:$0xff]
    %v2008 = vld [vmem:[#allocation10 + $0x10] sm:$0xff]
    %v2009 = vld [vmem:[#allocation10 + $0x18] sm:$0xff]
    %v2010 = vld [vmem:[#allocation10 + $0x20] sm:$0xff]
    %v2011 = vld [vmem:[#allocation10 + $0x28] sm:$0xff]
    %v2012 = vld [vmem:[#allocation10 + $0x30] sm:$0xff]
    %v2013 = vld [vmem:[#allocation10 + $0x38] sm:$0xff]
    %v2014 = vld [vmem:[#allocation10 + $0x40] sm:$0xff]
    %v2015 = vld [vmem:[#allocation10 + $0x48] sm:$0xff]
    %v2016 = vld [vmem:[#allocation10 + $0x50] sm:$0xff]
    %v2017 = vld [vmem:[#allocation10 + $0x58] sm:$0xff]
    %v2018 = vld [vmem:[#allocation10 + $0x60] sm:$0xff]
    %v2019 = vld [vmem:[#allocation10 + $0x68] sm:$0xff]
    %v2020 = vld [vmem:[#allocation10 + $0x70] sm:$0xff]
    %v2021 = vld [vmem:[#allocation10 + $0x78] sm:$0xff]
    %v2022 = vld [vmem:[#allocation10 + $0x80] sm:$0xff]
    %v2023 = vld [vmem:[#allocation10 + $0x88] sm:$0xff]
    %v2024 = vld [vmem:[#allocation10 + $0x90] sm:$0xff]
    %v2025 = vld [vmem:[#allocation10 + $0x98] sm:$0xff]
    %v2026 = vld [vmem:[#allocation10 + $0xa0] sm:$0xff]
    %v2027 = vld [vmem:[#allocation10 + $0xa8] sm:$0xff]
    %v2028 = vld [vmem:[#allocation10 + $0xb0] sm:$0xff]
    %v2029 = vld [vmem:[#allocation10 + $0xb8] sm:$0xff]
    %v2030 = vld [vmem:[#allocation10 + $0xc0] sm:$0xff]
    %v2031 = vld [vmem:[#allocation10 + $0xc8] sm:$0xff]
    %v2032 = vld [vmem:[#allocation10 + $0xd0] sm:$0xff]
    %v2033 = vld [vmem:[#allocation10 + $0xd8] sm:$0xff]
    %v2034 = vld [vmem:[#allocation10 + $0xe0] sm:$0xff]
    %v2035 = vld [vmem:[#allocation10 + $0xe8] sm:$0xff]
    %v2036 = vld [vmem:[#allocation10 + $0xf0] sm:$0xff]
    %v2037 = vld [vmem:[#allocation10 + $0xf8] sm:$0xff]
    %v2038 = vld [vmem:[#allocation10 + $0x100] sm:$0xff]
    %v2039 = vld [vmem:[#allocation10 + $0x108] sm:$0xff]
    %v2040 = vld [vmem:[#allocation10 + $0x110] sm:$0xff]
    %v2041 = vld [vmem:[#allocation10 + $0x118] sm:$0xff]
    %v2042 = vld [vmem:[#allocation10 + $0x120] sm:$0xff]
    %v2043 = vld [vmem:[#allocation10 + $0x128] sm:$0xff]
    %v2044 = vld [vmem:[#allocation10 + $0x130] sm:$0xff]
    %v2045 = vld [vmem:[#allocation10 + $0x138] sm:$0xff]
    %v2046 = vld [vmem:[#allocation10 + $0x140] sm:$0xff]
    %v2047 = vld [vmem:[#allocation10 + $0x148] sm:$0xff]
    %v2048 = vld [vmem:[#allocation10 + $0x150] sm:$0xff]
    %v2049 = vld [vmem:[#allocation10 + $0x158] sm:$0xff]
    %v2050 = vld [vmem:[#allocation10 + $0x160] sm:$0xff]
    %v2051 = vld [vmem:[#allocation10 + $0x168] sm:$0xff]
    %v2052 = vld [vmem:[#allocation10 + $0x170] sm:$0xff]
    %v2053 = vld [vmem:[#allocation10 + $0x178] sm:$0xff]
    %2054 = vmatprep.subr.mxu0 %v2007
    %2055 = vmatpush1.msra.mxu0 %v2006
    %2056 = vmatprep.subr.mxu0 %v2010
    %2057 = vmatpush1.msra.mxu0 %v2009
    %2058 = vmatprep.subr.mxu0 %v2013
    %2059 = vmatpush1.msra.mxu0 %v2012
    %2060 = vmatprep.subr.mxu0 %v2016
    %2061 = vmatpush1.msra.mxu0 %v2015
    %2062 = vmatprep.subr.mxu0 %v2019
    %2063 = vmatpush1.msra.mxu0 %v2018
    %2064 = vmatprep.subr.mxu0 %v2022
    %2065 = vmatpush1.msra.mxu0 %v2021
    %2066 = vmatprep.subr.mxu0 %v2025
    %2067 = vmatpush1.msra.mxu0 %v2024
    %2068 = vmatprep.subr.mxu0 %v2028
    %2069 = vmatpush1.msra.mxu0 %v2027
    %2070 = vmatprep.subr.mxu0 %v2031
    %2071 = vmatpush1.msra.mxu0 %v2030
    %2072 = vmatprep.subr.mxu0 %v2034
    %2073 = vmatpush1.msra.mxu0 %v2033
    %2074 = vmatprep.subr.mxu0 %v2037
    %2075 = vmatpush1.msra.mxu0 %v2036
    %2076 = vmatprep.subr.mxu0 %v2040
    %2077 = vmatpush1.msra.mxu0 %v2039
    %2078 = vmatprep.subr.mxu0 %v2043
    %2079 = vmatpush1.msra.mxu0 %v2042
    %2080 = vmatprep.subr.mxu0 %v2046
    %2081 = vmatpush1.msra.mxu0 %v2045
    %2082 = vmatprep.subr.mxu0 %v2049
    %2083 = vmatpush1.msra.mxu0 %v2048
    %2084 = vmatprep.subr.mxu0 %v2052
    %2085 = vmatpush1.msra.mxu0 %v2051
    %2086 = vmatprep.subr.mxu0 0.0
    %2087 = vmatpush1.msra.mxu0 0.0
    %2088 = vmatprep.subr.mxu0 0.0
    %2089 = vmatpush1.msra.mxu0 0.0
    %2090 = vmatprep.subr.mxu0 0.0
    %2091 = vmatpush1.msra.mxu0 0.0
    %2092 = vmatprep.subr.mxu0 0.0
    %2093 = vmatpush1.msra.mxu0 0.0
    %2094 = vmatprep.subr.mxu0 0.0
    %2095 = vmatpush1.msra.mxu0 0.0
    %2096 = vmatprep.subr.mxu0 0.0
    %2097 = vmatpush1.msra.mxu0 0.0
    %2098 = vmatprep.subr.mxu0 0.0
    %2099 = vmatpush1.msra.mxu0 0.0
    %2100 = vmatprep.subr.mxu0 0.0
    %2101 = vmatpush1.msra.mxu0 0.0
    %2102 = vmatprep.subr.mxu0 0.0
    %2103 = vmatpush1.msra.mxu0 0.0
    %2104 = vmatprep.subr.mxu0 0.0
    %2105 = vmatpush1.msra.mxu0 0.0
    %2106 = vmatprep.subr.mxu0 0.0
    %2107 = vmatpush1.msra.mxu0 0.0
    %2108 = vmatprep.subr.mxu0 0.0
    %2109 = vmatpush1.msra.mxu0 0.0
    %2110 = vmatprep.subr.mxu0 0.0
    %2111 = vmatpush1.msra.mxu0 0.0
    %2112 = vmatprep.subr.mxu0 0.0
    %2113 = vmatpush1.msra.mxu0 0.0
    %2114 = vmatprep.subr.mxu0 0.0
    %2115 = vmatpush1.msra.mxu0 0.0
    %2116 = vmatprep.subr.mxu0 0.0
    %2117 = vmatpush1.msra.mxu0 0.0
    %2118 = vmatprep.mubr.f32.mxu0 0.0
    %2119 = vmatmul.mubr.f32.gmra.mrb[0].mxu0 %v1997
    %v2120 = vpop.f32.mrb[0].mxu0
    %v2121 = vadd.f32 0.0, %v2120
    %v2122 = vpop.f32.mrb[0].mxu0
    %v2123 = vadd.f32 0.0, %v2122
    %2124 = vdwg.mxu0
    %2125 = vmatprep.subr.mxu0 0.0
    %2126 = vmatpush1.msra.mxu0 %v2008
    %2127 = vmatprep.subr.mxu0 0.0
    %2128 = vmatpush1.msra.mxu0 %v2011
    %2129 = vmatprep.subr.mxu0 0.0
    %2130 = vmatpush1.msra.mxu0 %v2014
    %2131 = vmatprep.subr.mxu0 0.0
    %2132 = vmatpush1.msra.mxu0 %v2017
    %2133 = vmatprep.subr.mxu0 0.0
    %2134 = vmatpush1.msra.mxu0 %v2020
    %2135 = vmatprep.subr.mxu0 0.0
    %2136 = vmatpush1.msra.mxu0 %v2023
    %2137 = vmatprep.subr.mxu0 0.0
    %2138 = vmatpush1.msra.mxu0 %v2026
    %2139 = vmatprep.subr.mxu0 0.0
    %2140 = vmatpush1.msra.mxu0 %v2029
    %2141 = vmatprep.subr.mxu0 0.0
    %2142 = vmatpush1.msra.mxu0 %v2032
    %2143 = vmatprep.subr.mxu0 0.0
    %2144 = vmatpush1.msra.mxu0 %v2035
    %2145 = vmatprep.subr.mxu0 0.0
    %2146 = vmatpush1.msra.mxu0 %v2038
    %2147 = vmatprep.subr.mxu0 0.0
    %2148 = vmatpush1.msra.mxu0 %v2041
    %2149 = vmatprep.subr.mxu0 0.0
    %2150 = vmatpush1.msra.mxu0 %v2044
    %2151 = vmatprep.subr.mxu0 0.0
    %2152 = vmatpush1.msra.mxu0 %v2047
    %2153 = vmatprep.subr.mxu0 0.0
    %2154 = vmatpush1.msra.mxu0 %v2050
    %2155 = vmatprep.subr.mxu0 0.0
    %2156 = vmatpush1.msra.mxu0 %v2053
    %2157 = vmatprep.subr.mxu0 0.0
    %2158 = vmatpush1.msra.mxu0 0.0
    %2159 = vmatprep.subr.mxu0 0.0
    %2160 = vmatpush1.msra.mxu0 0.0
    %2161 = vmatprep.subr.mxu0 0.0
    %2162 = vmatpush1.msra.mxu0 0.0
    %2163 = vmatprep.subr.mxu0 0.0
    %2164 = vmatpush1.msra.mxu0 0.0
    %2165 = vmatprep.subr.mxu0 0.0
    %2166 = vmatpush1.msra.mxu0 0.0
    %2167 = vmatprep.subr.mxu0 0.0
    %2168 = vmatpush1.msra.mxu0 0.0
    %2169 = vmatprep.subr.mxu0 0.0
    %2170 = vmatpush1.msra.mxu0 0.0
    %2171 = vmatprep.subr.mxu0 0.0
    %2172 = vmatpush1.msra.mxu0 0.0
    %2173 = vmatprep.subr.mxu0 0.0
    %2174 = vmatpush1.msra.mxu0 0.0
    %2175 = vmatprep.subr.mxu0 0.0
    %2176 = vmatpush1.msra.mxu0 0.0
    %2177 = vmatprep.subr.mxu0 0.0
    %2178 = vmatpush1.msra.mxu0 0.0
    %2179 = vmatprep.subr.mxu0 0.0
    %2180 = vmatpush1.msra.mxu0 0.0
    %2181 = vmatprep.subr.mxu0 0.0
    %2182 = vmatpush1.msra.mxu0 0.0
    %2183 = vmatprep.subr.mxu0 0.0
    %2184 = vmatpush1.msra.mxu0 0.0
    %2185 = vmatprep.subr.mxu0 0.0
    %2186 = vmatpush1.msra.mxu0 0.0
    %2187 = vmatprep.subr.mxu0 0.0
    %2188 = vmatpush1.msra.mxu0 0.0
    %2189 = vmatprep.mubr.f32.mxu0 0.0
    %2190 = vmatmul.mubr.f32.gmra.mrb[0].mxu0 %v1997
    %v2191 = vpop.f32.mrb[0].mxu0
    %v2192 = vadd.f32 0.0, %v2191
    %v2193 = vpop.f32.mrb[0].mxu0
    %2194 = vdwg.mxu0
    %v2195 = vadd.f32 %v2003, %v2121
    %v2196 = vxor.u32 %v2195, 2147483648
    %v2197 = vmul.f32 %v2196, 1.442695
    %v2198 = vpow.pop %v2197
    %v2199 = vadd.f32 %v2198, 1.0
    %v2200 = vrcp.pop %v2199
    %v2201 = vmul.f32 1.0, %v2200
    %v2202 = vadd.f32 %v2004, %v2123
    %v2203 = vxor.u32 %v2202, 2147483648
    %v2204 = vmul.f32 %v2203, 1.442695
    %v2205 = vpow.pop %v2204
    %v2206 = vadd.f32 %v2205, 1.0
    %v2207 = vrcp.pop %v2206
    %v2208 = vmul.f32 1.0, %v2207
    %v2209 = vadd.f32 %v2192, %v472
    %v2210 = vmul.f32 %v2201, %v2209
    %v2211 = vadd.f32 %v2005, %v2210
    %v2212 = vtanh.pop %v2211
    %v2213 = vsub.f32 %v1997, %v2212
    %v2214 = vmul.f32 %v2208, %v2213
    %v2215 = vadd.f32 %v2212, %v2214
    %s2216 = scalar_lea.vmem [#allocation4], 56
    %2217 = vst [vmem:[%s2216] sm:$0xff] %v2215
    %2218 = vst [vmem:[#allocation2] sm:$0xff] %v2215
    %v2219 = vld [vmem:[#allocation4] sm:$0xff]
    %v2220 = vld [vmem:[#allocation4 + $0x8] sm:$0xff]
    %v2221 = vld [vmem:[#allocation4 + $0x10] sm:$0xff]
    %v2222 = vld [vmem:[#allocation4 + $0x18] sm:$0xff]
    %v2223 = vld [vmem:[#allocation4 + $0x20] sm:$0xff]
    %v2224 = vld [vmem:[#allocation4 + $0x28] sm:$0xff]
    %v2225 = vld [vmem:[#allocation4 + $0x30] sm:$0xff]
    %v2226 = vld [vmem:[#allocation4 + $0x38] sm:$0xff]
    %v2227 = vld [vmem:[#allocation11] sm:$0xff]
    %v2228 = vld [vmem:[#allocation11 + $0x8] sm:$0xff]
    %v2229 = vld [vmem:[#allocation11 + $0x10] sm:$0xff]
    %v2230 = vld [vmem:[#allocation11 + $0x18] sm:$0xff]
    %v2231 = vld [vmem:[#allocation11 + $0x20] sm:$0xff]
    %v2232 = vld [vmem:[#allocation11 + $0x28] sm:$0xff]
    %v2233 = vld [vmem:[#allocation11 + $0x30] sm:$0xff]
    %v2234 = vld [vmem:[#allocation11 + $0x38] sm:$0xff]
    %v2235 = vld [vmem:[#allocation11 + $0x40] sm:$0xff]
    %v2236 = vld [vmem:[#allocation11 + $0x48] sm:$0xff]
    %v2237 = vld [vmem:[#allocation11 + $0x50] sm:$0xff]
    %v2238 = vld [vmem:[#allocation11 + $0x58] sm:$0xff]
    %v2239 = vld [vmem:[#allocation11 + $0x60] sm:$0xff]
    %v2240 = vld [vmem:[#allocation11 + $0x68] sm:$0xff]
    %v2241 = vld [vmem:[#allocation11 + $0x70] sm:$0xff]
    %v2242 = vld [vmem:[#allocation11 + $0x78] sm:$0xff]
    %v2243 = vld [vmem:[#allocation11 + $0x80] sm:$0xff]
    %v2244 = vld [vmem:[#allocation11 + $0x88] sm:$0xff]
    %v2245 = vld [vmem:[#allocation11 + $0x90] sm:$0xff]
    %v2246 = vld [vmem:[#allocation11 + $0x98] sm:$0xff]
    %v2247 = vld [vmem:[#allocation11 + $0xa0] sm:$0xff]
    %v2248 = vld [vmem:[#allocation11 + $0xa8] sm:$0xff]
    %v2249 = vld [vmem:[#allocation11 + $0xb0] sm:$0xff]
    %v2250 = vld [vmem:[#allocation11 + $0xb8] sm:$0xff]
    %v2251 = vld [vmem:[#allocation11 + $0xc0] sm:$0xff]
    %v2252 = vld [vmem:[#allocation11 + $0xc8] sm:$0xff]
    %v2253 = vld [vmem:[#allocation11 + $0xd0] sm:$0xff]
    %v2254 = vld [vmem:[#allocation11 + $0xd8] sm:$0xff]
    %v2255 = vld [vmem:[#allocation11 + $0xe0] sm:$0xff]
    %v2256 = vld [vmem:[#allocation11 + $0xe8] sm:$0xff]
    %v2257 = vld [vmem:[#allocation11 + $0xf0] sm:$0xff]
    %v2258 = vld [vmem:[#allocation11 + $0xf8] sm:$0xff]
    %v2259 = vld [vmem:[#allocation11 + $0x100] sm:$0xff]
    %v2260 = vld [vmem:[#allocation11 + $0x108] sm:$0xff]
    %v2261 = vld [vmem:[#allocation11 + $0x110] sm:$0xff]
    %v2262 = vld [vmem:[#allocation11 + $0x118] sm:$0xff]
    %v2263 = vld [vmem:[#allocation11 + $0x120] sm:$0xff]
    %v2264 = vld [vmem:[#allocation11 + $0x128] sm:$0xff]
    %v2265 = vld [vmem:[#allocation11 + $0x130] sm:$0xff]
    %v2266 = vld [vmem:[#allocation11 + $0x138] sm:$0xff]
    %v2267 = vld [vmem:[#allocation11 + $0x140] sm:$0xff]
    %v2268 = vld [vmem:[#allocation11 + $0x148] sm:$0xff]
    %v2269 = vld [vmem:[#allocation11 + $0x150] sm:$0xff]
    %v2270 = vld [vmem:[#allocation11 + $0x158] sm:$0xff]
    %v2271 = vld [vmem:[#allocation11 + $0x160] sm:$0xff]
    %v2272 = vld [vmem:[#allocation11 + $0x168] sm:$0xff]
    %v2273 = vld [vmem:[#allocation11 + $0x170] sm:$0xff]
    %v2274 = vld [vmem:[#allocation11 + $0x178] sm:$0xff]
    %v2275 = vld [vmem:[%s7] sm:$0x7]
    %v2277 = vlaneseq
    %v2278 = vshrl.u32 %v2277, 7
    %v2279 = vsub.s32 0, %v2278
    %v2280 = vrot.slane %v2275, %v2279
    %v2281 = vlaneseq
    %v2282 = vshrl.u32 %v2281, 7
    %v2283 = vsub.s32 1, %v2282
    %v2284 = vrot.slane %v2275, %v2283
    %v2285 = vlaneseq
    %v2286 = vshrl.u32 %v2285, 7
    %v2287 = vsub.s32 2, %v2286
    %v2288 = vrot.slane %v2275, %v2287
    %2292 = vmatprep.subr.mxu0 %v2228
    %2293 = vmatpush1.msra.mxu0 %v2227
    %2294 = vmatprep.subr.mxu0 %v2231
    %2295 = vmatpush1.msra.mxu0 %v2230
    %2296 = vmatprep.subr.mxu0 %v2234
    %2297 = vmatpush1.msra.mxu0 %v2233
    %2298 = vmatprep.subr.mxu0 %v2237
    %2299 = vmatpush1.msra.mxu0 %v2236
    %2300 = vmatprep.subr.mxu0 %v2240
    %2301 = vmatpush1.msra.mxu0 %v2239
    %2302 = vmatprep.subr.mxu0 %v2243
    %2303 = vmatpush1.msra.mxu0 %v2242
    %2304 = vmatprep.subr.mxu0 %v2246
    %2305 = vmatpush1.msra.mxu0 %v2245
    %2306 = vmatprep.subr.mxu0 %v2249
    %2307 = vmatpush1.msra.mxu0 %v2248
    %2308 = vmatprep.subr.mxu0 %v2252
    %2309 = vmatpush1.msra.mxu0 %v2251
    %2310 = vmatprep.subr.mxu0 %v2255
    %2311 = vmatpush1.msra.mxu0 %v2254
    %2312 = vmatprep.subr.mxu0 %v2258
    %2313 = vmatpush1.msra.mxu0 %v2257
    %2314 = vmatprep.subr.mxu0 %v2261
    %2315 = vmatpush1.msra.mxu0 %v2260
    %2316 = vmatprep.subr.mxu0 %v2264
    %2317 = vmatpush1.msra.mxu0 %v2263
    %2318 = vmatprep.subr.mxu0 %v2267
    %2319 = vmatpush1.msra.mxu0 %v2266
    %2320 = vmatprep.subr.mxu0 %v2270
    %2321 = vmatpush1.msra.mxu0 %v2269
    %2322 = vmatprep.subr.mxu0 %v2273
    %2323 = vmatpush1.msra.mxu0 %v2272
    %2324 = vmatprep.subr.mxu0 0.0
    %2325 = vmatpush1.msra.mxu0 0.0
    %2326 = vmatprep.subr.mxu0 0.0
    %2327 = vmatpush1.msra.mxu0 0.0
    %2328 = vmatprep.subr.mxu0 0.0
    %2329 = vmatpush1.msra.mxu0 0.0
    %2330 = vmatprep.subr.mxu0 0.0
    %2331 = vmatpush1.msra.mxu0 0.0
    %2332 = vmatprep.subr.mxu0 0.0
    %2333 = vmatpush1.msra.mxu0 0.0
    %2334 = vmatprep.subr.mxu0 0.0
    %2335 = vmatpush1.msra.mxu0 0.0
    %2336 = vmatprep.subr.mxu0 0.0
    %2337 = vmatpush1.msra.mxu0 0.0
    %2338 = vmatprep.subr.mxu0 0.0
    %2339 = vmatpush1.msra.mxu0 0.0
    %2340 = vmatprep.subr.mxu0 0.0
    %2341 = vmatpush1.msra.mxu0 0.0
    %2342 = vmatprep.subr.mxu0 0.0
    %2343 = vmatpush1.msra.mxu0 0.0
    %2344 = vmatprep.subr.mxu0 0.0
    %2345 = vmatpush1.msra.mxu0 0.0
    %2346 = vmatprep.subr.mxu0 0.0
    %2347 = vmatpush1.msra.mxu0 0.0
    %2348 = vmatprep.subr.mxu0 0.0
    %2349 = vmatpush1.msra.mxu0 0.0
    %2350 = vmatprep.subr.mxu0 0.0
    %2351 = vmatpush1.msra.mxu0 0.0
    %2352 = vmatprep.subr.mxu0 0.0
    %2353 = vmatpush1.msra.mxu0 0.0
    %2354 = vmatprep.subr.mxu0 0.0
    %2355 = vmatpush1.msra.mxu0 0.0
    %2356 = vmatprep.mubr.f32.mxu0 0.0
    %2357 = vmatmul.mubr.f32.gmra.mrb[0].mxu0 %v2219
    %v2358 = vpop.f32.mrb[0].mxu0
    %v2359 = vadd.f32 %v2280, %v2358
    %v2360 = vpop.f32.mrb[0].mxu0
    %v2361 = vadd.f32 %v2284, %v2360
    %2362 = vmatprep.mubr.f32.mxu0 0.0
    %2363 = vmatmul.mubr.f32.gmra.mrb[0].mxu0 %v2220
    %v2364 = vpop.f32.mrb[0].mxu0
    %v2365 = vadd.f32 %v2280, %v2364
    %v2366 = vpop.f32.mrb[0].mxu0
    %v2367 = vadd.f32 %v2284, %v2366
    %2368 = vmatprep.mubr.f32.mxu0 0.0
    %2369 = vmatmul.mubr.f32.gmra.mrb[0].mxu0 %v2221
    %v2370 = vpop.f32.mrb[0].mxu0
    %v2371 = vadd.f32 %v2280, %v2370
    %v2372 = vpop.f32.mrb[0].mxu0
    %v2373 = vadd.f32 %v2284, %v2372
    %2374 = vmatprep.mubr.f32.mxu0 0.0
    %2375 = vmatmul.mubr.f32.gmra.mrb[0].mxu0 %v2222
    %v2376 = vpop.f32.mrb[0].mxu0
    %v2377 = vadd.f32 %v2280, %v2376
    %v2378 = vpop.f32.mrb[0].mxu0
    %v2379 = vadd.f32 %v2284, %v2378
    %2380 = vmatprep.mubr.f32.mxu0 0.0
    %2381 = vmatmul.mubr.f32.gmra.mrb[0].mxu0 %v2223
    %v2382 = vpop.f32.mrb[0].mxu0
    %v2383 = vadd.f32 %v2280, %v2382
    %v2384 = vpop.f32.mrb[0].mxu0
    %v2385 = vadd.f32 %v2284, %v2384
    %2386 = vmatprep.mubr.f32.mxu0 0.0
    %2387 = vmatmul.mubr.f32.gmra.mrb[0].mxu0 %v2224
    %v2388 = vpop.f32.mrb[0].mxu0
    %v2389 = vadd.f32 %v2280, %v2388
    %v2390 = vpop.f32.mrb[0].mxu0
    %v2391 = vadd.f32 %v2284, %v2390
    %2392 = vmatprep.mubr.f32.mxu0 0.0
    %2393 = vmatmul.mubr.f32.gmra.mrb[0].mxu0 %v2225
    %v2394 = vpop.f32.mrb[0].mxu0
    %v2395 = vadd.f32 %v2280, %v2394
    %v2396 = vpop.f32.mrb[0].mxu0
    %v2397 = vadd.f32 %v2284, %v2396
    %2398 = vmatprep.mubr.f32.mxu0 0.0
    %2399 = vmatmul.mubr.f32.gmra.mrb[0].mxu0 %v2226
    %v2400 = vpop.f32.mrb[0].mxu0
    %v2401 = vadd.f32 %v2280, %v2400
    %v2402 = vpop.f32.mrb[0].mxu0
    %v2403 = vadd.f32 %v2284, %v2402
    %2404 = vdwg.mxu0
    %2405 = vmatprep.subr.mxu0 0.0
    %2406 = vmatpush1.msra.mxu0 %v2229
    %2407 = vmatprep.subr.mxu0 0.0
    %2408 = vmatpush1.msra.mxu0 %v2232
    %2409 = vmatprep.subr.mxu0 0.0
    %2410 = vmatpush1.msra.mxu0 %v2235
    %2411 = vmatprep.subr.mxu0 0.0
    %2412 = vmatpush1.msra.mxu0 %v2238
    %2413 = vmatprep.subr.mxu0 0.0
    %2414 = vmatpush1.msra.mxu0 %v2241
    %2415 = vmatprep.subr.mxu0 0.0
    %2416 = vmatpush1.msra.mxu0 %v2244
    %2417 = vmatprep.subr.mxu0 0.0
    %2418 = vmatpush1.msra.mxu0 %v2247
    %2419 = vmatprep.subr.mxu0 0.0
    %2420 = vmatpush1.msra.mxu0 %v2250
    %2421 = vmatprep.subr.mxu0 0.0
    %2422 = vmatpush1.msra.mxu0 %v2253
    %2423 = vmatprep.subr.mxu0 0.0
    %2424 = vmatpush1.msra.mxu0 %v2256
    %2425 = vmatprep.subr.mxu0 0.0
    %2426 = vmatpush1.msra.mxu0 %v2259
    %2427 = vmatprep.subr.mxu0 0.0
    %2428 = vmatpush1.msra.mxu0 %v2262
    %2429 = vmatprep.subr.mxu0 0.0
    %2430 = vmatpush1.msra.mxu0 %v2265
    %2431 = vmatprep.subr.mxu0 0.0
    %2432 = vmatpush1.msra.mxu0 %v2268
    %2433 = vmatprep.subr.mxu0 0.0
    %2434 = vmatpush1.msra.mxu0 %v2271
    %2435 = vmatprep.subr.mxu0 0.0
    %2436 = vmatpush1.msra.mxu0 %v2274
    %2437 = vmatprep.subr.mxu0 0.0
    %2438 = vmatpush1.msra.mxu0 0.0
    %2439 = vmatprep.subr.mxu0 0.0
    %2440 = vmatpush1.msra.mxu0 0.0
    %2441 = vmatprep.subr.mxu0 0.0
    %2442 = vmatpush1.msra.mxu0 0.0
    %2443 = vmatprep.subr.mxu0 0.0
    %2444 = vmatpush1.msra.mxu0 0.0
    %2445 = vmatprep.subr.mxu0 0.0
    %2446 = vmatpush1.msra.mxu0 0.0
    %2447 = vmatprep.subr.mxu0 0.0
    %2448 = vmatpush1.msra.mxu0 0.0
    %2449 = vmatprep.subr.mxu0 0.0
    %2450 = vmatpush1.msra.mxu0 0.0
    %2451 = vmatprep.subr.mxu0 0.0
    %2452 = vmatpush1.msra.mxu0 0.0
    %2453 = vmatprep.subr.mxu0 0.0
    %2454 = vmatpush1.msra.mxu0 0.0
    %2455 = vmatprep.subr.mxu0 0.0
    %2456 = vmatpush1.msra.mxu0 0.0
    %2457 = vmatprep.subr.mxu0 0.0
    %2458 = vmatpush1.msra.mxu0 0.0
    %2459 = vmatprep.subr.mxu0 0.0
    %2460 = vmatpush1.msra.mxu0 0.0
    %2461 = vmatprep.subr.mxu0 0.0
    %2462 = vmatpush1.msra.mxu0 0.0
    %2463 = vmatprep.subr.mxu0 0.0
    %2464 = vmatpush1.msra.mxu0 0.0
    %2465 = vmatprep.subr.mxu0 0.0
    %2466 = vmatpush1.msra.mxu0 0.0
    %2467 = vmatprep.subr.mxu0 0.0
    %2468 = vmatpush1.msra.mxu0 0.0
    %2469 = vmatprep.mubr.f32.mxu0 0.0
    %2470 = vmatmul.mubr.f32.gmra.mrb[0].mxu0 %v2219
    %v2471 = vpop.f32.mrb[0].mxu0
    %v2472 = vadd.f32 %v2288, %v2471
    %v2473 = vpop.f32.mrb[0].mxu0
    %2474 = vmatprep.mubr.f32.mxu0 0.0
    %2475 = vmatmul.mubr.f32.gmra.mrb[0].mxu0 %v2220
    %v2476 = vpop.f32.mrb[0].mxu0
    %v2477 = vadd.f32 %v2288, %v2476
    %v2478 = vpop.f32.mrb[0].mxu0
    %2479 = vmatprep.mubr.f32.mxu0 0.0
    %2480 = vmatmul.mubr.f32.gmra.mrb[0].mxu0 %v2221
    %v2481 = vpop.f32.mrb[0].mxu0
    %v2482 = vadd.f32 %v2288, %v2481
    %v2483 = vpop.f32.mrb[0].mxu0
    %2484 = vmatprep.mubr.f32.mxu0 0.0
    %2485 = vmatmul.mubr.f32.gmra.mrb[0].mxu0 %v2222
    %v2486 = vpop.f32.mrb[0].mxu0
    %v2487 = vadd.f32 %v2288, %v2486
    %v2488 = vpop.f32.mrb[0].mxu0
    %2489 = vmatprep.mubr.f32.mxu0 0.0
    %2490 = vmatmul.mubr.f32.gmra.mrb[0].mxu0 %v2223
    %v2491 = vpop.f32.mrb[0].mxu0
    %v2492 = vadd.f32 %v2288, %v2491
    %v2493 = vpop.f32.mrb[0].mxu0
    %2494 = vmatprep.mubr.f32.mxu0 0.0
    %2495 = vmatmul.mubr.f32.gmra.mrb[0].mxu0 %v2224
    %v2496 = vpop.f32.mrb[0].mxu0
    %v2497 = vadd.f32 %v2288, %v2496
    %v2498 = vpop.f32.mrb[0].mxu0
    %2499 = vmatprep.mubr.f32.mxu0 0.0
    %2500 = vmatmul.mubr.f32.gmra.mrb[0].mxu0 %v2225
    %v2501 = vpop.f32.mrb[0].mxu0
    %v2502 = vadd.f32 %v2288, %v2501
    %v2503 = vpop.f32.mrb[0].mxu0
    %2504 = vmatprep.mubr.f32.mxu0 0.0
    %2505 = vmatmul.mubr.f32.gmra.mrb[0].mxu0 %v2226
    %v2506 = vpop.f32.mrb[0].mxu0
    %v2507 = vadd.f32 %v2288, %v2506
    %v2508 = vpop.f32.mrb[0].mxu0
    %2509 = vdwg.mxu0
    %2510 = vst [vmem:[#allocation3] sm:$0xff] %v2359
    %2511 = vst [vmem:[#allocation3 + $0x8] sm:$0xff] %v2361
    %2512 = vst [vmem:[#allocation3 + $0x10] sm:$0xff] %v2472
    %2513 = vst [vmem:[#allocation3 + $0x18] sm:$0xff] %v2365
    %2514 = vst [vmem:[#allocation3 + $0x20] sm:$0xff] %v2367
    %2515 = vst [vmem:[#allocation3 + $0x28] sm:$0xff] %v2477
    %2516 = vst [vmem:[#allocation3 + $0x30] sm:$0xff] %v2371
    %2517 = vst [vmem:[#allocation3 + $0x38] sm:$0xff] %v2373
    %2518 = vst [vmem:[#allocation3 + $0x40] sm:$0xff] %v2482
    %2519 = vst [vmem:[#allocation3 + $0x48] sm:$0xff] %v2377
    %2520 = vst [vmem:[#allocation3 + $0x50] sm:$0xff] %v2379
    %2521 = vst [vmem:[#allocation3 + $0x58] sm:$0xff] %v2487
    %2522 = vst [vmem:[#allocation3 + $0x60] sm:$0xff] %v2383
    %2523 = vst [vmem:[#allocation3 + $0x68] sm:$0xff] %v2385
    %2524 = vst [vmem:[#allocation3 + $0x70] sm:$0xff] %v2492
    %2525 = vst [vmem:[#allocation3 + $0x78] sm:$0xff] %v2389
    %2526 = vst [vmem:[#allocation3 + $0x80] sm:$0xff] %v2391
    %2527 = vst [vmem:[#allocation3 + $0x88] sm:$0xff] %v2497
    %2528 = vst [vmem:[#allocation3 + $0x90] sm:$0xff] %v2395
    %2529 = vst [vmem:[#allocation3 + $0x98] sm:$0xff] %v2397
    %2530 = vst [vmem:[#allocation3 + $0xa0] sm:$0xff] %v2502
    %2531 = vst [vmem:[#allocation3 + $0xa8] sm:$0xff] %v2401
    %2532 = vst [vmem:[#allocation3 + $0xb0] sm:$0xff] %v2403
    %2533 = vst [vmem:[#allocation3 + $0xb8] sm:$0xff] %v2507
    %v2534 = vld [vmem:[%s8] sm:$0x1]
    %v2536 = vlaneseq
    %v2537 = vshrl.u32 %v2536, 7
    %v2538 = vsub.s32 0, %v2537
    %v2539 = vrot.slane %v2534, %v2538
    %s2541 = scalar_lea.vmem [#allocation2], 8
    %v2542 = vld [vmem:[%s2541] sm:$0xff]
    %v2543 = vld [vmem:[%s477] sm:$0xff]
    %v2544 = vld [vmem:[%s477 + $0x8] sm:$0xff]
    %v2545 = vld [vmem:[%s477 + $0x10] sm:$0xff]
    %v2546 = vld [vmem:[#allocation13] sm:$0xff]
    %v2547 = vld [vmem:[#allocation13 + $0x8] sm:$0xff]
    %v2548 = vld [vmem:[#allocation13 + $0x10] sm:$0xff]
    %v2549 = vld [vmem:[#allocation13 + $0x18] sm:$0xff]
    %v2550 = vld [vmem:[#allocation13 + $0x20] sm:$0xff]
    %v2551 = vld [vmem:[#allocation13 + $0x28] sm:$0xff]
    %v2552 = vld [vmem:[#allocation13 + $0x30] sm:$0xff]
    %v2553 = vld [vmem:[#allocation13 + $0x38] sm:$0xff]
    %v2554 = vld [vmem:[#allocation13 + $0x40] sm:$0xff]
    %v2555 = vld [vmem:[#allocation13 + $0x48] sm:$0xff]
    %v2556 = vld [vmem:[#allocation13 + $0x50] sm:$0xff]
    %v2557 = vld [vmem:[#allocation13 + $0x58] sm:$0xff]
    %v2558 = vld [vmem:[#allocation13 + $0x60] sm:$0xff]
    %v2559 = vld [vmem:[#allocation13 + $0x68] sm:$0xff]
    %v2560 = vld [vmem:[#allocation13 + $0x70] sm:$0xff]
    %v2561 = vld [vmem:[#allocation13 + $0x78] sm:$0xff]
    %v2562 = vld [vmem:[#allocation13 + $0x80] sm:$0xff]
    %v2563 = vld [vmem:[#allocation13 + $0x88] sm:$0xff]
    %v2564 = vld [vmem:[#allocation13 + $0x90] sm:$0xff]
    %v2565 = vld [vmem:[#allocation13 + $0x98] sm:$0xff]
    %v2566 = vld [vmem:[#allocation13 + $0xa0] sm:$0xff]
    %v2567 = vld [vmem:[#allocation13 + $0xa8] sm:$0xff]
    %v2568 = vld [vmem:[#allocation13 + $0xb0] sm:$0xff]
    %v2569 = vld [vmem:[#allocation13 + $0xb8] sm:$0xff]
    %v2570 = vld [vmem:[#allocation13 + $0xc0] sm:$0xff]
    %v2571 = vld [vmem:[#allocation13 + $0xc8] sm:$0xff]
    %v2572 = vld [vmem:[#allocation13 + $0xd0] sm:$0xff]
    %v2573 = vld [vmem:[#allocation13 + $0xd8] sm:$0xff]
    %v2574 = vld [vmem:[#allocation13 + $0xe0] sm:$0xff]
    %v2575 = vld [vmem:[#allocation13 + $0xe8] sm:$0xff]
    %v2576 = vld [vmem:[#allocation13 + $0xf0] sm:$0xff]
    %v2577 = vld [vmem:[#allocation13 + $0xf8] sm:$0xff]
    %v2578 = vld [vmem:[#allocation13 + $0x100] sm:$0xff]
    %v2579 = vld [vmem:[#allocation13 + $0x108] sm:$0xff]
    %v2580 = vld [vmem:[#allocation13 + $0x110] sm:$0xff]
    %v2581 = vld [vmem:[#allocation13 + $0x118] sm:$0xff]
    %v2582 = vld [vmem:[#allocation13 + $0x120] sm:$0xff]
    %v2583 = vld [vmem:[#allocation13 + $0x128] sm:$0xff]
    %v2584 = vld [vmem:[#allocation13 + $0x130] sm:$0xff]
    %v2585 = vld [vmem:[#allocation13 + $0x138] sm:$0xff]
    %v2586 = vld [vmem:[#allocation13 + $0x140] sm:$0xff]
    %v2587 = vld [vmem:[#allocation13 + $0x148] sm:$0xff]
    %v2588 = vld [vmem:[#allocation13 + $0x150] sm:$0xff]
    %v2589 = vld [vmem:[#allocation13 + $0x158] sm:$0xff]
    %v2590 = vld [vmem:[#allocation13 + $0x160] sm:$0xff]
    %v2591 = vld [vmem:[#allocation13 + $0x168] sm:$0xff]
    %v2592 = vld [vmem:[#allocation13 + $0x170] sm:$0xff]
    %v2593 = vld [vmem:[#allocation13 + $0x178] sm:$0xff]
    %2594 = vmatprep.subr.mxu0 %v2547
    %2595 = vmatpush1.msra.mxu0 %v2546
    %2596 = vmatprep.subr.mxu0 %v2550
    %2597 = vmatpush1.msra.mxu0 %v2549
    %2598 = vmatprep.subr.mxu0 %v2553
    %2599 = vmatpush1.msra.mxu0 %v2552
    %2600 = vmatprep.subr.mxu0 %v2556
    %2601 = vmatpush1.msra.mxu0 %v2555
    %2602 = vmatprep.subr.mxu0 %v2559
    %2603 = vmatpush1.msra.mxu0 %v2558
    %2604 = vmatprep.subr.mxu0 %v2562
    %2605 = vmatpush1.msra.mxu0 %v2561
    %2606 = vmatprep.subr.mxu0 %v2565
    %2607 = vmatpush1.msra.mxu0 %v2564
    %2608 = vmatprep.subr.mxu0 %v2568
    %2609 = vmatpush1.msra.mxu0 %v2567
    %2610 = vmatprep.subr.mxu0 %v2571
    %2611 = vmatpush1.msra.mxu0 %v2570
    %2612 = vmatprep.subr.mxu0 %v2574
    %2613 = vmatpush1.msra.mxu0 %v2573
    %2614 = vmatprep.subr.mxu0 %v2577
    %2615 = vmatpush1.msra.mxu0 %v2576
    %2616 = vmatprep.subr.mxu0 %v2580
    %2617 = vmatpush1.msra.mxu0 %v2579
    %2618 = vmatprep.subr.mxu0 %v2583
    %2619 = vmatpush1.msra.mxu0 %v2582
    %2620 = vmatprep.subr.mxu0 %v2586
    %2621 = vmatpush1.msra.mxu0 %v2585
    %2622 = vmatprep.subr.mxu0 %v2589
    %2623 = vmatpush1.msra.mxu0 %v2588
    %2624 = vmatprep.subr.mxu0 %v2592
    %2625 = vmatpush1.msra.mxu0 %v2591
    %2626 = vmatprep.subr.mxu0 0.0
    %2627 = vmatpush1.msra.mxu0 0.0
    %2628 = vmatprep.subr.mxu0 0.0
    %2629 = vmatpush1.msra.mxu0 0.0
    %2630 = vmatprep.subr.mxu0 0.0
    %2631 = vmatpush1.msra.mxu0 0.0
    %2632 = vmatprep.subr.mxu0 0.0
    %2633 = vmatpush1.msra.mxu0 0.0
    %2634 = vmatprep.subr.mxu0 0.0
    %2635 = vmatpush1.msra.mxu0 0.0
    %2636 = vmatprep.subr.mxu0 0.0
    %2637 = vmatpush1.msra.mxu0 0.0
    %2638 = vmatprep.subr.mxu0 0.0
    %2639 = vmatpush1.msra.mxu0 0.0
    %2640 = vmatprep.subr.mxu0 0.0
    %2641 = vmatpush1.msra.mxu0 0.0
    %2642 = vmatprep.subr.mxu0 0.0
    %2643 = vmatpush1.msra.mxu0 0.0
    %2644 = vmatprep.subr.mxu0 0.0
    %2645 = vmatpush1.msra.mxu0 0.0
    %2646 = vmatprep.subr.mxu0 0.0
    %2647 = vmatpush1.msra.mxu0 0.0
    %2648 = vmatprep.subr.mxu0 0.0
    %2649 = vmatpush1.msra.mxu0 0.0
    %2650 = vmatprep.subr.mxu0 0.0
    %2651 = vmatpush1.msra.mxu0 0.0
    %2652 = vmatprep.subr.mxu0 0.0
    %2653 = vmatpush1.msra.mxu0 0.0
    %2654 = vmatprep.subr.mxu0 0.0
    %2655 = vmatpush1.msra.mxu0 0.0
    %2656 = vmatprep.subr.mxu0 0.0
    %2657 = vmatpush1.msra.mxu0 0.0
    %2658 = vmatprep.mubr.f32.mxu0 0.0
    %2659 = vmatmul.mubr.f32.gmra.mrb[0].mxu0 %v2542
    %v2660 = vpop.f32.mrb[0].mxu0
    %v2661 = vadd.f32 0.0, %v2660
    %v2662 = vpop.f32.mrb[0].mxu0
    %v2663 = vadd.f32 0.0, %v2662
    %2664 = vdwg.mxu0
    %2665 = vmatprep.subr.mxu0 0.0
    %2666 = vmatpush1.msra.mxu0 %v2548
    %2667 = vmatprep.subr.mxu0 0.0
    %2668 = vmatpush1.msra.mxu0 %v2551
    %2669 = vmatprep.subr.mxu0 0.0
    %2670 = vmatpush1.msra.mxu0 %v2554
    %2671 = vmatprep.subr.mxu0 0.0
    %2672 = vmatpush1.msra.mxu0 %v2557
    %2673 = vmatprep.subr.mxu0 0.0
    %2674 = vmatpush1.msra.mxu0 %v2560
    %2675 = vmatprep.subr.mxu0 0.0
    %2676 = vmatpush1.msra.mxu0 %v2563
    %2677 = vmatprep.subr.mxu0 0.0
    %2678 = vmatpush1.msra.mxu0 %v2566
    %2679 = vmatprep.subr.mxu0 0.0
    %2680 = vmatpush1.msra.mxu0 %v2569
    %2681 = vmatprep.subr.mxu0 0.0
    %2682 = vmatpush1.msra.mxu0 %v2572
    %2683 = vmatprep.subr.mxu0 0.0
    %2684 = vmatpush1.msra.mxu0 %v2575
    %2685 = vmatprep.subr.mxu0 0.0
    %2686 = vmatpush1.msra.mxu0 %v2578
    %2687 = vmatprep.subr.mxu0 0.0
    %2688 = vmatpush1.msra.mxu0 %v2581
    %2689 = vmatprep.subr.mxu0 0.0
    %2690 = vmatpush1.msra.mxu0 %v2584
    %2691 = vmatprep.subr.mxu0 0.0
    %2692 = vmatpush1.msra.mxu0 %v2587
    %2693 = vmatprep.subr.mxu0 0.0
    %2694 = vmatpush1.msra.mxu0 %v2590
    %2695 = vmatprep.subr.mxu0 0.0
    %2696 = vmatpush1.msra.mxu0 %v2593
    %2697 = vmatprep.subr.mxu0 0.0
    %2698 = vmatpush1.msra.mxu0 0.0
    %2699 = vmatprep.subr.mxu0 0.0
    %2700 = vmatpush1.msra.mxu0 0.0
    %2701 = vmatprep.subr.mxu0 0.0
    %2702 = vmatpush1.msra.mxu0 0.0
    %2703 = vmatprep.subr.mxu0 0.0
    %2704 = vmatpush1.msra.mxu0 0.0
    %2705 = vmatprep.subr.mxu0 0.0
    %2706 = vmatpush1.msra.mxu0 0.0
    %2707 = vmatprep.subr.mxu0 0.0
    %2708 = vmatpush1.msra.mxu0 0.0
    %2709 = vmatprep.subr.mxu0 0.0
    %2710 = vmatpush1.msra.mxu0 0.0
    %2711 = vmatprep.subr.mxu0 0.0
    %2712 = vmatpush1.msra.mxu0 0.0
    %2713 = vmatprep.subr.mxu0 0.0
    %2714 = vmatpush1.msra.mxu0 0.0
    %2715 = vmatprep.subr.mxu0 0.0
    %2716 = vmatpush1.msra.mxu0 0.0
    %2717 = vmatprep.subr.mxu0 0.0
    %2718 = vmatpush1.msra.mxu0 0.0
    %2719 = vmatprep.subr.mxu0 0.0
    %2720 = vmatpush1.msra.mxu0 0.0
    %2721 = vmatprep.subr.mxu0 0.0
    %2722 = vmatpush1.msra.mxu0 0.0
    %2723 = vmatprep.subr.mxu0 0.0
    %2724 = vmatpush1.msra.mxu0 0.0
    %2725 = vmatprep.subr.mxu0 0.0
    %2726 = vmatpush1.msra.mxu0 0.0
    %2727 = vmatprep.subr.mxu0 0.0
    %2728 = vmatpush1.msra.mxu0 0.0
    %2729 = vmatprep.mubr.f32.mxu0 0.0
    %2730 = vmatmul.mubr.f32.gmra.mrb[0].mxu0 %v2542
    %v2731 = vpop.f32.mrb[0].mxu0
    %v2732 = vadd.f32 0.0, %v2731
    %v2733 = vpop.f32.mrb[0].mxu0
    %2734 = vdwg.mxu0
    %v2735 = vadd.f32 %v2543, %v2661
    %v2736 = vxor.u32 %v2735, 2147483648
    %v2737 = vmul.f32 %v2736, 1.442695
    %v2738 = vpow.pop %v2737
    %v2739 = vadd.f32 %v2738, 1.0
    %v2740 = vrcp.pop %v2739
    %v2741 = vmul.f32 1.0, %v2740
    %v2742 = vadd.f32 %v2544, %v2663
    %v2743 = vxor.u32 %v2742, 2147483648
    %v2744 = vmul.f32 %v2743, 1.442695
    %v2745 = vpow.pop %v2744
    %v2746 = vadd.f32 %v2745, 1.0
    %v2747 = vrcp.pop %v2746
    %v2748 = vmul.f32 1.0, %v2747
    %v2749 = vadd.f32 %v2732, %v2539
    %v2750 = vmul.f32 %v2741, %v2749
    %v2751 = vadd.f32 %v2545, %v2750
    %v2752 = vtanh.pop %v2751
    %v2753 = vsub.f32 %v2542, %v2752
    %v2754 = vmul.f32 %v2748, %v2753
    %v2755 = vadd.f32 %v2752, %v2754
    %v2756 = vld [vmem:[%s694] sm:$0xff]
    %v2757 = vld [vmem:[%s694 + $0x8] sm:$0xff]
    %v2758 = vld [vmem:[%s694 + $0x10] sm:$0xff]
    %2759 = vmatprep.subr.mxu0 %v2547
    %2760 = vmatpush1.msra.mxu0 %v2546
    %2761 = vmatprep.subr.mxu0 %v2550
    %2762 = vmatpush1.msra.mxu0 %v2549
    %2763 = vmatprep.subr.mxu0 %v2553
    %2764 = vmatpush1.msra.mxu0 %v2552
    %2765 = vmatprep.subr.mxu0 %v2556
    %2766 = vmatpush1.msra.mxu0 %v2555
    %2767 = vmatprep.subr.mxu0 %v2559
    %2768 = vmatpush1.msra.mxu0 %v2558
    %2769 = vmatprep.subr.mxu0 %v2562
    %2770 = vmatpush1.msra.mxu0 %v2561
    %2771 = vmatprep.subr.mxu0 %v2565
    %2772 = vmatpush1.msra.mxu0 %v2564
    %2773 = vmatprep.subr.mxu0 %v2568
    %2774 = vmatpush1.msra.mxu0 %v2567
    %2775 = vmatprep.subr.mxu0 %v2571
    %2776 = vmatpush1.msra.mxu0 %v2570
    %2777 = vmatprep.subr.mxu0 %v2574
    %2778 = vmatpush1.msra.mxu0 %v2573
    %2779 = vmatprep.subr.mxu0 %v2577
    %2780 = vmatpush1.msra.mxu0 %v2576
    %2781 = vmatprep.subr.mxu0 %v2580
    %2782 = vmatpush1.msra.mxu0 %v2579
    %2783 = vmatprep.subr.mxu0 %v2583
    %2784 = vmatpush1.msra.mxu0 %v2582
    %2785 = vmatprep.subr.mxu0 %v2586
    %2786 = vmatpush1.msra.mxu0 %v2585
    %2787 = vmatprep.subr.mxu0 %v2589
    %2788 = vmatpush1.msra.mxu0 %v2588
    %2789 = vmatprep.subr.mxu0 %v2592
    %2790 = vmatpush1.msra.mxu0 %v2591
    %2791 = vmatprep.subr.mxu0 0.0
    %2792 = vmatpush1.msra.mxu0 0.0
    %2793 = vmatprep.subr.mxu0 0.0
    %2794 = vmatpush1.msra.mxu0 0.0
    %2795 = vmatprep.subr.mxu0 0.0
    %2796 = vmatpush1.msra.mxu0 0.0
    %2797 = vmatprep.subr.mxu0 0.0
    %2798 = vmatpush1.msra.mxu0 0.0
    %2799 = vmatprep.subr.mxu0 0.0
    %2800 = vmatpush1.msra.mxu0 0.0
    %2801 = vmatprep.subr.mxu0 0.0
    %2802 = vmatpush1.msra.mxu0 0.0
    %2803 = vmatprep.subr.mxu0 0.0
    %2804 = vmatpush1.msra.mxu0 0.0
    %2805 = vmatprep.subr.mxu0 0.0
    %2806 = vmatpush1.msra.mxu0 0.0
    %2807 = vmatprep.subr.mxu0 0.0
    %2808 = vmatpush1.msra.mxu0 0.0
    %2809 = vmatprep.subr.mxu0 0.0
    %2810 = vmatpush1.msra.mxu0 0.0
    %2811 = vmatprep.subr.mxu0 0.0
    %2812 = vmatpush1.msra.mxu0 0.0
    %2813 = vmatprep.subr.mxu0 0.0
    %2814 = vmatpush1.msra.mxu0 0.0
    %2815 = vmatprep.subr.mxu0 0.0
    %2816 = vmatpush1.msra.mxu0 0.0
    %2817 = vmatprep.subr.mxu0 0.0
    %2818 = vmatpush1.msra.mxu0 0.0
    %2819 = vmatprep.subr.mxu0 0.0
    %2820 = vmatpush1.msra.mxu0 0.0
    %2821 = vmatprep.subr.mxu0 0.0
    %2822 = vmatpush1.msra.mxu0 0.0
    %2823 = vmatprep.mubr.f32.mxu0 0.0
    %2824 = vmatmul.mubr.f32.gmra.mrb[0].mxu0 %v2755
    %v2825 = vpop.f32.mrb[0].mxu0
    %v2826 = vadd.f32 0.0, %v2825
    %v2827 = vpop.f32.mrb[0].mxu0
    %v2828 = vadd.f32 0.0, %v2827
    %2829 = vdwg.mxu0
    %2830 = vmatprep.subr.mxu0 0.0
    %2831 = vmatpush1.msra.mxu0 %v2548
    %2832 = vmatprep.subr.mxu0 0.0
    %2833 = vmatpush1.msra.mxu0 %v2551
    %2834 = vmatprep.subr.mxu0 0.0
    %2835 = vmatpush1.msra.mxu0 %v2554
    %2836 = vmatprep.subr.mxu0 0.0
    %2837 = vmatpush1.msra.mxu0 %v2557
    %2838 = vmatprep.subr.mxu0 0.0
    %2839 = vmatpush1.msra.mxu0 %v2560
    %2840 = vmatprep.subr.mxu0 0.0
    %2841 = vmatpush1.msra.mxu0 %v2563
    %2842 = vmatprep.subr.mxu0 0.0
    %2843 = vmatpush1.msra.mxu0 %v2566
    %2844 = vmatprep.subr.mxu0 0.0
    %2845 = vmatpush1.msra.mxu0 %v2569
    %2846 = vmatprep.subr.mxu0 0.0
    %2847 = vmatpush1.msra.mxu0 %v2572
    %2848 = vmatprep.subr.mxu0 0.0
    %2849 = vmatpush1.msra.mxu0 %v2575
    %2850 = vmatprep.subr.mxu0 0.0
    %2851 = vmatpush1.msra.mxu0 %v2578
    %2852 = vmatprep.subr.mxu0 0.0
    %2853 = vmatpush1.msra.mxu0 %v2581
    %2854 = vmatprep.subr.mxu0 0.0
    %2855 = vmatpush1.msra.mxu0 %v2584
    %2856 = vmatprep.subr.mxu0 0.0
    %2857 = vmatpush1.msra.mxu0 %v2587
    %2858 = vmatprep.subr.mxu0 0.0
    %2859 = vmatpush1.msra.mxu0 %v2590
    %2860 = vmatprep.subr.mxu0 0.0
    %2861 = vmatpush1.msra.mxu0 %v2593
    %2862 = vmatprep.subr.mxu0 0.0
    %2863 = vmatpush1.msra.mxu0 0.0
    %2864 = vmatprep.subr.mxu0 0.0
    %2865 = vmatpush1.msra.mxu0 0.0
    %2866 = vmatprep.subr.mxu0 0.0
    %2867 = vmatpush1.msra.mxu0 0.0
    %2868 = vmatprep.subr.mxu0 0.0
    %2869 = vmatpush1.msra.mxu0 0.0
    %2870 = vmatprep.subr.mxu0 0.0
    %2871 = vmatpush1.msra.mxu0 0.0
    %2872 = vmatprep.subr.mxu0 0.0
    %2873 = vmatpush1.msra.mxu0 0.0
    %2874 = vmatprep.subr.mxu0 0.0
    %2875 = vmatpush1.msra.mxu0 0.0
    %2876 = vmatprep.subr.mxu0 0.0
    %2877 = vmatpush1.msra.mxu0 0.0
    %2878 = vmatprep.subr.mxu0 0.0
    %2879 = vmatpush1.msra.mxu0 0.0
    %2880 = vmatprep.subr.mxu0 0.0
    %2881 = vmatpush1.msra.mxu0 0.0
    %2882 = vmatprep.subr.mxu0 0.0
    %2883 = vmatpush1.msra.mxu0 0.0
    %2884 = vmatprep.subr.mxu0 0.0
    %2885 = vmatpush1.msra.mxu0 0.0
    %2886 = vmatprep.subr.mxu0 0.0
    %2887 = vmatpush1.msra.mxu0 0.0
    %2888 = vmatprep.subr.mxu0 0.0
    %2889 = vmatpush1.msra.mxu0 0.0
    %2890 = vmatprep.subr.mxu0 0.0
    %2891 = vmatpush1.msra.mxu0 0.0
    %2892 = vmatprep.subr.mxu0 0.0
    %2893 = vmatpush1.msra.mxu0 0.0
    %2894 = vmatprep.mubr.f32.mxu0 0.0
    %2895 = vmatmul.mubr.f32.gmra.mrb[0].mxu0 %v2755
    %v2896 = vpop.f32.mrb[0].mxu0
    %v2897 = vadd.f32 0.0, %v2896
    %v2898 = vpop.f32.mrb[0].mxu0
    %2899 = vdwg.mxu0
    %v2900 = vadd.f32 %v2756, %v2826
    %v2901 = vxor.u32 %v2900, 2147483648
    %v2902 = vmul.f32 %v2901, 1.442695
    %v2903 = vpow.pop %v2902
    %v2904 = vadd.f32 %v2903, 1.0
    %v2905 = vrcp.pop %v2904
    %v2906 = vmul.f32 1.0, %v2905
    %v2907 = vadd.f32 %v2757, %v2828
    %v2908 = vxor.u32 %v2907, 2147483648
    %v2909 = vmul.f32 %v2908, 1.442695
    %v2910 = vpow.pop %v2909
    %v2911 = vadd.f32 %v2910, 1.0
    %v2912 = vrcp.pop %v2911
    %v2913 = vmul.f32 1.0, %v2912
    %v2914 = vadd.f32 %v2897, %v2539
    %v2915 = vmul.f32 %v2906, %v2914
    %v2916 = vadd.f32 %v2758, %v2915
    %v2917 = vtanh.pop %v2916
    %v2918 = vsub.f32 %v2755, %v2917
    %v2919 = vmul.f32 %v2913, %v2918
    %v2920 = vadd.f32 %v2917, %v2919
    %v2921 = vld [vmem:[%s912] sm:$0xff]
    %v2922 = vld [vmem:[%s912 + $0x8] sm:$0xff]
    %v2923 = vld [vmem:[%s912 + $0x10] sm:$0xff]
    %2924 = vmatprep.subr.mxu0 %v2547
    %2925 = vmatpush1.msra.mxu0 %v2546
    %2926 = vmatprep.subr.mxu0 %v2550
    %2927 = vmatpush1.msra.mxu0 %v2549
    %2928 = vmatprep.subr.mxu0 %v2553
    %2929 = vmatpush1.msra.mxu0 %v2552
    %2930 = vmatprep.subr.mxu0 %v2556
    %2931 = vmatpush1.msra.mxu0 %v2555
    %2932 = vmatprep.subr.mxu0 %v2559
    %2933 = vmatpush1.msra.mxu0 %v2558
    %2934 = vmatprep.subr.mxu0 %v2562
    %2935 = vmatpush1.msra.mxu0 %v2561
    %2936 = vmatprep.subr.mxu0 %v2565
    %2937 = vmatpush1.msra.mxu0 %v2564
    %2938 = vmatprep.subr.mxu0 %v2568
    %2939 = vmatpush1.msra.mxu0 %v2567
    %2940 = vmatprep.subr.mxu0 %v2571
    %2941 = vmatpush1.msra.mxu0 %v2570
    %2942 = vmatprep.subr.mxu0 %v2574
    %2943 = vmatpush1.msra.mxu0 %v2573
    %2944 = vmatprep.subr.mxu0 %v2577
    %2945 = vmatpush1.msra.mxu0 %v2576
    %2946 = vmatprep.subr.mxu0 %v2580
    %2947 = vmatpush1.msra.mxu0 %v2579
    %2948 = vmatprep.subr.mxu0 %v2583
    %2949 = vmatpush1.msra.mxu0 %v2582
    %2950 = vmatprep.subr.mxu0 %v2586
    %2951 = vmatpush1.msra.mxu0 %v2585
    %2952 = vmatprep.subr.mxu0 %v2589
    %2953 = vmatpush1.msra.mxu0 %v2588
    %2954 = vmatprep.subr.mxu0 %v2592
    %2955 = vmatpush1.msra.mxu0 %v2591
    %2956 = vmatprep.subr.mxu0 0.0
    %2957 = vmatpush1.msra.mxu0 0.0
    %2958 = vmatprep.subr.mxu0 0.0
    %2959 = vmatpush1.msra.mxu0 0.0
    %2960 = vmatprep.subr.mxu0 0.0
    %2961 = vmatpush1.msra.mxu0 0.0
    %2962 = vmatprep.subr.mxu0 0.0
    %2963 = vmatpush1.msra.mxu0 0.0
    %2964 = vmatprep.subr.mxu0 0.0
    %2965 = vmatpush1.msra.mxu0 0.0
    %2966 = vmatprep.subr.mxu0 0.0
    %2967 = vmatpush1.msra.mxu0 0.0
    %2968 = vmatprep.subr.mxu0 0.0
    %2969 = vmatpush1.msra.mxu0 0.0
    %2970 = vmatprep.subr.mxu0 0.0
    %2971 = vmatpush1.msra.mxu0 0.0
    %2972 = vmatprep.subr.mxu0 0.0
    %2973 = vmatpush1.msra.mxu0 0.0
    %2974 = vmatprep.subr.mxu0 0.0
    %2975 = vmatpush1.msra.mxu0 0.0
    %2976 = vmatprep.subr.mxu0 0.0
    %2977 = vmatpush1.msra.mxu0 0.0
    %2978 = vmatprep.subr.mxu0 0.0
    %2979 = vmatpush1.msra.mxu0 0.0
    %2980 = vmatprep.subr.mxu0 0.0
    %2981 = vmatpush1.msra.mxu0 0.0
    %2982 = vmatprep.subr.mxu0 0.0
    %2983 = vmatpush1.msra.mxu0 0.0
    %2984 = vmatprep.subr.mxu0 0.0
    %2985 = vmatpush1.msra.mxu0 0.0
    %2986 = vmatprep.subr.mxu0 0.0
    %2987 = vmatpush1.msra.mxu0 0.0
    %2988 = vmatprep.mubr.f32.mxu0 0.0
    %2989 = vmatmul.mubr.f32.gmra.mrb[0].mxu0 %v2920
    %v2990 = vpop.f32.mrb[0].mxu0
    %v2991 = vadd.f32 0.0, %v2990
    %v2992 = vpop.f32.mrb[0].mxu0
    %v2993 = vadd.f32 0.0, %v2992
    %2994 = vdwg.mxu0
    %2995 = vmatprep.subr.mxu0 0.0
    %2996 = vmatpush1.msra.mxu0 %v2548
    %2997 = vmatprep.subr.mxu0 0.0
    %2998 = vmatpush1.msra.mxu0 %v2551
    %2999 = vmatprep.subr.mxu0 0.0
    %3000 = vmatpush1.msra.mxu0 %v2554
    %3001 = vmatprep.subr.mxu0 0.0
    %3002 = vmatpush1.msra.mxu0 %v2557
    %3003 = vmatprep.subr.mxu0 0.0
    %3004 = vmatpush1.msra.mxu0 %v2560
    %3005 = vmatprep.subr.mxu0 0.0
    %3006 = vmatpush1.msra.mxu0 %v2563
    %3007 = vmatprep.subr.mxu0 0.0
    %3008 = vmatpush1.msra.mxu0 %v2566
    %3009 = vmatprep.subr.mxu0 0.0
    %3010 = vmatpush1.msra.mxu0 %v2569
    %3011 = vmatprep.subr.mxu0 0.0
    %3012 = vmatpush1.msra.mxu0 %v2572
    %3013 = vmatprep.subr.mxu0 0.0
    %3014 = vmatpush1.msra.mxu0 %v2575
    %3015 = vmatprep.subr.mxu0 0.0
    %3016 = vmatpush1.msra.mxu0 %v2578
    %3017 = vmatprep.subr.mxu0 0.0
    %3018 = vmatpush1.msra.mxu0 %v2581
    %3019 = vmatprep.subr.mxu0 0.0
    %3020 = vmatpush1.msra.mxu0 %v2584
    %3021 = vmatprep.subr.mxu0 0.0
    %3022 = vmatpush1.msra.mxu0 %v2587
    %3023 = vmatprep.subr.mxu0 0.0
    %3024 = vmatpush1.msra.mxu0 %v2590
    %3025 = vmatprep.subr.mxu0 0.0
    %3026 = vmatpush1.msra.mxu0 %v2593
    %3027 = vmatprep.subr.mxu0 0.0
    %3028 = vmatpush1.msra.mxu0 0.0
    %3029 = vmatprep.subr.mxu0 0.0
    %3030 = vmatpush1.msra.mxu0 0.0
    %3031 = vmatprep.subr.mxu0 0.0
    %3032 = vmatpush1.msra.mxu0 0.0
    %3033 = vmatprep.subr.mxu0 0.0
    %3034 = vmatpush1.msra.mxu0 0.0
    %3035 = vmatprep.subr.mxu0 0.0
    %3036 = vmatpush1.msra.mxu0 0.0
    %3037 = vmatprep.subr.mxu0 0.0
    %3038 = vmatpush1.msra.mxu0 0.0
    %3039 = vmatprep.subr.mxu0 0.0
    %3040 = vmatpush1.msra.mxu0 0.0
    %3041 = vmatprep.subr.mxu0 0.0
    %3042 = vmatpush1.msra.mxu0 0.0
    %3043 = vmatprep.subr.mxu0 0.0
    %3044 = vmatpush1.msra.mxu0 0.0
    %3045 = vmatprep.subr.mxu0 0.0
    %3046 = vmatpush1.msra.mxu0 0.0
    %3047 = vmatprep.subr.mxu0 0.0
    %3048 = vmatpush1.msra.mxu0 0.0
    %3049 = vmatprep.subr.mxu0 0.0
    %3050 = vmatpush1.msra.mxu0 0.0
    %3051 = vmatprep.subr.mxu0 0.0
    %3052 = vmatpush1.msra.mxu0 0.0
    %3053 = vmatprep.subr.mxu0 0.0
    %3054 = vmatpush1.msra.mxu0 0.0
    %3055 = vmatprep.subr.mxu0 0.0
    %3056 = vmatpush1.msra.mxu0 0.0
    %3057 = vmatprep.subr.mxu0 0.0
    %3058 = vmatpush1.msra.mxu0 0.0
    %3059 = vmatprep.mubr.f32.mxu0 0.0
    %3060 = vmatmul.mubr.f32.gmra.mrb[0].mxu0 %v2920
    %v3061 = vpop.f32.mrb[0].mxu0
    %v3062 = vadd.f32 0.0, %v3061
    %v3063 = vpop.f32.mrb[0].mxu0
    %3064 = vdwg.mxu0
    %v3065 = vadd.f32 %v2921, %v2991
    %v3066 = vxor.u32 %v3065, 2147483648
    %v3067 = vmul.f32 %v3066, 1.442695
    %v3068 = vpow.pop %v3067
    %v3069 = vadd.f32 %v3068, 1.0
    %v3070 = vrcp.pop %v3069
    %v3071 = vmul.f32 1.0, %v3070
    %v3072 = vadd.f32 %v2922, %v2993
    %v3073 = vxor.u32 %v3072, 2147483648
    %v3074 = vmul.f32 %v3073, 1.442695
    %v3075 = vpow.pop %v3074
    %v3076 = vadd.f32 %v3075, 1.0
    %v3077 = vrcp.pop %v3076
    %v3078 = vmul.f32 1.0, %v3077
    %v3079 = vadd.f32 %v3062, %v2539
    %v3080 = vmul.f32 %v3071, %v3079
    %v3081 = vadd.f32 %v2923, %v3080
    %v3082 = vtanh.pop %v3081
    %v3083 = vsub.f32 %v2920, %v3082
    %v3084 = vmul.f32 %v3078, %v3083
    %v3085 = vadd.f32 %v3082, %v3084
    %v3086 = vld [vmem:[%s1130] sm:$0xff]
    %v3087 = vld [vmem:[%s1130 + $0x8] sm:$0xff]
    %v3088 = vld [vmem:[%s1130 + $0x10] sm:$0xff]
    %3089 = vmatprep.subr.mxu0 %v2547
    %3090 = vmatpush1.msra.mxu0 %v2546
    %3091 = vmatprep.subr.mxu0 %v2550
    %3092 = vmatpush1.msra.mxu0 %v2549
    %3093 = vmatprep.subr.mxu0 %v2553
    %3094 = vmatpush1.msra.mxu0 %v2552
    %3095 = vmatprep.subr.mxu0 %v2556
    %3096 = vmatpush1.msra.mxu0 %v2555
    %3097 = vmatprep.subr.mxu0 %v2559
    %3098 = vmatpush1.msra.mxu0 %v2558
    %3099 = vmatprep.subr.mxu0 %v2562
    %3100 = vmatpush1.msra.mxu0 %v2561
    %3101 = vmatprep.subr.mxu0 %v2565
    %3102 = vmatpush1.msra.mxu0 %v2564
    %3103 = vmatprep.subr.mxu0 %v2568
    %3104 = vmatpush1.msra.mxu0 %v2567
    %3105 = vmatprep.subr.mxu0 %v2571
    %3106 = vmatpush1.msra.mxu0 %v2570
    %3107 = vmatprep.subr.mxu0 %v2574
    %3108 = vmatpush1.msra.mxu0 %v2573
    %3109 = vmatprep.subr.mxu0 %v2577
    %3110 = vmatpush1.msra.mxu0 %v2576
    %3111 = vmatprep.subr.mxu0 %v2580
    %3112 = vmatpush1.msra.mxu0 %v2579
    %3113 = vmatprep.subr.mxu0 %v2583
    %3114 = vmatpush1.msra.mxu0 %v2582
    %3115 = vmatprep.subr.mxu0 %v2586
    %3116 = vmatpush1.msra.mxu0 %v2585
    %3117 = vmatprep.subr.mxu0 %v2589
    %3118 = vmatpush1.msra.mxu0 %v2588
    %3119 = vmatprep.subr.mxu0 %v2592
    %3120 = vmatpush1.msra.mxu0 %v2591
    %3121 = vmatprep.subr.mxu0 0.0
    %3122 = vmatpush1.msra.mxu0 0.0
    %3123 = vmatprep.subr.mxu0 0.0
    %3124 = vmatpush1.msra.mxu0 0.0
    %3125 = vmatprep.subr.mxu0 0.0
    %3126 = vmatpush1.msra.mxu0 0.0
    %3127 = vmatprep.subr.mxu0 0.0
    %3128 = vmatpush1.msra.mxu0 0.0
    %3129 = vmatprep.subr.mxu0 0.0
    %3130 = vmatpush1.msra.mxu0 0.0
    %3131 = vmatprep.subr.mxu0 0.0
    %3132 = vmatpush1.msra.mxu0 0.0
    %3133 = vmatprep.subr.mxu0 0.0
    %3134 = vmatpush1.msra.mxu0 0.0
    %3135 = vmatprep.subr.mxu0 0.0
    %3136 = vmatpush1.msra.mxu0 0.0
    %3137 = vmatprep.subr.mxu0 0.0
    %3138 = vmatpush1.msra.mxu0 0.0
    %3139 = vmatprep.subr.mxu0 0.0
    %3140 = vmatpush1.msra.mxu0 0.0
    %3141 = vmatprep.subr.mxu0 0.0
    %3142 = vmatpush1.msra.mxu0 0.0
    %3143 = vmatprep.subr.mxu0 0.0
    %3144 = vmatpush1.msra.mxu0 0.0
    %3145 = vmatprep.subr.mxu0 0.0
    %3146 = vmatpush1.msra.mxu0 0.0
    %3147 = vmatprep.subr.mxu0 0.0
    %3148 = vmatpush1.msra.mxu0 0.0
    %3149 = vmatprep.subr.mxu0 0.0
    %3150 = vmatpush1.msra.mxu0 0.0
    %3151 = vmatprep.subr.mxu0 0.0
    %3152 = vmatpush1.msra.mxu0 0.0
    %3153 = vmatprep.mubr.f32.mxu0 0.0
    %3154 = vmatmul.mubr.f32.gmra.mrb[0].mxu0 %v3085
    %v3155 = vpop.f32.mrb[0].mxu0
    %v3156 = vadd.f32 0.0, %v3155
    %v3157 = vpop.f32.mrb[0].mxu0
    %v3158 = vadd.f32 0.0, %v3157
    %3159 = vdwg.mxu0
    %3160 = vmatprep.subr.mxu0 0.0
    %3161 = vmatpush1.msra.mxu0 %v2548
    %3162 = vmatprep.subr.mxu0 0.0
    %3163 = vmatpush1.msra.mxu0 %v2551
    %3164 = vmatprep.subr.mxu0 0.0
    %3165 = vmatpush1.msra.mxu0 %v2554
    %3166 = vmatprep.subr.mxu0 0.0
    %3167 = vmatpush1.msra.mxu0 %v2557
    %3168 = vmatprep.subr.mxu0 0.0
    %3169 = vmatpush1.msra.mxu0 %v2560
    %3170 = vmatprep.subr.mxu0 0.0
    %3171 = vmatpush1.msra.mxu0 %v2563
    %3172 = vmatprep.subr.mxu0 0.0
    %3173 = vmatpush1.msra.mxu0 %v2566
    %3174 = vmatprep.subr.mxu0 0.0
    %3175 = vmatpush1.msra.mxu0 %v2569
    %3176 = vmatprep.subr.mxu0 0.0
    %3177 = vmatpush1.msra.mxu0 %v2572
    %3178 = vmatprep.subr.mxu0 0.0
    %3179 = vmatpush1.msra.mxu0 %v2575
    %3180 = vmatprep.subr.mxu0 0.0
    %3181 = vmatpush1.msra.mxu0 %v2578
    %3182 = vmatprep.subr.mxu0 0.0
    %3183 = vmatpush1.msra.mxu0 %v2581
    %3184 = vmatprep.subr.mxu0 0.0
    %3185 = vmatpush1.msra.mxu0 %v2584
    %3186 = vmatprep.subr.mxu0 0.0
    %3187 = vmatpush1.msra.mxu0 %v2587
    %3188 = vmatprep.subr.mxu0 0.0
    %3189 = vmatpush1.msra.mxu0 %v2590
    %3190 = vmatprep.subr.mxu0 0.0
    %3191 = vmatpush1.msra.mxu0 %v2593
    %3192 = vmatprep.subr.mxu0 0.0
    %3193 = vmatpush1.msra.mxu0 0.0
    %3194 = vmatprep.subr.mxu0 0.0
    %3195 = vmatpush1.msra.mxu0 0.0
    %3196 = vmatprep.subr.mxu0 0.0
    %3197 = vmatpush1.msra.mxu0 0.0
    %3198 = vmatprep.subr.mxu0 0.0
    %3199 = vmatpush1.msra.mxu0 0.0
    %3200 = vmatprep.subr.mxu0 0.0
    %3201 = vmatpush1.msra.mxu0 0.0
    %3202 = vmatprep.subr.mxu0 0.0
    %3203 = vmatpush1.msra.mxu0 0.0
    %3204 = vmatprep.subr.mxu0 0.0
    %3205 = vmatpush1.msra.mxu0 0.0
    %3206 = vmatprep.subr.mxu0 0.0
    %3207 = vmatpush1.msra.mxu0 0.0
    %3208 = vmatprep.subr.mxu0 0.0
    %3209 = vmatpush1.msra.mxu0 0.0
    %3210 = vmatprep.subr.mxu0 0.0
    %3211 = vmatpush1.msra.mxu0 0.0
    %3212 = vmatprep.subr.mxu0 0.0
    %3213 = vmatpush1.msra.mxu0 0.0
    %3214 = vmatprep.subr.mxu0 0.0
    %3215 = vmatpush1.msra.mxu0 0.0
    %3216 = vmatprep.subr.mxu0 0.0
    %3217 = vmatpush1.msra.mxu0 0.0
    %3218 = vmatprep.subr.mxu0 0.0
    %3219 = vmatpush1.msra.mxu0 0.0
    %3220 = vmatprep.subr.mxu0 0.0
    %3221 = vmatpush1.msra.mxu0 0.0
    %3222 = vmatprep.subr.mxu0 0.0
    %3223 = vmatpush1.msra.mxu0 0.0
    %3224 = vmatprep.mubr.f32.mxu0 0.0
    %3225 = vmatmul.mubr.f32.gmra.mrb[0].mxu0 %v3085
    %v3226 = vpop.f32.mrb[0].mxu0
    %v3227 = vadd.f32 0.0, %v3226
    %v3228 = vpop.f32.mrb[0].mxu0
    %3229 = vdwg.mxu0
    %v3230 = vadd.f32 %v3086, %v3156
    %v3231 = vxor.u32 %v3230, 2147483648
    %v3232 = vmul.f32 %v3231, 1.442695
    %v3233 = vpow.pop %v3232
    %v3234 = vadd.f32 %v3233, 1.0
    %v3235 = vrcp.pop %v3234
    %v3236 = vmul.f32 1.0, %v3235
    %v3237 = vadd.f32 %v3087, %v3158
    %v3238 = vxor.u32 %v3237, 2147483648
    %v3239 = vmul.f32 %v3238, 1.442695
    %v3240 = vpow.pop %v3239
    %v3241 = vadd.f32 %v3240, 1.0
    %v3242 = vrcp.pop %v3241
    %v3243 = vmul.f32 1.0, %v3242
    %v3244 = vadd.f32 %v3227, %v2539
    %v3245 = vmul.f32 %v3236, %v3244
    %v3246 = vadd.f32 %v3088, %v3245
    %v3247 = vtanh.pop %v3246
    %v3248 = vsub.f32 %v3085, %v3247
    %v3249 = vmul.f32 %v3243, %v3248
    %v3250 = vadd.f32 %v3247, %v3249
    %v3251 = vld [vmem:[%s1348] sm:$0xff]
    %v3252 = vld [vmem:[%s1348 + $0x8] sm:$0xff]
    %v3253 = vld [vmem:[%s1348 + $0x10] sm:$0xff]
    %3254 = vmatprep.subr.mxu0 %v2547
    %3255 = vmatpush1.msra.mxu0 %v2546
    %3256 = vmatprep.subr.mxu0 %v2550
    %3257 = vmatpush1.msra.mxu0 %v2549
    %3258 = vmatprep.subr.mxu0 %v2553
    %3259 = vmatpush1.msra.mxu0 %v2552
    %3260 = vmatprep.subr.mxu0 %v2556
    %3261 = vmatpush1.msra.mxu0 %v2555
    %3262 = vmatprep.subr.mxu0 %v2559
    %3263 = vmatpush1.msra.mxu0 %v2558
    %3264 = vmatprep.subr.mxu0 %v2562
    %3265 = vmatpush1.msra.mxu0 %v2561
    %3266 = vmatprep.subr.mxu0 %v2565
    %3267 = vmatpush1.msra.mxu0 %v2564
    %3268 = vmatprep.subr.mxu0 %v2568
    %3269 = vmatpush1.msra.mxu0 %v2567
    %3270 = vmatprep.subr.mxu0 %v2571
    %3271 = vmatpush1.msra.mxu0 %v2570
    %3272 = vmatprep.subr.mxu0 %v2574
    %3273 = vmatpush1.msra.mxu0 %v2573
    %3274 = vmatprep.subr.mxu0 %v2577
    %3275 = vmatpush1.msra.mxu0 %v2576
    %3276 = vmatprep.subr.mxu0 %v2580
    %3277 = vmatpush1.msra.mxu0 %v2579
    %3278 = vmatprep.subr.mxu0 %v2583
    %3279 = vmatpush1.msra.mxu0 %v2582
    %3280 = vmatprep.subr.mxu0 %v2586
    %3281 = vmatpush1.msra.mxu0 %v2585
    %3282 = vmatprep.subr.mxu0 %v2589
    %3283 = vmatpush1.msra.mxu0 %v2588
    %3284 = vmatprep.subr.mxu0 %v2592
    %3285 = vmatpush1.msra.mxu0 %v2591
    %3286 = vmatprep.subr.mxu0 0.0
    %3287 = vmatpush1.msra.mxu0 0.0
    %3288 = vmatprep.subr.mxu0 0.0
    %3289 = vmatpush1.msra.mxu0 0.0
    %3290 = vmatprep.subr.mxu0 0.0
    %3291 = vmatpush1.msra.mxu0 0.0
    %3292 = vmatprep.subr.mxu0 0.0
    %3293 = vmatpush1.msra.mxu0 0.0
    %3294 = vmatprep.subr.mxu0 0.0
    %3295 = vmatpush1.msra.mxu0 0.0
    %3296 = vmatprep.subr.mxu0 0.0
    %3297 = vmatpush1.msra.mxu0 0.0
    %3298 = vmatprep.subr.mxu0 0.0
    %3299 = vmatpush1.msra.mxu0 0.0
    %3300 = vmatprep.subr.mxu0 0.0
    %3301 = vmatpush1.msra.mxu0 0.0
    %3302 = vmatprep.subr.mxu0 0.0
    %3303 = vmatpush1.msra.mxu0 0.0
    %3304 = vmatprep.subr.mxu0 0.0
    %3305 = vmatpush1.msra.mxu0 0.0
    %3306 = vmatprep.subr.mxu0 0.0
    %3307 = vmatpush1.msra.mxu0 0.0
    %3308 = vmatprep.subr.mxu0 0.0
    %3309 = vmatpush1.msra.mxu0 0.0
    %3310 = vmatprep.subr.mxu0 0.0
    %3311 = vmatpush1.msra.mxu0 0.0
    %3312 = vmatprep.subr.mxu0 0.0
    %3313 = vmatpush1.msra.mxu0 0.0
    %3314 = vmatprep.subr.mxu0 0.0
    %3315 = vmatpush1.msra.mxu0 0.0
    %3316 = vmatprep.subr.mxu0 0.0
    %3317 = vmatpush1.msra.mxu0 0.0
    %3318 = vmatprep.mubr.f32.mxu0 0.0
    %3319 = vmatmul.mubr.f32.gmra.mrb[0].mxu0 %v3250
    %v3320 = vpop.f32.mrb[0].mxu0
    %v3321 = vadd.f32 0.0, %v3320
    %v3322 = vpop.f32.mrb[0].mxu0
    %v3323 = vadd.f32 0.0, %v3322
    %3324 = vdwg.mxu0
    %3325 = vmatprep.subr.mxu0 0.0
    %3326 = vmatpush1.msra.mxu0 %v2548
    %3327 = vmatprep.subr.mxu0 0.0
    %3328 = vmatpush1.msra.mxu0 %v2551
    %3329 = vmatprep.subr.mxu0 0.0
    %3330 = vmatpush1.msra.mxu0 %v2554
    %3331 = vmatprep.subr.mxu0 0.0
    %3332 = vmatpush1.msra.mxu0 %v2557
    %3333 = vmatprep.subr.mxu0 0.0
    %3334 = vmatpush1.msra.mxu0 %v2560
    %3335 = vmatprep.subr.mxu0 0.0
    %3336 = vmatpush1.msra.mxu0 %v2563
    %3337 = vmatprep.subr.mxu0 0.0
    %3338 = vmatpush1.msra.mxu0 %v2566
    %3339 = vmatprep.subr.mxu0 0.0
    %3340 = vmatpush1.msra.mxu0 %v2569
    %3341 = vmatprep.subr.mxu0 0.0
    %3342 = vmatpush1.msra.mxu0 %v2572
    %3343 = vmatprep.subr.mxu0 0.0
    %3344 = vmatpush1.msra.mxu0 %v2575
    %3345 = vmatprep.subr.mxu0 0.0
    %3346 = vmatpush1.msra.mxu0 %v2578
    %3347 = vmatprep.subr.mxu0 0.0
    %3348 = vmatpush1.msra.mxu0 %v2581
    %3349 = vmatprep.subr.mxu0 0.0
    %3350 = vmatpush1.msra.mxu0 %v2584
    %3351 = vmatprep.subr.mxu0 0.0
    %3352 = vmatpush1.msra.mxu0 %v2587
    %3353 = vmatprep.subr.mxu0 0.0
    %3354 = vmatpush1.msra.mxu0 %v2590
    %3355 = vmatprep.subr.mxu0 0.0
    %3356 = vmatpush1.msra.mxu0 %v2593
    %3357 = vmatprep.subr.mxu0 0.0
    %3358 = vmatpush1.msra.mxu0 0.0
    %3359 = vmatprep.subr.mxu0 0.0
    %3360 = vmatpush1.msra.mxu0 0.0
    %3361 = vmatprep.subr.mxu0 0.0
    %3362 = vmatpush1.msra.mxu0 0.0
    %3363 = vmatprep.subr.mxu0 0.0
    %3364 = vmatpush1.msra.mxu0 0.0
    %3365 = vmatprep.subr.mxu0 0.0
    %3366 = vmatpush1.msra.mxu0 0.0
    %3367 = vmatprep.subr.mxu0 0.0
    %3368 = vmatpush1.msra.mxu0 0.0
    %3369 = vmatprep.subr.mxu0 0.0
    %3370 = vmatpush1.msra.mxu0 0.0
    %3371 = vmatprep.subr.mxu0 0.0
    %3372 = vmatpush1.msra.mxu0 0.0
    %3373 = vmatprep.subr.mxu0 0.0
    %3374 = vmatpush1.msra.mxu0 0.0
    %3375 = vmatprep.subr.mxu0 0.0
    %3376 = vmatpush1.msra.mxu0 0.0
    %3377 = vmatprep.subr.mxu0 0.0
    %3378 = vmatpush1.msra.mxu0 0.0
    %3379 = vmatprep.subr.mxu0 0.0
    %3380 = vmatpush1.msra.mxu0 0.0
    %3381 = vmatprep.subr.mxu0 0.0
    %3382 = vmatpush1.msra.mxu0 0.0
    %3383 = vmatprep.subr.mxu0 0.0
    %3384 = vmatpush1.msra.mxu0 0.0
    %3385 = vmatprep.subr.mxu0 0.0
    %3386 = vmatpush1.msra.mxu0 0.0
    %3387 = vmatprep.subr.mxu0 0.0
    %3388 = vmatpush1.msra.mxu0 0.0
    %3389 = vmatprep.mubr.f32.mxu0 0.0
    %3390 = vmatmul.mubr.f32.gmra.mrb[0].mxu0 %v3250
    %v3391 = vpop.f32.mrb[0].mxu0
    %v3392 = vadd.f32 0.0, %v3391
    %v3393 = vpop.f32.mrb[0].mxu0
    %3394 = vdwg.mxu0
    %v3395 = vadd.f32 %v3251, %v3321
    %v3396 = vxor.u32 %v3395, 2147483648
    %v3397 = vmul.f32 %v3396, 1.442695
    %v3398 = vpow.pop %v3397
    %v3399 = vadd.f32 %v3398, 1.0
    %v3400 = vrcp.pop %v3399
    %v3401 = vmul.f32 1.0, %v3400
    %v3402 = vadd.f32 %v3252, %v3323
    %v3403 = vxor.u32 %v3402, 2147483648
    %v3404 = vmul.f32 %v3403, 1.442695
    %v3405 = vpow.pop %v3404
    %v3406 = vadd.f32 %v3405, 1.0
    %v3407 = vrcp.pop %v3406
    %v3408 = vmul.f32 1.0, %v3407
    %v3409 = vadd.f32 %v3392, %v2539
    %v3410 = vmul.f32 %v3401, %v3409
    %v3411 = vadd.f32 %v3253, %v3410
    %v3412 = vtanh.pop %v3411
    %v3413 = vsub.f32 %v3250, %v3412
    %v3414 = vmul.f32 %v3408, %v3413
    %v3415 = vadd.f32 %v3412, %v3414
    %v3416 = vld [vmem:[%s1566] sm:$0xff]
    %v3417 = vld [vmem:[%s1566 + $0x8] sm:$0xff]
    %v3418 = vld [vmem:[%s1566 + $0x10] sm:$0xff]
    %3419 = vmatprep.subr.mxu0 %v2547
    %3420 = vmatpush1.msra.mxu0 %v2546
    %3421 = vmatprep.subr.mxu0 %v2550
    %3422 = vmatpush1.msra.mxu0 %v2549
    %3423 = vmatprep.subr.mxu0 %v2553
    %3424 = vmatpush1.msra.mxu0 %v2552
    %3425 = vmatprep.subr.mxu0 %v2556
    %3426 = vmatpush1.msra.mxu0 %v2555
    %3427 = vmatprep.subr.mxu0 %v2559
    %3428 = vmatpush1.msra.mxu0 %v2558
    %3429 = vmatprep.subr.mxu0 %v2562
    %3430 = vmatpush1.msra.mxu0 %v2561
    %3431 = vmatprep.subr.mxu0 %v2565
    %3432 = vmatpush1.msra.mxu0 %v2564
    %3433 = vmatprep.subr.mxu0 %v2568
    %3434 = vmatpush1.msra.mxu0 %v2567
    %3435 = vmatprep.subr.mxu0 %v2571
    %3436 = vmatpush1.msra.mxu0 %v2570
    %3437 = vmatprep.subr.mxu0 %v2574
    %3438 = vmatpush1.msra.mxu0 %v2573
    %3439 = vmatprep.subr.mxu0 %v2577
    %3440 = vmatpush1.msra.mxu0 %v2576
    %3441 = vmatprep.subr.mxu0 %v2580
    %3442 = vmatpush1.msra.mxu0 %v2579
    %3443 = vmatprep.subr.mxu0 %v2583
    %3444 = vmatpush1.msra.mxu0 %v2582
    %3445 = vmatprep.subr.mxu0 %v2586
    %3446 = vmatpush1.msra.mxu0 %v2585
    %3447 = vmatprep.subr.mxu0 %v2589
    %3448 = vmatpush1.msra.mxu0 %v2588
    %3449 = vmatprep.subr.mxu0 %v2592
    %3450 = vmatpush1.msra.mxu0 %v2591
    %3451 = vmatprep.subr.mxu0 0.0
    %3452 = vmatpush1.msra.mxu0 0.0
    %3453 = vmatprep.subr.mxu0 0.0
    %3454 = vmatpush1.msra.mxu0 0.0
    %3455 = vmatprep.subr.mxu0 0.0
    %3456 = vmatpush1.msra.mxu0 0.0
    %3457 = vmatprep.subr.mxu0 0.0
    %3458 = vmatpush1.msra.mxu0 0.0
    %3459 = vmatprep.subr.mxu0 0.0
    %3460 = vmatpush1.msra.mxu0 0.0
    %3461 = vmatprep.subr.mxu0 0.0
    %3462 = vmatpush1.msra.mxu0 0.0
    %3463 = vmatprep.subr.mxu0 0.0
    %3464 = vmatpush1.msra.mxu0 0.0
    %3465 = vmatprep.subr.mxu0 0.0
    %3466 = vmatpush1.msra.mxu0 0.0
    %3467 = vmatprep.subr.mxu0 0.0
    %3468 = vmatpush1.msra.mxu0 0.0
    %3469 = vmatprep.subr.mxu0 0.0
    %3470 = vmatpush1.msra.mxu0 0.0
    %3471 = vmatprep.subr.mxu0 0.0
    %3472 = vmatpush1.msra.mxu0 0.0
    %3473 = vmatprep.subr.mxu0 0.0
    %3474 = vmatpush1.msra.mxu0 0.0
    %3475 = vmatprep.subr.mxu0 0.0
    %3476 = vmatpush1.msra.mxu0 0.0
    %3477 = vmatprep.subr.mxu0 0.0
    %3478 = vmatpush1.msra.mxu0 0.0
    %3479 = vmatprep.subr.mxu0 0.0
    %3480 = vmatpush1.msra.mxu0 0.0
    %3481 = vmatprep.subr.mxu0 0.0
    %3482 = vmatpush1.msra.mxu0 0.0
    %3483 = vmatprep.mubr.f32.mxu0 0.0
    %3484 = vmatmul.mubr.f32.gmra.mrb[0].mxu0 %v3415
    %v3485 = vpop.f32.mrb[0].mxu0
    %v3486 = vadd.f32 0.0, %v3485
    %v3487 = vpop.f32.mrb[0].mxu0
    %v3488 = vadd.f32 0.0, %v3487
    %3489 = vdwg.mxu0
    %3490 = vmatprep.subr.mxu0 0.0
    %3491 = vmatpush1.msra.mxu0 %v2548
    %3492 = vmatprep.subr.mxu0 0.0
    %3493 = vmatpush1.msra.mxu0 %v2551
    %3494 = vmatprep.subr.mxu0 0.0
    %3495 = vmatpush1.msra.mxu0 %v2554
    %3496 = vmatprep.subr.mxu0 0.0
    %3497 = vmatpush1.msra.mxu0 %v2557
    %3498 = vmatprep.subr.mxu0 0.0
    %3499 = vmatpush1.msra.mxu0 %v2560
    %3500 = vmatprep.subr.mxu0 0.0
    %3501 = vmatpush1.msra.mxu0 %v2563
    %3502 = vmatprep.subr.mxu0 0.0
    %3503 = vmatpush1.msra.mxu0 %v2566
    %3504 = vmatprep.subr.mxu0 0.0
    %3505 = vmatpush1.msra.mxu0 %v2569
    %3506 = vmatprep.subr.mxu0 0.0
    %3507 = vmatpush1.msra.mxu0 %v2572
    %3508 = vmatprep.subr.mxu0 0.0
    %3509 = vmatpush1.msra.mxu0 %v2575
    %3510 = vmatprep.subr.mxu0 0.0
    %3511 = vmatpush1.msra.mxu0 %v2578
    %3512 = vmatprep.subr.mxu0 0.0
    %3513 = vmatpush1.msra.mxu0 %v2581
    %3514 = vmatprep.subr.mxu0 0.0
    %3515 = vmatpush1.msra.mxu0 %v2584
    %3516 = vmatprep.subr.mxu0 0.0
    %3517 = vmatpush1.msra.mxu0 %v2587
    %3518 = vmatprep.subr.mxu0 0.0
    %3519 = vmatpush1.msra.mxu0 %v2590
    %3520 = vmatprep.subr.mxu0 0.0
    %3521 = vmatpush1.msra.mxu0 %v2593
    %3522 = vmatprep.subr.mxu0 0.0
    %3523 = vmatpush1.msra.mxu0 0.0
    %3524 = vmatprep.subr.mxu0 0.0
    %3525 = vmatpush1.msra.mxu0 0.0
    %3526 = vmatprep.subr.mxu0 0.0
    %3527 = vmatpush1.msra.mxu0 0.0
    %3528 = vmatprep.subr.mxu0 0.0
    %3529 = vmatpush1.msra.mxu0 0.0
    %3530 = vmatprep.subr.mxu0 0.0
    %3531 = vmatpush1.msra.mxu0 0.0
    %3532 = vmatprep.subr.mxu0 0.0
    %3533 = vmatpush1.msra.mxu0 0.0
    %3534 = vmatprep.subr.mxu0 0.0
    %3535 = vmatpush1.msra.mxu0 0.0
    %3536 = vmatprep.subr.mxu0 0.0
    %3537 = vmatpush1.msra.mxu0 0.0
    %3538 = vmatprep.subr.mxu0 0.0
    %3539 = vmatpush1.msra.mxu0 0.0
    %3540 = vmatprep.subr.mxu0 0.0
    %3541 = vmatpush1.msra.mxu0 0.0
    %3542 = vmatprep.subr.mxu0 0.0
    %3543 = vmatpush1.msra.mxu0 0.0
    %3544 = vmatprep.subr.mxu0 0.0
    %3545 = vmatpush1.msra.mxu0 0.0
    %3546 = vmatprep.subr.mxu0 0.0
    %3547 = vmatpush1.msra.mxu0 0.0
    %3548 = vmatprep.subr.mxu0 0.0
    %3549 = vmatpush1.msra.mxu0 0.0
    %3550 = vmatprep.subr.mxu0 0.0
    %3551 = vmatpush1.msra.mxu0 0.0
    %3552 = vmatprep.subr.mxu0 0.0
    %3553 = vmatpush1.msra.mxu0 0.0
    %3554 = vmatprep.mubr.f32.mxu0 0.0
    %3555 = vmatmul.mubr.f32.gmra.mrb[0].mxu0 %v3415
    %v3556 = vpop.f32.mrb[0].mxu0
    %v3557 = vadd.f32 0.0, %v3556
    %v3558 = vpop.f32.mrb[0].mxu0
    %3559 = vdwg.mxu0
    %v3560 = vadd.f32 %v3416, %v3486
    %v3561 = vxor.u32 %v3560, 2147483648
    %v3562 = vmul.f32 %v3561, 1.442695
    %v3563 = vpow.pop %v3562
    %v3564 = vadd.f32 %v3563, 1.0
    %v3565 = vrcp.pop %v3564
    %v3566 = vmul.f32 1.0, %v3565
    %v3567 = vadd.f32 %v3417, %v3488
    %v3568 = vxor.u32 %v3567, 2147483648
    %v3569 = vmul.f32 %v3568, 1.442695
    %v3570 = vpow.pop %v3569
    %v3571 = vadd.f32 %v3570, 1.0
    %v3572 = vrcp.pop %v3571
    %v3573 = vmul.f32 1.0, %v3572
    %v3574 = vadd.f32 %v3557, %v2539
    %v3575 = vmul.f32 %v3566, %v3574
    %v3576 = vadd.f32 %v3418, %v3575
    %v3577 = vtanh.pop %v3576
    %v3578 = vsub.f32 %v3415, %v3577
    %v3579 = vmul.f32 %v3573, %v3578
    %v3580 = vadd.f32 %v3577, %v3579
    %v3581 = vld [vmem:[%s1784] sm:$0xff]
    %v3582 = vld [vmem:[%s1784 + $0x8] sm:$0xff]
    %v3583 = vld [vmem:[%s1784 + $0x10] sm:$0xff]
    %3584 = vmatprep.subr.mxu0 %v2547
    %3585 = vmatpush1.msra.mxu0 %v2546
    %3586 = vmatprep.subr.mxu0 %v2550
    %3587 = vmatpush1.msra.mxu0 %v2549
    %3588 = vmatprep.subr.mxu0 %v2553
    %3589 = vmatpush1.msra.mxu0 %v2552
    %3590 = vmatprep.subr.mxu0 %v2556
    %3591 = vmatpush1.msra.mxu0 %v2555
    %3592 = vmatprep.subr.mxu0 %v2559
    %3593 = vmatpush1.msra.mxu0 %v2558
    %3594 = vmatprep.subr.mxu0 %v2562
    %3595 = vmatpush1.msra.mxu0 %v2561
    %3596 = vmatprep.subr.mxu0 %v2565
    %3597 = vmatpush1.msra.mxu0 %v2564
    %3598 = vmatprep.subr.mxu0 %v2568
    %3599 = vmatpush1.msra.mxu0 %v2567
    %3600 = vmatprep.subr.mxu0 %v2571
    %3601 = vmatpush1.msra.mxu0 %v2570
    %3602 = vmatprep.subr.mxu0 %v2574
    %3603 = vmatpush1.msra.mxu0 %v2573
    %3604 = vmatprep.subr.mxu0 %v2577
    %3605 = vmatpush1.msra.mxu0 %v2576
    %3606 = vmatprep.subr.mxu0 %v2580
    %3607 = vmatpush1.msra.mxu0 %v2579
    %3608 = vmatprep.subr.mxu0 %v2583
    %3609 = vmatpush1.msra.mxu0 %v2582
    %3610 = vmatprep.subr.mxu0 %v2586
    %3611 = vmatpush1.msra.mxu0 %v2585
    %3612 = vmatprep.subr.mxu0 %v2589
    %3613 = vmatpush1.msra.mxu0 %v2588
    %3614 = vmatprep.subr.mxu0 %v2592
    %3615 = vmatpush1.msra.mxu0 %v2591
    %3616 = vmatprep.subr.mxu0 0.0
    %3617 = vmatpush1.msra.mxu0 0.0
    %3618 = vmatprep.subr.mxu0 0.0
    %3619 = vmatpush1.msra.mxu0 0.0
    %3620 = vmatprep.subr.mxu0 0.0
    %3621 = vmatpush1.msra.mxu0 0.0
    %3622 = vmatprep.subr.mxu0 0.0
    %3623 = vmatpush1.msra.mxu0 0.0
    %3624 = vmatprep.subr.mxu0 0.0
    %3625 = vmatpush1.msra.mxu0 0.0
    %3626 = vmatprep.subr.mxu0 0.0
    %3627 = vmatpush1.msra.mxu0 0.0
    %3628 = vmatprep.subr.mxu0 0.0
    %3629 = vmatpush1.msra.mxu0 0.0
    %3630 = vmatprep.subr.mxu0 0.0
    %3631 = vmatpush1.msra.mxu0 0.0
    %3632 = vmatprep.subr.mxu0 0.0
    %3633 = vmatpush1.msra.mxu0 0.0
    %3634 = vmatprep.subr.mxu0 0.0
    %3635 = vmatpush1.msra.mxu0 0.0
    %3636 = vmatprep.subr.mxu0 0.0
    %3637 = vmatpush1.msra.mxu0 0.0
    %3638 = vmatprep.subr.mxu0 0.0
    %3639 = vmatpush1.msra.mxu0 0.0
    %3640 = vmatprep.subr.mxu0 0.0
    %3641 = vmatpush1.msra.mxu0 0.0
    %3642 = vmatprep.subr.mxu0 0.0
    %3643 = vmatpush1.msra.mxu0 0.0
    %3644 = vmatprep.subr.mxu0 0.0
    %3645 = vmatpush1.msra.mxu0 0.0
    %3646 = vmatprep.subr.mxu0 0.0
    %3647 = vmatpush1.msra.mxu0 0.0
    %3648 = vmatprep.mubr.f32.mxu0 0.0
    %3649 = vmatmul.mubr.f32.gmra.mrb[0].mxu0 %v3580
    %v3650 = vpop.f32.mrb[0].mxu0
    %v3651 = vadd.f32 0.0, %v3650
    %v3652 = vpop.f32.mrb[0].mxu0
    %v3653 = vadd.f32 0.0, %v3652
    %3654 = vdwg.mxu0
    %3655 = vmatprep.subr.mxu0 0.0
    %3656 = vmatpush1.msra.mxu0 %v2548
    %3657 = vmatprep.subr.mxu0 0.0
    %3658 = vmatpush1.msra.mxu0 %v2551
    %3659 = vmatprep.subr.mxu0 0.0
    %3660 = vmatpush1.msra.mxu0 %v2554
    %3661 = vmatprep.subr.mxu0 0.0
    %3662 = vmatpush1.msra.mxu0 %v2557
    %3663 = vmatprep.subr.mxu0 0.0
    %3664 = vmatpush1.msra.mxu0 %v2560
    %3665 = vmatprep.subr.mxu0 0.0
    %3666 = vmatpush1.msra.mxu0 %v2563
    %3667 = vmatprep.subr.mxu0 0.0
    %3668 = vmatpush1.msra.mxu0 %v2566
    %3669 = vmatprep.subr.mxu0 0.0
    %3670 = vmatpush1.msra.mxu0 %v2569
    %3671 = vmatprep.subr.mxu0 0.0
    %3672 = vmatpush1.msra.mxu0 %v2572
    %3673 = vmatprep.subr.mxu0 0.0
    %3674 = vmatpush1.msra.mxu0 %v2575
    %3675 = vmatprep.subr.mxu0 0.0
    %3676 = vmatpush1.msra.mxu0 %v2578
    %3677 = vmatprep.subr.mxu0 0.0
    %3678 = vmatpush1.msra.mxu0 %v2581
    %3679 = vmatprep.subr.mxu0 0.0
    %3680 = vmatpush1.msra.mxu0 %v2584
    %3681 = vmatprep.subr.mxu0 0.0
    %3682 = vmatpush1.msra.mxu0 %v2587
    %3683 = vmatprep.subr.mxu0 0.0
    %3684 = vmatpush1.msra.mxu0 %v2590
    %3685 = vmatprep.subr.mxu0 0.0
    %3686 = vmatpush1.msra.mxu0 %v2593
    %3687 = vmatprep.subr.mxu0 0.0
    %3688 = vmatpush1.msra.mxu0 0.0
    %3689 = vmatprep.subr.mxu0 0.0
    %3690 = vmatpush1.msra.mxu0 0.0
    %3691 = vmatprep.subr.mxu0 0.0
    %3692 = vmatpush1.msra.mxu0 0.0
    %3693 = vmatprep.subr.mxu0 0.0
    %3694 = vmatpush1.msra.mxu0 0.0
    %3695 = vmatprep.subr.mxu0 0.0
    %3696 = vmatpush1.msra.mxu0 0.0
    %3697 = vmatprep.subr.mxu0 0.0
    %3698 = vmatpush1.msra.mxu0 0.0
    %3699 = vmatprep.subr.mxu0 0.0
    %3700 = vmatpush1.msra.mxu0 0.0
    %3701 = vmatprep.subr.mxu0 0.0
    %3702 = vmatpush1.msra.mxu0 0.0
    %3703 = vmatprep.subr.mxu0 0.0
    %3704 = vmatpush1.msra.mxu0 0.0
    %3705 = vmatprep.subr.mxu0 0.0
    %3706 = vmatpush1.msra.mxu0 0.0
    %3707 = vmatprep.subr.mxu0 0.0
    %3708 = vmatpush1.msra.mxu0 0.0
    %3709 = vmatprep.subr.mxu0 0.0
    %3710 = vmatpush1.msra.mxu0 0.0
    %3711 = vmatprep.subr.mxu0 0.0
    %3712 = vmatpush1.msra.mxu0 0.0
    %3713 = vmatprep.subr.mxu0 0.0
    %3714 = vmatpush1.msra.mxu0 0.0
    %3715 = vmatprep.subr.mxu0 0.0
    %3716 = vmatpush1.msra.mxu0 0.0
    %3717 = vmatprep.subr.mxu0 0.0
    %3718 = vmatpush1.msra.mxu0 0.0
    %3719 = vmatprep.mubr.f32.mxu0 0.0
    %3720 = vmatmul.mubr.f32.gmra.mrb[0].mxu0 %v3580
    %v3721 = vpop.f32.mrb[0].mxu0
    %v3722 = vadd.f32 0.0, %v3721
    %v3723 = vpop.f32.mrb[0].mxu0
    %3724 = vdwg.mxu0
    %v3725 = vadd.f32 %v3581, %v3651
    %v3726 = vxor.u32 %v3725, 2147483648
    %v3727 = vmul.f32 %v3726, 1.442695
    %v3728 = vpow.pop %v3727
    %v3729 = vadd.f32 %v3728, 1.0
    %v3730 = vrcp.pop %v3729
    %v3731 = vmul.f32 1.0, %v3730
    %v3732 = vadd.f32 %v3582, %v3653
    %v3733 = vxor.u32 %v3732, 2147483648
    %v3734 = vmul.f32 %v3733, 1.442695
    %v3735 = vpow.pop %v3734
    %v3736 = vadd.f32 %v3735, 1.0
    %v3737 = vrcp.pop %v3736
    %v3738 = vmul.f32 1.0, %v3737
    %v3739 = vadd.f32 %v3722, %v2539
    %v3740 = vmul.f32 %v3731, %v3739
    %v3741 = vadd.f32 %v3583, %v3740
    %v3742 = vtanh.pop %v3741
    %v3743 = vsub.f32 %v3580, %v3742
    %v3744 = vmul.f32 %v3738, %v3743
    %v3745 = vadd.f32 %v3742, %v3744
    %v3746 = vld [vmem:[%s2002] sm:$0xff]
    %v3747 = vld [vmem:[%s2002 + $0x8] sm:$0xff]
    %v3748 = vld [vmem:[%s2002 + $0x10] sm:$0xff]
    %3749 = vmatprep.subr.mxu0 %v2547
    %3750 = vmatpush1.msra.mxu0 %v2546
    %3751 = vmatprep.subr.mxu0 %v2550
    %3752 = vmatpush1.msra.mxu0 %v2549
    %3753 = vmatprep.subr.mxu0 %v2553
    %3754 = vmatpush1.msra.mxu0 %v2552
    %3755 = vmatprep.subr.mxu0 %v2556
    %3756 = vmatpush1.msra.mxu0 %v2555
    %3757 = vmatprep.subr.mxu0 %v2559
    %3758 = vmatpush1.msra.mxu0 %v2558
    %3759 = vmatprep.subr.mxu0 %v2562
    %3760 = vmatpush1.msra.mxu0 %v2561
    %3761 = vmatprep.subr.mxu0 %v2565
    %3762 = vmatpush1.msra.mxu0 %v2564
    %3763 = vmatprep.subr.mxu0 %v2568
    %3764 = vmatpush1.msra.mxu0 %v2567
    %3765 = vmatprep.subr.mxu0 %v2571
    %3766 = vmatpush1.msra.mxu0 %v2570
    %3767 = vmatprep.subr.mxu0 %v2574
    %3768 = vmatpush1.msra.mxu0 %v2573
    %3769 = vmatprep.subr.mxu0 %v2577
    %3770 = vmatpush1.msra.mxu0 %v2576
    %3771 = vmatprep.subr.mxu0 %v2580
    %3772 = vmatpush1.msra.mxu0 %v2579
    %3773 = vmatprep.subr.mxu0 %v2583
    %3774 = vmatpush1.msra.mxu0 %v2582
    %3775 = vmatprep.subr.mxu0 %v2586
    %3776 = vmatpush1.msra.mxu0 %v2585
    %3777 = vmatprep.subr.mxu0 %v2589
    %3778 = vmatpush1.msra.mxu0 %v2588
    %3779 = vmatprep.subr.mxu0 %v2592
    %3780 = vmatpush1.msra.mxu0 %v2591
    %3781 = vmatprep.subr.mxu0 0.0
    %3782 = vmatpush1.msra.mxu0 0.0
    %3783 = vmatprep.subr.mxu0 0.0
    %3784 = vmatpush1.msra.mxu0 0.0
    %3785 = vmatprep.subr.mxu0 0.0
    %3786 = vmatpush1.msra.mxu0 0.0
    %3787 = vmatprep.subr.mxu0 0.0
    %3788 = vmatpush1.msra.mxu0 0.0
    %3789 = vmatprep.subr.mxu0 0.0
    %3790 = vmatpush1.msra.mxu0 0.0
    %3791 = vmatprep.subr.mxu0 0.0
    %3792 = vmatpush1.msra.mxu0 0.0
    %3793 = vmatprep.subr.mxu0 0.0
    %3794 = vmatpush1.msra.mxu0 0.0
    %3795 = vmatprep.subr.mxu0 0.0
    %3796 = vmatpush1.msra.mxu0 0.0
    %3797 = vmatprep.subr.mxu0 0.0
    %3798 = vmatpush1.msra.mxu0 0.0
    %3799 = vmatprep.subr.mxu0 0.0
    %3800 = vmatpush1.msra.mxu0 0.0
    %3801 = vmatprep.subr.mxu0 0.0
    %3802 = vmatpush1.msra.mxu0 0.0
    %3803 = vmatprep.subr.mxu0 0.0
    %3804 = vmatpush1.msra.mxu0 0.0
    %3805 = vmatprep.subr.mxu0 0.0
    %3806 = vmatpush1.msra.mxu0 0.0
    %3807 = vmatprep.subr.mxu0 0.0
    %3808 = vmatpush1.msra.mxu0 0.0
    %3809 = vmatprep.subr.mxu0 0.0
    %3810 = vmatpush1.msra.mxu0 0.0
    %3811 = vmatprep.subr.mxu0 0.0
    %3812 = vmatpush1.msra.mxu0 0.0
    %3813 = vmatprep.mubr.f32.mxu0 0.0
    %3814 = vmatmul.mubr.f32.gmra.mrb[0].mxu0 %v3745
    %v3815 = vpop.f32.mrb[0].mxu0
    %v3816 = vadd.f32 0.0, %v3815
    %v3817 = vpop.f32.mrb[0].mxu0
    %v3818 = vadd.f32 0.0, %v3817
    %3819 = vdwg.mxu0
    %3820 = vmatprep.subr.mxu0 0.0
    %3821 = vmatpush1.msra.mxu0 %v2548
    %3822 = vmatprep.subr.mxu0 0.0
    %3823 = vmatpush1.msra.mxu0 %v2551
    %3824 = vmatprep.subr.mxu0 0.0
    %3825 = vmatpush1.msra.mxu0 %v2554
    %3826 = vmatprep.subr.mxu0 0.0
    %3827 = vmatpush1.msra.mxu0 %v2557
    %3828 = vmatprep.subr.mxu0 0.0
    %3829 = vmatpush1.msra.mxu0 %v2560
    %3830 = vmatprep.subr.mxu0 0.0
    %3831 = vmatpush1.msra.mxu0 %v2563
    %3832 = vmatprep.subr.mxu0 0.0
    %3833 = vmatpush1.msra.mxu0 %v2566
    %3834 = vmatprep.subr.mxu0 0.0
    %3835 = vmatpush1.msra.mxu0 %v2569
    %3836 = vmatprep.subr.mxu0 0.0
    %3837 = vmatpush1.msra.mxu0 %v2572
    %3838 = vmatprep.subr.mxu0 0.0
    %3839 = vmatpush1.msra.mxu0 %v2575
    %3840 = vmatprep.subr.mxu0 0.0
    %3841 = vmatpush1.msra.mxu0 %v2578
    %3842 = vmatprep.subr.mxu0 0.0
    %3843 = vmatpush1.msra.mxu0 %v2581
    %3844 = vmatprep.subr.mxu0 0.0
    %3845 = vmatpush1.msra.mxu0 %v2584
    %3846 = vmatprep.subr.mxu0 0.0
    %3847 = vmatpush1.msra.mxu0 %v2587
    %3848 = vmatprep.subr.mxu0 0.0
    %3849 = vmatpush1.msra.mxu0 %v2590
    %3850 = vmatprep.subr.mxu0 0.0
    %3851 = vmatpush1.msra.mxu0 %v2593
    %3852 = vmatprep.subr.mxu0 0.0
    %3853 = vmatpush1.msra.mxu0 0.0
    %3854 = vmatprep.subr.mxu0 0.0
    %3855 = vmatpush1.msra.mxu0 0.0
    %3856 = vmatprep.subr.mxu0 0.0
    %3857 = vmatpush1.msra.mxu0 0.0
    %3858 = vmatprep.subr.mxu0 0.0
    %3859 = vmatpush1.msra.mxu0 0.0
    %3860 = vmatprep.subr.mxu0 0.0
    %3861 = vmatpush1.msra.mxu0 0.0
    %3862 = vmatprep.subr.mxu0 0.0
    %3863 = vmatpush1.msra.mxu0 0.0
    %3864 = vmatprep.subr.mxu0 0.0
    %3865 = vmatpush1.msra.mxu0 0.0
    %3866 = vmatprep.subr.mxu0 0.0
    %3867 = vmatpush1.msra.mxu0 0.0
    %3868 = vmatprep.subr.mxu0 0.0
    %3869 = vmatpush1.msra.mxu0 0.0
    %3870 = vmatprep.subr.mxu0 0.0
    %3871 = vmatpush1.msra.mxu0 0.0
    %3872 = vmatprep.subr.mxu0 0.0
    %3873 = vmatpush1.msra.mxu0 0.0
    %3874 = vmatprep.subr.mxu0 0.0
    %3875 = vmatpush1.msra.mxu0 0.0
    %3876 = vmatprep.subr.mxu0 0.0
    %3877 = vmatpush1.msra.mxu0 0.0
    %3878 = vmatprep.subr.mxu0 0.0
    %3879 = vmatpush1.msra.mxu0 0.0
    %3880 = vmatprep.subr.mxu0 0.0
    %3881 = vmatpush1.msra.mxu0 0.0
    %3882 = vmatprep.subr.mxu0 0.0
    %3883 = vmatpush1.msra.mxu0 0.0
    %3884 = vmatprep.mubr.f32.mxu0 0.0
    %3885 = vmatmul.mubr.f32.gmra.mrb[0].mxu0 %v3745
    %v3886 = vpop.f32.mrb[0].mxu0
    %v3887 = vadd.f32 0.0, %v3886
    %v3888 = vpop.f32.mrb[0].mxu0
    %3889 = vdwg.mxu0
    %v3890 = vadd.f32 %v3746, %v3816
    %v3891 = vxor.u32 %v3890, 2147483648
    %v3892 = vmul.f32 %v3891, 1.442695
    %v3893 = vpow.pop %v3892
    %v3894 = vadd.f32 %v3893, 1.0
    %v3895 = vrcp.pop %v3894
    %v3896 = vmul.f32 1.0, %v3895
    %v3897 = vadd.f32 %v3747, %v3818
    %v3898 = vxor.u32 %v3897, 2147483648
    %v3899 = vmul.f32 %v3898, 1.442695
    %v3900 = vpow.pop %v3899
    %v3901 = vadd.f32 %v3900, 1.0
    %v3902 = vrcp.pop %v3901
    %v3903 = vmul.f32 1.0, %v3902
    %v3904 = vadd.f32 %v3887, %v2539
    %v3905 = vmul.f32 %v3896, %v3904
    %v3906 = vadd.f32 %v3748, %v3905
    %v3907 = vtanh.pop %v3906
    %v3908 = vsub.f32 %v3745, %v3907
    %v3909 = vmul.f32 %v3903, %v3908
    %v3910 = vadd.f32 %v3907, %v3909
    %3911 = vst [vmem:[%s2541] sm:$0xff] %v3910
    // Predicated region
    $region86: #{tpu_custom_call.1} parent=1 // pred_check
      %p3912 = pneg %p146
    $region87: #{tpu_custom_call.1} parent=1 // pred_check_branch
      %3914 = sbr.rel (%p3912) target = $region89
    $region88: #{tpu_custom_call.1} parent=1 // pred_region
      %v3915 = vld [vmem:[#allocation14] sm:$0xff]
      %v3916 = vld [vmem:[#allocation14 + $0x8] sm:$0xff]
      %v3917 = vld [vmem:[#allocation14 + $0x10] sm:$0xff]
      %v3918 = vld [vmem:[#allocation14 + $0x18] sm:$0xff]
      %v3919 = vld [vmem:[#allocation14 + $0x20] sm:$0xff]
      %v3920 = vld [vmem:[#allocation14 + $0x28] sm:$0xff]
      %v3921 = vld [vmem:[#allocation14 + $0x30] sm:$0xff]
      %v3922 = vld [vmem:[#allocation14 + $0x38] sm:$0xff]
      %v3923 = vld [vmem:[#allocation14 + $0x40] sm:$0xff]
      %v3924 = vld [vmem:[#allocation14 + $0x48] sm:$0xff]
      %v3925 = vld [vmem:[#allocation14 + $0x50] sm:$0xff]
      %v3926 = vld [vmem:[#allocation14 + $0x58] sm:$0xff]
      %v3927 = vld [vmem:[#allocation14 + $0x60] sm:$0xff]
      %v3928 = vld [vmem:[#allocation14 + $0x68] sm:$0xff]
      %v3929 = vld [vmem:[#allocation14 + $0x70] sm:$0xff]
      %v3930 = vld [vmem:[#allocation14 + $0x78] sm:$0xff]
      %v3931 = vld [vmem:[%s10] sm:$0x1]
      %v3933 = vlaneseq
      %v3934 = vshrl.u32 %v3933, 7
      %v3935 = vsub.s32 0, %v3934
      %v3936 = vrot.slane %v3931, %v3935
      %3938 = vmatprep.subr.mxu0 0.0
      %3939 = vmatpush1.msra.mxu0 %v3915
      %3940 = vmatprep.subr.mxu0 0.0
      %3941 = vmatpush1.msra.mxu0 %v3916
      %3942 = vmatprep.subr.mxu0 0.0
      %3943 = vmatpush1.msra.mxu0 %v3917
      %3944 = vmatprep.subr.mxu0 0.0
      %3945 = vmatpush1.msra.mxu0 %v3918
      %3946 = vmatprep.subr.mxu0 0.0
      %3947 = vmatpush1.msra.mxu0 %v3919
      %3948 = vmatprep.subr.mxu0 0.0
      %3949 = vmatpush1.msra.mxu0 %v3920
      %3950 = vmatprep.subr.mxu0 0.0
      %3951 = vmatpush1.msra.mxu0 %v3921
      %3952 = vmatprep.subr.mxu0 0.0
      %3953 = vmatpush1.msra.mxu0 %v3922
      %3954 = vmatprep.subr.mxu0 0.0
      %3955 = vmatpush1.msra.mxu0 %v3923
      %3956 = vmatprep.subr.mxu0 0.0
      %3957 = vmatpush1.msra.mxu0 %v3924
      %3958 = vmatprep.subr.mxu0 0.0
      %3959 = vmatpush1.msra.mxu0 %v3925
      %3960 = vmatprep.subr.mxu0 0.0
      %3961 = vmatpush1.msra.mxu0 %v3926
      %3962 = vmatprep.subr.mxu0 0.0
      %3963 = vmatpush1.msra.mxu0 %v3927
      %3964 = vmatprep.subr.mxu0 0.0
      %3965 = vmatpush1.msra.mxu0 %v3928
      %3966 = vmatprep.subr.mxu0 0.0
      %3967 = vmatpush1.msra.mxu0 %v3929
      %3968 = vmatprep.subr.mxu0 0.0
      %3969 = vmatpush1.msra.mxu0 %v3930
      %3970 = vmatprep.subr.mxu0 0.0
      %3971 = vmatpush1.msra.mxu0 0.0
      %3972 = vmatprep.subr.mxu0 0.0
      %3973 = vmatpush1.msra.mxu0 0.0
      %3974 = vmatprep.subr.mxu0 0.0
      %3975 = vmatpush1.msra.mxu0 0.0
      %3976 = vmatprep.subr.mxu0 0.0
      %3977 = vmatpush1.msra.mxu0 0.0
      %3978 = vmatprep.subr.mxu0 0.0
      %3979 = vmatpush1.msra.mxu0 0.0
      %3980 = vmatprep.subr.mxu0 0.0
      %3981 = vmatpush1.msra.mxu0 0.0
      %3982 = vmatprep.subr.mxu0 0.0
      %3983 = vmatpush1.msra.mxu0 0.0
      %3984 = vmatprep.subr.mxu0 0.0
      %3985 = vmatpush1.msra.mxu0 0.0
      %3986 = vmatprep.subr.mxu0 0.0
      %3987 = vmatpush1.msra.mxu0 0.0
      %3988 = vmatprep.subr.mxu0 0.0
      %3989 = vmatpush1.msra.mxu0 0.0
      %3990 = vmatprep.subr.mxu0 0.0
      %3991 = vmatpush1.msra.mxu0 0.0
      %3992 = vmatprep.subr.mxu0 0.0
      %3993 = vmatpush1.msra.mxu0 0.0
      %3994 = vmatprep.subr.mxu0 0.0
      %3995 = vmatpush1.msra.mxu0 0.0
      %3996 = vmatprep.subr.mxu0 0.0
      %3997 = vmatpush1.msra.mxu0 0.0
      %3998 = vmatprep.subr.mxu0 0.0
      %3999 = vmatpush1.msra.mxu0 0.0
      %4000 = vmatprep.subr.mxu0 0.0
      %4001 = vmatpush1.msra.mxu0 0.0
      %4002 = vmatprep.mubr.f32.mxu0 0.0
      %4003 = vmatmul.mubr.f32.gmra.mrb[0].mxu0 %v3910
      %v4004 = vpop.f32.mrb[0].mxu0
      %v4005 = vadd.f32 %v3936, %v4004
      %v4006 = vpop.f32.mrb[0].mxu0
      %4007 = vdwg.mxu0
      %v4008 = vmax.f32 %v4005, 0.0
      %v4009 = vld [vmem:[#allocation16] sm:$0xff]
      %v4010 = vld [vmem:[#allocation16 + $0x8] sm:$0xff]
      %v4011 = vld [vmem:[#allocation16 + $0x10] sm:$0xff]
      %v4012 = vld [vmem:[#allocation16 + $0x18] sm:$0xff]
      %v4013 = vld [vmem:[#allocation16 + $0x20] sm:$0xff]
      %v4014 = vld [vmem:[#allocation16 + $0x28] sm:$0xff]
      %v4015 = vld [vmem:[#allocation16 + $0x30] sm:$0xff]
      %v4016 = vld [vmem:[#allocation16 + $0x38] sm:$0xff]
      %v4017 = vld [vmem:[#allocation16 + $0x40] sm:$0xff]
      %v4018 = vld [vmem:[#allocation16 + $0x48] sm:$0xff]
      %v4019 = vld [vmem:[#allocation16 + $0x50] sm:$0xff]
      %v4020 = vld [vmem:[#allocation16 + $0x58] sm:$0xff]
      %v4021 = vld [vmem:[#allocation16 + $0x60] sm:$0xff]
      %v4022 = vld [vmem:[#allocation16 + $0x68] sm:$0xff]
      %v4023 = vld [vmem:[#allocation16 + $0x70] sm:$0xff]
      %v4024 = vld [vmem:[#allocation16 + $0x78] sm:$0xff]
      %v4025 = vld [vmem:[%s12] sm:$0x1]
      %v4027 = vlaneseq
      %v4028 = vshrl.u32 %v4027, 7
      %v4029 = vsub.s32 0, %v4028
      %v4030 = vrot.slane %v4025, %v4029
      %4032 = vmatprep.subr.mxu0 0.0
      %4033 = vmatpush1.msra.mxu0 %v4009
      %4034 = vmatprep.subr.mxu0 0.0
      %4035 = vmatpush1.msra.mxu0 %v4010
      %4036 = vmatprep.subr.mxu0 0.0
      %4037 = vmatpush1.msra.mxu0 %v4011
      %4038 = vmatprep.subr.mxu0 0.0
      %4039 = vmatpush1.msra.mxu0 %v4012
      %4040 = vmatprep.subr.mxu0 0.0
      %4041 = vmatpush1.msra.mxu0 %v4013
      %4042 = vmatprep.subr.mxu0 0.0
      %4043 = vmatpush1.msra.mxu0 %v4014
      %4044 = vmatprep.subr.mxu0 0.0
      %4045 = vmatpush1.msra.mxu0 %v4015
      %4046 = vmatprep.subr.mxu0 0.0
      %4047 = vmatpush1.msra.mxu0 %v4016
      %4048 = vmatprep.subr.mxu0 0.0
      %4049 = vmatpush1.msra.mxu0 %v4017
      %4050 = vmatprep.subr.mxu0 0.0
      %4051 = vmatpush1.msra.mxu0 %v4018
      %4052 = vmatprep.subr.mxu0 0.0
      %4053 = vmatpush1.msra.mxu0 %v4019
      %4054 = vmatprep.subr.mxu0 0.0
      %4055 = vmatpush1.msra.mxu0 %v4020
      %4056 = vmatprep.subr.mxu0 0.0
      %4057 = vmatpush1.msra.mxu0 %v4021
      %4058 = vmatprep.subr.mxu0 0.0
      %4059 = vmatpush1.msra.mxu0 %v4022
      %4060 = vmatprep.subr.mxu0 0.0
      %4061 = vmatpush1.msra.mxu0 %v4023
      %4062 = vmatprep.subr.mxu0 0.0
      %4063 = vmatpush1.msra.mxu0 %v4024
      %4064 = vmatprep.subr.mxu0 0.0
      %4065 = vmatpush1.msra.mxu0 0.0
      %4066 = vmatprep.subr.mxu0 0.0
      %4067 = vmatpush1.msra.mxu0 0.0
      %4068 = vmatprep.subr.mxu0 0.0
      %4069 = vmatpush1.msra.mxu0 0.0
      %4070 = vmatprep.subr.mxu0 0.0
      %4071 = vmatpush1.msra.mxu0 0.0
      %4072 = vmatprep.subr.mxu0 0.0
      %4073 = vmatpush1.msra.mxu0 0.0
      %4074 = vmatprep.subr.mxu0 0.0
      %4075 = vmatpush1.msra.mxu0 0.0
      %4076 = vmatprep.subr.mxu0 0.0
      %4077 = vmatpush1.msra.mxu0 0.0
      %4078 = vmatprep.subr.mxu0 0.0
      %4079 = vmatpush1.msra.mxu0 0.0
      %4080 = vmatprep.subr.mxu0 0.0
      %4081 = vmatpush1.msra.mxu0 0.0
      %4082 = vmatprep.subr.mxu0 0.0
      %4083 = vmatpush1.msra.mxu0 0.0
      %4084 = vmatprep.subr.mxu0 0.0
      %4085 = vmatpush1.msra.mxu0 0.0
      %4086 = vmatprep.subr.mxu0 0.0
      %4087 = vmatpush1.msra.mxu0 0.0
      %4088 = vmatprep.subr.mxu0 0.0
      %4089 = vmatpush1.msra.mxu0 0.0
      %4090 = vmatprep.subr.mxu0 0.0
      %4091 = vmatpush1.msra.mxu0 0.0
      %4092 = vmatprep.subr.mxu0 0.0
      %4093 = vmatpush1.msra.mxu0 0.0
      %4094 = vmatprep.subr.mxu0 0.0
      %4095 = vmatpush1.msra.mxu0 0.0
      %4096 = vmatprep.mubr.f32.mxu0 0.0
      %4097 = vmatmul.mubr.f32.gmra.mrb[0].mxu0 %v4008
      %v4098 = vpop.f32.mrb[0].mxu0
      %v4099 = vadd.f32 %v4030, %v4098
      %v4100 = vpop.f32.mrb[0].mxu0
      %4101 = vdwg.mxu0
      %4102 = vst [vmem:[#allocation17] sm:$0xff] %v4099
    $region89: #{tpu_custom_call.1} parent=1 // pred_fallthru
      _
    // Predicated region
    $region90: #{tpu_custom_call.1} parent=1 // pred_check
      _
    $region91: #{tpu_custom_call.1} parent=1 // pred_check_branch
      %4104 = sbr.rel (0) target = $region93
    $region92: #{tpu_custom_call.1} parent=1 // pred_region
      %s4106 = ssub.s32 128, 128
      %4107 = vsyncadd [#allocation7], %s4106
      %s4109 = sshll.u32 [#allocation17], 4
      %s4110 = int_to_ptr.vmem [resolvable:$true] %s4109
      %4112 = dma.vmem_to_hbm [thread:$0]  %s4110, 128, %s13, [#allocation7]
    $region93: #{tpu_custom_call.1} parent=1 // pred_fallthru
      _
    // Predicated region
    $region94: #{tpu_custom_call.1} parent=1 // pred_check
      _
    $region95: #{tpu_custom_call.1} parent=1 // pred_check_branch
      %4114 = sbr.rel (0) target = $region97
    $region96: #{tpu_custom_call.1} parent=1 // pred_region
      %4115 = dma.done [#allocation7], 128
    $region97: #{tpu_custom_call.1} parent=1 // pred_fallthru
      _
    %4116 = vsyncpa [#allocation6], 1
    %4117 = vsyncpa [#allocation9], 1
    %4118 = vsyncpa [#allocation12], 1
    %4119 = vsyncpa [#allocation15], 1
    %4120 = vsyncpa [#allocation7], 1

</llo_original>
